<compile_context>
chip_gen: v6e
topology: v6e:2x2x1
jax: 0.10.0
libtpu: 0.0.40
codegen_flags: <defaults>
</compile_context>

<pallas_src>
import jax
import jax.numpy as jnp
from jax.experimental import pallas as pl
from jax.experimental.pallas import tpu as pltpu

LOG_SIG_MAX = 2.0
LOG_SIG_MIN = -20.0

IN_DIM = 23
PAD_IN = 32            # 23 -> 32 (sublane multiple), extra rows/cols are zero
HID = 512
ACT_DIM = 2
HEAD_DIM = 2 * ACT_DIM  # fused mean | logstd head width

_MIB = 1024 * 1024


def _round_up(n, m):
    return ((n + m - 1) // m) * m


def _policy_kernel(x_ref,
                   w1_ref, b1_ref,
                   w2_ref, b2_ref,
                   w3_ref, b3_ref,
                   wh_ref, bh_ref,
                   out_ref):
    # x and all weights arrive as bf16; matmuls accumulate in f32 on the MXU.
    x = x_ref[...]

    h1 = jnp.dot(x, w1_ref[...], preferred_element_type=jnp.float32) + b1_ref[...]
    h1 = jnp.maximum(h1, 0.0).astype(jnp.bfloat16)

    h2 = jnp.dot(h1, w2_ref[...], preferred_element_type=jnp.float32) + b2_ref[...]
    h2 = jnp.maximum(h2, 0.0).astype(jnp.bfloat16)

    h3 = jnp.dot(h2, w3_ref[...], preferred_element_type=jnp.float32) + b3_ref[...]
    h3 = jnp.maximum(h3, 0.0).astype(jnp.bfloat16)

    # Fused mean|logstd head: one (TB, 512) x (512, 4) matmul.
    head = jnp.dot(h3, wh_ref[...], preferred_element_type=jnp.float32) + bh_ref[...]

    # lanes [0:ACT_DIM] -> tanh(mean); lanes [ACT_DIM:] -> clipped logstd.
    lane = jax.lax.broadcasted_iota(jnp.int32, head.shape, 1)
    fused = jnp.where(lane < ACT_DIM,
                      jnp.tanh(head),
                      jnp.clip(head, LOG_SIG_MIN, LOG_SIG_MAX))
    out_ref[...] = fused.astype(out_ref.dtype)


def _build_call(TB, Bp, weight_bytes, single_buffer_weights):
    resident = lambda i: (0, 0)        # weights/biases: DMA once, stay in VMEM

    def res_spec(shape):
        if single_buffer_weights:
            return pl.BlockSpec(shape, resident, pipeline_mode=pl.Buffered(1))
        return pl.BlockSpec(shape, resident)

    in_specs = [
        pl.BlockSpec((TB, PAD_IN), lambda i: (i, 0)),   # x tile streams (bf16)
        res_spec((PAD_IN, HID)),                        # w1 (bf16)
        res_spec((1, HID)),                             # b1 (f32)
        res_spec((HID, HID)),                           # w2
        res_spec((1, HID)),                             # b2
        res_spec((HID, HID)),                           # w3
        res_spec((1, HID)),                             # b3
        res_spec((HID, HEAD_DIM)),                      # wh (fused head)
        res_spec((1, HEAD_DIM)),                        # bh
    ]
    out_specs = pl.BlockSpec((TB, HEAD_DIM), lambda i: (i, 0))

    # Scoped-VMEM budget: (TB,512) f32 + bf16 activation temporaries dominate.
    # Keep it >= 32 MiB (covers defaults) and <= 56 MiB (< v7x 64 MiB/TC).
    act_bytes = 3 * TB * HID * 4 + 2 * TB * HID * 2
    io_bytes = 2 * TB * PAD_IN * 2 + 2 * TB * HEAD_DIM * 4
    vmem_limit = int(min(max(act_bytes + io_bytes + 2 * weight_bytes + 4 * _MIB,
                             32 * _MIB),
                         56 * _MIB))

    cost = pl.CostEstimate(
        flops=2 * Bp * (PAD_IN * HID + 2 * HID * HID + HID * HEAD_DIM),
        transcendentals=Bp * HEAD_DIM,
        bytes_accessed=weight_bytes + Bp * PAD_IN * 2 + Bp * HEAD_DIM * 4,
    )

    return pl.pallas_call(
        _policy_kernel,
        out_shape=jax.ShapeDtypeStruct((Bp, HEAD_DIM), jnp.float32),
        grid_spec=pltpu.PrefetchScalarGridSpec(
            num_scalar_prefetch=0,
            grid=(Bp // TB,),
            in_specs=in_specs,
            out_specs=out_specs,
        ),
        compiler_params=pltpu.CompilerParams(
            dimension_semantics=("parallel",),   # batch axis across v7x TCs
            vmem_limit_bytes=vmem_limit,
        ),
        cost_estimate=cost,
    )


def policy_net_forward(x, params, *, tb=2048):
    """x: (B, 23) float -> (a_mean (B, 2), a_logstd (B, 2)), both float32."""
    B = x.shape[0]

    # Pad batch to a multiple of 16 (bf16 sublane packing).  Single full-array
    # tile when the (padded) batch fits; otherwise TB-sized tiles (TB % 16 == 0)
    # so per-grid-step overhead is amortized and the grid has >= 2 steps.
    Bp16 = _round_up(B, 16)
    TBc = max(16, _round_up(min(tb, Bp16), 16))
    if Bp16 <= TBc:
        TB, Bp = Bp16, Bp16
    else:
        TB = TBc
        Bp = _round_up(B, TB)

    # Single fused cast+pad to bf16 (features 23 -> 32, batch B -> Bp with
    # zeros); halves the x DMA bytes vs. the old f32 padded copy.
    xp = jnp.zeros((Bp, PAD_IN), jnp.bfloat16).at[:B, :IN_DIM].set(
        x.astype(jnp.bfloat16))

    weight_bytes = sum(int(p.size) * p.dtype.itemsize for p in params.values())
    args = (xp,
            params["w1"], params["b1"],
            params["w2"], params["b2"],
            params["w3"], params["b3"],
            params["wh"], params["bh"])

    try:
        out = _build_call(TB, Bp, weight_bytes, True)(*args)
    except Exception:
        # pipeline_mode=pl.Buffered(1) unsupported on this jax build -> use
        # default (double-buffered) specs; correctness is identical.
        out = _build_call(TB, Bp, weight_bytes, False)(*args)

    a_mean = out[:B, :ACT_DIM]
    a_logstd = out[:B, ACT_DIM:]
    return a_mean, a_logstd


def init_params(key):
    """PyTorch nn.Linear default init (U(-1/sqrt(fan_in), 1/sqrt(fan_in))),
    then: zero-pad w1 rows 23->32, fuse the two heads, store weights as bf16."""
    def linear(key, fan_in, fan_out):
        kw, kb = jax.random.split(key)
        bound = 1.0 / jnp.sqrt(fan_in)
        w = jax.random.uniform(kw, (fan_in, fan_out), jnp.float32, -bound, bound)
        b = jax.random.uniform(kb, (1, fan_out), jnp.float32, -bound, bound)
        return w, b

    k1, k2, k3, k4, k5 = jax.random.split(key, 5)
    w1, b1 = linear(k1, IN_DIM, HID)
    w2, b2 = linear(k2, HID, HID)
    w3, b3 = linear(k3, HID, HID)
    wm, bm = linear(k4, HID, ACT_DIM)
    ws, bs = linear(k5, HID, ACT_DIM)

    w1p = jnp.zeros((PAD_IN, HID), jnp.float32).at[:IN_DIM, :].set(w1)
    wh = jnp.concatenate([wm, ws], axis=1)   # (512, 4): mean | logstd
    bh = jnp.concatenate([bm, bs], axis=1)   # (1, 4)

    return dict(
        w1=w1p.astype(jnp.bfloat16), b1=b1,
        w2=w2.astype(jnp.bfloat16), b2=b2,
        w3=w3.astype(jnp.bfloat16), b3=b3,
        wh=wh.astype(jnp.bfloat16), bh=bh,
    )


def reference_forward(x, p):
    """Pure-JAX reference with the same bf16-quantized operands as the kernel."""
    def mm(a, w):
        a16 = a.astype(jnp.bfloat16).astype(jnp.float32)
        return a16 @ w.astype(jnp.float32)

    B = x.shape[0]
    xp = jnp.zeros((B, PAD_IN), jnp.float32).at[:, :IN_DIM].set(
        x.astype(jnp.float32))
    h1 = jax.nn.relu(mm(xp, p["w1"]) + p["b1"])
    h2 = jax.nn.relu(mm(h1, p["w2"]) + p["b2"])
    h3 = jax.nn.relu(mm(h2, p["w3"]) + p["b3"])
    head = mm(h3, p["wh"]) + p["bh"]
    a_mean = jnp.tanh(head[:, :ACT_DIM])
    a_logstd = jnp.clip(head[:, ACT_DIM:], LOG_SIG_MIN, LOG_SIG_MAX)
    return a_mean, a_logstd


if __name__ == "__main__":
    key = jax.random.PRNGKey(0)
    kx, kx2, kp = jax.random.split(key, 3)
    params = init_params(kp)

    # --- small batch: single full-array tile (common inference regime) ---
    B = 8
    x = jax.random.normal(kx, (B, IN_DIM), jnp.float32)
    a_mean, a_logstd = policy_net_forward(x, params)
    jax.block_until_ready((a_mean, a_logstd))

    ref_mean, ref_logstd = reference_forward(x, params)
    assert a_mean.shape == (B, ACT_DIM) and a_logstd.shape == (B, ACT_DIM)
    assert jnp.allclose(a_mean, ref_mean, atol=2e-3, rtol=2e-3)
    assert jnp.allclose(a_logstd, ref_logstd, atol=2e-3, rtol=2e-3)
    # clamp bounds must be respected exactly (f32 clip in-kernel)
    assert jnp.all(a_logstd >= LOG_SIG_MIN) and jnp.all(a_logstd <= LOG_SIG_MAX)

    # --- multi-tile grid path: B not a multiple of the tile, 3 grid steps ---
    B2 = 40
    x2 = jax.random.normal(kx2, (B2, IN_DIM), jnp.float32)
    a_mean2, a_logstd2 = policy_net_forward(x2, params, tb=16)
    jax.block_until_ready((a_mean2, a_logstd2))

    ref_mean2, ref_logstd2 = reference_forward(x2, params)
    assert a_mean2.shape == (B2, ACT_DIM) and a_logstd2.shape == (B2, ACT_DIM)
    assert jnp.allclose(a_mean2, ref_mean2, atol=2e-3, rtol=2e-3)
    assert jnp.allclose(a_logstd2, ref_logstd2, atol=2e-3, rtol=2e-3)

    print("KERNEL_OK")
</pallas_src>

<mosaic_0001>
module attributes {stable_mosaic.version = 11 : i64} {
  func.func @_policy_kernel(%arg0: i32, %arg1: memref<16x32xbf16, #tpu.memory_space<vmem>>, %arg2: memref<32x512xbf16, #tpu.memory_space<vmem>>, %arg3: memref<1x512xf32, #tpu.memory_space<vmem>>, %arg4: memref<512x512xbf16, #tpu.memory_space<vmem>>, %arg5: memref<1x512xf32, #tpu.memory_space<vmem>>, %arg6: memref<512x512xbf16, #tpu.memory_space<vmem>>, %arg7: memref<1x512xf32, #tpu.memory_space<vmem>>, %arg8: memref<512x4xbf16, #tpu.memory_space<vmem>>, %arg9: memref<1x4xf32, #tpu.memory_space<vmem>>, %arg10: memref<16x4xf32, #tpu.memory_space<vmem>>) attributes {dimension_semantics = [#tpu.dimension_semantics<parallel>], iteration_bounds = array<i64: 1>, scalar_prefetch = 0 : i64, scratch_operands = 0 : i64, tpu.core_type = #tpu.core_type<tc>, window_params = [{transform_indices = @transform_0, window_bounds = array<i64: 16, 32>}, {pipeline_mode = #tpu.pipeline_mode<synchronous>, transform_indices = @transform_1, window_bounds = array<i64: 32, 512>}, {pipeline_mode = #tpu.pipeline_mode<synchronous>, transform_indices = @transform_2, window_bounds = array<i64: 1, 512>}, {pipeline_mode = #tpu.pipeline_mode<synchronous>, transform_indices = @transform_3, window_bounds = array<i64: 512, 512>}, {pipeline_mode = #tpu.pipeline_mode<synchronous>, transform_indices = @transform_4, window_bounds = array<i64: 1, 512>}, {pipeline_mode = #tpu.pipeline_mode<synchronous>, transform_indices = @transform_5, window_bounds = array<i64: 512, 512>}, {pipeline_mode = #tpu.pipeline_mode<synchronous>, transform_indices = @transform_6, window_bounds = array<i64: 1, 512>}, {pipeline_mode = #tpu.pipeline_mode<synchronous>, transform_indices = @transform_7, window_bounds = array<i64: 512, 4>}, {pipeline_mode = #tpu.pipeline_mode<synchronous>, transform_indices = @transform_8, window_bounds = array<i64: 1, 4>}, {transform_indices = @transform_9, window_bounds = array<i64: 16, 4>}]} {
    %c0 = arith.constant 0 : index
    %c0_0 = arith.constant 0 : index
    %0 = vector.load %arg1[%c0, %c0_0] : memref<16x32xbf16, #tpu.memory_space<vmem>>, vector<16x32xbf16>
    %c0_1 = arith.constant 0 : index
    %c0_2 = arith.constant 0 : index
    %1 = vector.load %arg2[%c0_1, %c0_2] : memref<32x512xbf16, #tpu.memory_space<vmem>>, vector<32x512xbf16>
    %cst = arith.constant dense<0.000000e+00> : vector<16x512xf32>
    %2 = tpu.matmul %0, %1, %cst {dimension_numbers = #tpu.dot_dimension_numbers<[1], [0], [0], [1], [0, 0, 1, 1], [], []>} : vector<16x32xbf16>, vector<32x512xbf16>, vector<16x512xf32> -> vector<16x512xf32>
    %c0_3 = arith.constant 0 : index
    %c0_4 = arith.constant 0 : index
    %3 = vector.load %arg3[%c0_3, %c0_4] : memref<1x512xf32, #tpu.memory_space<vmem>>, vector<1x512xf32>
    %4 = vector.broadcast %3 : vector<1x512xf32> to vector<16x512xf32>
    %5 = arith.addf %2, %4 : vector<16x512xf32>
    %cst_5 = arith.constant 0.000000e+00 : f32
    %6 = vector.broadcast %cst_5 : f32 to vector<16x512xf32>
    %7 = arith.maximumf %5, %6 : vector<16x512xf32>
    %8 = arith.truncf %7 : vector<16x512xf32> to vector<16x512xbf16>
    %c0_6 = arith.constant 0 : index
    %c0_7 = arith.constant 0 : index
    %9 = vector.load %arg4[%c0_6, %c0_7] : memref<512x512xbf16, #tpu.memory_space<vmem>>, vector<512x512xbf16>
    %cst_8 = arith.constant dense<0.000000e+00> : vector<16x512xf32>
    %10 = tpu.matmul %8, %9, %cst_8 {dimension_numbers = #tpu.dot_dimension_numbers<[1], [0], [0], [1], [0, 0, 1, 1], [], []>} : vector<16x512xbf16>, vector<512x512xbf16>, vector<16x512xf32> -> vector<16x512xf32>
    %c0_9 = arith.constant 0 : index
    %c0_10 = arith.constant 0 : index
    %11 = vector.load %arg5[%c0_9, %c0_10] : memref<1x512xf32, #tpu.memory_space<vmem>>, vector<1x512xf32>
    %12 = vector.broadcast %11 : vector<1x512xf32> to vector<16x512xf32>
    %13 = arith.addf %10, %12 : vector<16x512xf32>
    %cst_11 = arith.constant 0.000000e+00 : f32
    %14 = vector.broadcast %cst_11 : f32 to vector<16x512xf32>
    %15 = arith.maximumf %13, %14 : vector<16x512xf32>
    %16 = arith.truncf %15 : vector<16x512xf32> to vector<16x512xbf16>
    %c0_12 = arith.constant 0 : index
    %c0_13 = arith.constant 0 : index
    %17 = vector.load %arg6[%c0_12, %c0_13] : memref<512x512xbf16, #tpu.memory_space<vmem>>, vector<512x512xbf16>
    %cst_14 = arith.constant dense<0.000000e+00> : vector<16x512xf32>
    %18 = tpu.matmul %16, %17, %cst_14 {dimension_numbers = #tpu.dot_dimension_numbers<[1], [0], [0], [1], [0, 0, 1, 1], [], []>} : vector<16x512xbf16>, vector<512x512xbf16>, vector<16x512xf32> -> vector<16x512xf32>
    %c0_15 = arith.constant 0 : index
    %c0_16 = arith.constant 0 : index
    %19 = vector.load %arg7[%c0_15, %c0_16] : memref<1x512xf32, #tpu.memory_space<vmem>>, vector<1x512xf32>
    %20 = vector.broadcast %19 : vector<1x512xf32> to vector<16x512xf32>
    %21 = arith.addf %18, %20 : vector<16x512xf32>
    %cst_17 = arith.constant 0.000000e+00 : f32
    %22 = vector.broadcast %cst_17 : f32 to vector<16x512xf32>
    %23 = arith.maximumf %21, %22 : vector<16x512xf32>
    %24 = arith.truncf %23 : vector<16x512xf32> to vector<16x512xbf16>
    %c0_18 = arith.constant 0 : index
    %c0_19 = arith.constant 0 : index
    %25 = vector.load %arg8[%c0_18, %c0_19] : memref<512x4xbf16, #tpu.memory_space<vmem>>, vector<512x4xbf16>
    %cst_20 = arith.constant dense<0.000000e+00> : vector<16x4xf32>
    %26 = tpu.matmul %24, %25, %cst_20 {dimension_numbers = #tpu.dot_dimension_numbers<[1], [0], [0], [1], [0, 0, 1, 1], [], []>} : vector<16x512xbf16>, vector<512x4xbf16>, vector<16x4xf32> -> vector<16x4xf32>
    %c0_21 = arith.constant 0 : index
    %c0_22 = arith.constant 0 : index
    %27 = vector.load %arg9[%c0_21, %c0_22] : memref<1x4xf32, #tpu.memory_space<vmem>>, vector<1x4xf32>
    %28 = vector.broadcast %27 : vector<1x4xf32> to vector<16x4xf32>
    %29 = arith.addf %26, %28 : vector<16x4xf32>
    %30 = tpu.iota {dimensions = array<i32: 1>} : vector<16x4xi32>
    %c2_i32 = arith.constant 2 : i32
    %31 = vector.broadcast %c2_i32 : i32 to vector<16x4xi32>
    %32 = arith.cmpi slt, %30, %31 : vector<16x4xi32>
    %33 = math.tanh %29 : vector<16x4xf32>
    %cst_23 = arith.constant -2.000000e+01 : f32
    %cst_24 = arith.constant 2.000000e+00 : f32
    %34 = vector.broadcast %cst_23 : f32 to vector<16x4xf32>
    %35 = arith.maximumf %34, %29 : vector<16x4xf32>
    %36 = vector.broadcast %cst_24 : f32 to vector<16x4xf32>
    %37 = arith.minimumf %36, %35 : vector<16x4xf32>
    %38 = arith.select %32, %33, %37 : vector<16x4xi1>, vector<16x4xf32>
    %c0_25 = arith.constant 0 : index
    %c0_26 = arith.constant 0 : index
    %39 = vector.load %arg10[%c0_25, %c0_26] : memref<16x4xf32, #tpu.memory_space<vmem>>, vector<16x4xf32>
    tpu.vector_store %arg10[%c0_25, %c0_26], %38 {strides = array<i32>} : memref<16x4xf32, #tpu.memory_space<vmem>>, vector<16x4xf32>,
    return
  }
  func.func @transform_0(%arg0: i32) -> (i32, i32) {
    %c0_i32 = arith.constant 0 : i32
    %c0_i32_0 = arith.constant 0 : i32
    return %arg0, %c0_i32 : i32, i32
  }
  func.func @transform_1(%arg0: i32) -> (i32, i32) {
    %c0_i32 = arith.constant 0 : i32
    %c0_i32_0 = arith.constant 0 : i32
    %c0_i32_1 = arith.constant 0 : i32
    return %c0_i32, %c0_i32_0 : i32, i32
  }
  func.func @transform_2(%arg0: i32) -> (i32, i32) {
    %c0_i32 = arith.constant 0 : i32
    %c0_i32_0 = arith.constant 0 : i32
    %c0_i32_1 = arith.constant 0 : i32
    return %c0_i32, %c0_i32_0 : i32, i32
  }
  func.func @transform_3(%arg0: i32) -> (i32, i32) {
    %c0_i32 = arith.constant 0 : i32
    %c0_i32_0 = arith.constant 0 : i32
    %c0_i32_1 = arith.constant 0 : i32
    return %c0_i32, %c0_i32_0 : i32, i32
  }
  func.func @transform_4(%arg0: i32) -> (i32, i32) {
    %c0_i32 = arith.constant 0 : i32
    %c0_i32_0 = arith.constant 0 : i32
    %c0_i32_1 = arith.constant 0 : i32
    return %c0_i32, %c0_i32_0 : i32, i32
  }
  func.func @transform_5(%arg0: i32) -> (i32, i32) {
    %c0_i32 = arith.constant 0 : i32
    %c0_i32_0 = arith.constant 0 : i32
    %c0_i32_1 = arith.constant 0 : i32
    return %c0_i32, %c0_i32_0 : i32, i32
  }
  func.func @transform_6(%arg0: i32) -> (i32, i32) {
    %c0_i32 = arith.constant 0 : i32
    %c0_i32_0 = arith.constant 0 : i32
    %c0_i32_1 = arith.constant 0 : i32
    return %c0_i32, %c0_i32_0 : i32, i32
  }
  func.func @transform_7(%arg0: i32) -> (i32, i32) {
    %c0_i32 = arith.constant 0 : i32
    %c0_i32_0 = arith.constant 0 : i32
    %c0_i32_1 = arith.constant 0 : i32
    return %c0_i32, %c0_i32_0 : i32, i32
  }
  func.func @transform_8(%arg0: i32) -> (i32, i32) {
    %c0_i32 = arith.constant 0 : i32
    %c0_i32_0 = arith.constant 0 : i32
    %c0_i32_1 = arith.constant 0 : i32
    return %c0_i32, %c0_i32_0 : i32, i32
  }
  func.func @transform_9(%arg0: i32) -> (i32, i32) {
    %c0_i32 = arith.constant 0 : i32
    %c0_i32_0 = arith.constant 0 : i32
    return %arg0, %c0_i32 : i32, i32
  }
}

module attributes {stable_mosaic.version = 11 : i64} {
  func.func @_policy_kernel(%arg0: i32, %arg1: memref<16x32xbf16, #tpu.memory_space<vmem>>, %arg2: memref<32x512xbf16, #tpu.memory_space<vmem>>, %arg3: memref<1x512xf32, #tpu.memory_space<vmem>>, %arg4: memref<512x512xbf16, #tpu.memory_space<vmem>>, %arg5: memref<1x512xf32, #tpu.memory_space<vmem>>, %arg6: memref<512x512xbf16, #tpu.memory_space<vmem>>, %arg7: memref<1x512xf32, #tpu.memory_space<vmem>>, %arg8: memref<512x4xbf16, #tpu.memory_space<vmem>>, %arg9: memref<1x4xf32, #tpu.memory_space<vmem>>, %arg10: memref<16x4xf32, #tpu.memory_space<vmem>>) attributes {dimension_semantics = [#tpu.dimension_semantics<parallel>], iteration_bounds = array<i64: 1>, scalar_prefetch = 0 : i64, scratch_operands = 0 : i64, tpu.core_type = #tpu.core_type<tc>, window_params = [{transform_indices = @transform_0, window_bounds = array<i64: 16, 32>}, {pipeline_mode = #tpu.pipeline_mode<synchronous>, transform_indices = @transform_1, window_bounds = array<i64: 32, 512>}, {pipeline_mode = #tpu.pipeline_mode<synchronous>, transform_indices = @transform_2, window_bounds = array<i64: 1, 512>}, {pipeline_mode = #tpu.pipeline_mode<synchronous>, transform_indices = @transform_3, window_bounds = array<i64: 512, 512>}, {pipeline_mode = #tpu.pipeline_mode<synchronous>, transform_indices = @transform_4, window_bounds = array<i64: 1, 512>}, {pipeline_mode = #tpu.pipeline_mode<synchronous>, transform_indices = @transform_5, window_bounds = array<i64: 512, 512>}, {pipeline_mode = #tpu.pipeline_mode<synchronous>, transform_indices = @transform_6, window_bounds = array<i64: 1, 512>}, {pipeline_mode = #tpu.pipeline_mode<synchronous>, transform_indices = @transform_7, window_bounds = array<i64: 512, 4>}, {pipeline_mode = #tpu.pipeline_mode<synchronous>, transform_indices = @transform_8, window_bounds = array<i64: 1, 4>}, {transform_indices = @transform_9, window_bounds = array<i64: 16, 4>}]} {
    %c0 = arith.constant 0 : index
    %c0_0 = arith.constant 0 : index
    %0 = vector.load %arg1[%c0, %c0_0] : memref<16x32xbf16, #tpu.memory_space<vmem>>, vector<16x32xbf16>
    %c0_1 = arith.constant 0 : index
    %c0_2 = arith.constant 0 : index
    %1 = vector.load %arg2[%c0_1, %c0_2] : memref<32x512xbf16, #tpu.memory_space<vmem>>, vector<32x512xbf16>
    %cst = arith.constant dense<0.000000e+00> : vector<16x512xf32>
    %2 = tpu.matmul %0, %1, %cst {dimension_numbers = #tpu.dot_dimension_numbers<[1], [0], [0], [1], [0, 0, 1, 1], [], []>} : vector<16x32xbf16>, vector<32x512xbf16>, vector<16x512xf32> -> vector<16x512xf32>
    %c0_3 = arith.constant 0 : index
    %c0_4 = arith.constant 0 : index
    %3 = vector.load %arg3[%c0_3, %c0_4] : memref<1x512xf32, #tpu.memory_space<vmem>>, vector<1x512xf32>
    %4 = vector.broadcast %3 : vector<1x512xf32> to vector<16x512xf32>
    %5 = arith.addf %2, %4 : vector<16x512xf32>
    %cst_5 = arith.constant 0.000000e+00 : f32
    %6 = vector.broadcast %cst_5 : f32 to vector<16x512xf32>
    %7 = arith.maximumf %5, %6 : vector<16x512xf32>
    %8 = arith.truncf %7 : vector<16x512xf32> to vector<16x512xbf16>
    %c0_6 = arith.constant 0 : index
    %c0_7 = arith.constant 0 : index
    %9 = vector.load %arg4[%c0_6, %c0_7] : memref<512x512xbf16, #tpu.memory_space<vmem>>, vector<512x512xbf16>
    %cst_8 = arith.constant dense<0.000000e+00> : vector<16x512xf32>
    %10 = tpu.matmul %8, %9, %cst_8 {dimension_numbers = #tpu.dot_dimension_numbers<[1], [0], [0], [1], [0, 0, 1, 1], [], []>} : vector<16x512xbf16>, vector<512x512xbf16>, vector<16x512xf32> -> vector<16x512xf32>
    %c0_9 = arith.constant 0 : index
    %c0_10 = arith.constant 0 : index
    %11 = vector.load %arg5[%c0_9, %c0_10] : memref<1x512xf32, #tpu.memory_space<vmem>>, vector<1x512xf32>
    %12 = vector.broadcast %11 : vector<1x512xf32> to vector<16x512xf32>
    %13 = arith.addf %10, %12 : vector<16x512xf32>
    %cst_11 = arith.constant 0.000000e+00 : f32
    %14 = vector.broadcast %cst_11 : f32 to vector<16x512xf32>
    %15 = arith.maximumf %13, %14 : vector<16x512xf32>
    %16 = arith.truncf %15 : vector<16x512xf32> to vector<16x512xbf16>
    %c0_12 = arith.constant 0 : index
    %c0_13 = arith.constant 0 : index
    %17 = vector.load %arg6[%c0_12, %c0_13] : memref<512x512xbf16, #tpu.memory_space<vmem>>, vector<512x512xbf16>
    %cst_14 = arith.constant dense<0.000000e+00> : vector<16x512xf32>
    %18 = tpu.matmul %16, %17, %cst_14 {dimension_numbers = #tpu.dot_dimension_numbers<[1], [0], [0], [1], [0, 0, 1, 1], [], []>} : vector<16x512xbf16>, vector<512x512xbf16>, vector<16x512xf32> -> vector<16x512xf32>
    %c0_15 = arith.constant 0 : index
    %c0_16 = arith.constant 0 : index
    %19 = vector.load %arg7[%c0_15, %c0_16] : memref<1x512xf32, #tpu.memory_space<vmem>>, vector<1x512xf32>
    %20 = vector.broadcast %19 : vector<1x512xf32> to vector<16x512xf32>
    %21 = arith.addf %18, %20 : vector<16x512xf32>
    %cst_17 = arith.constant 0.000000e+00 : f32
    %22 = vector.broadcast %cst_17 : f32 to vector<16x512xf32>
    %23 = arith.maximumf %21, %22 : vector<16x512xf32>
    %24 = arith.truncf %23 : vector<16x512xf32> to vector<16x512xbf16>
    %c0_18 = arith.constant 0 : index
    %c0_19 = arith.constant 0 : index
    %25 = vector.load %arg8[%c0_18, %c0_19] : memref<512x4xbf16, #tpu.memory_space<vmem>>, vector<512x4xbf16>
    %cst_20 = arith.constant dense<0.000000e+00> : vector<16x4xf32>
    %26 = tpu.matmul %24, %25, %cst_20 {dimension_numbers = #tpu.dot_dimension_numbers<[1], [0], [0], [1], [0, 0, 1, 1], [], []>} : vector<16x512xbf16>, vector<512x4xbf16>, vector<16x4xf32> -> vector<16x4xf32>
    %c0_21 = arith.constant 0 : index
    %c0_22 = arith.constant 0 : index
    %27 = vector.load %arg9[%c0_21, %c0_22] : memref<1x4xf32, #tpu.memory_space<vmem>>, vector<1x4xf32>
    %28 = vector.broadcast %27 : vector<1x4xf32> to vector<16x4xf32>
    %29 = arith.addf %26, %28 : vector<16x4xf32>
    %30 = tpu.iota {dimensions = array<i32: 1>} : vector<16x4xi32>
    %c2_i32 = arith.constant 2 : i32
    %31 = vector.broadcast %c2_i32 : i32 to vector<16x4xi32>
    %32 = arith.cmpi slt, %30, %31 : vector<16x4xi32>
    %33 = math.tanh %29 : vector<16x4xf32>
    %cst_23 = arith.constant -2.000000e+01 : f32
    %cst_24 = arith.constant 2.000000e+00 : f32
    %34 = vector.broadcast %cst_23 : f32 to vector<16x4xf32>
    %35 = arith.maximumf %34, %29 : vector<16x4xf32>
    %36 = vector.broadcast %cst_24 : f32 to vector<16x4xf32>
    %37 = arith.minimumf %36, %35 : vector<16x4xf32>
    %38 = arith.select %32, %33, %37 : vector<16x4xi1>, vector<16x4xf32>
    %c0_25 = arith.constant 0 : index
    %c0_26 = arith.constant 0 : index
    %39 = vector.load %arg10[%c0_25, %c0_26] : memref<16x4xf32, #tpu.memory_space<vmem>>, vector<16x4xf32>
    tpu.vector_store %arg10[%c0_25, %c0_26], %38 {strides = array<i32>} : memref<16x4xf32, #tpu.memory_space<vmem>>, vector<16x4xf32>,
    return
  }
  func.func @transform_0(%arg0: i32) -> (i32, i32) {
    %c0_i32 = arith.constant 0 : i32
    %c0_i32_0 = arith.constant 0 : i32
    return %arg0, %c0_i32 : i32, i32
  }
  func.func @transform_1(%arg0: i32) -> (i32, i32) {
    %c0_i32 = arith.constant 0 : i32
    %c0_i32_0 = arith.constant 0 : i32
    %c0_i32_1 = arith.constant 0 : i32
    return %c0_i32, %c0_i32_0 : i32, i32
  }
  func.func @transform_2(%arg0: i32) -> (i32, i32) {
    %c0_i32 = arith.constant 0 : i32
    %c0_i32_0 = arith.constant 0 : i32
    %c0_i32_1 = arith.constant 0 : i32
    return %c0_i32, %c0_i32_0 : i32, i32
  }
  func.func @transform_3(%arg0: i32) -> (i32, i32) {
    %c0_i32 = arith.constant 0 : i32
    %c0_i32_0 = arith.constant 0 : i32
    %c0_i32_1 = arith.constant 0 : i32
    return %c0_i32, %c0_i32_0 : i32, i32
  }
  func.func @transform_4(%arg0: i32) -> (i32, i32) {
    %c0_i32 = arith.constant 0 : i32
    %c0_i32_0 = arith.constant 0 : i32
    %c0_i32_1 = arith.constant 0 : i32
    return %c0_i32, %c0_i32_0 : i32, i32
  }
  func.func @transform_5(%arg0: i32) -> (i32, i32) {
    %c0_i32 = arith.constant 0 : i32
    %c0_i32_0 = arith.constant 0 : i32
    %c0_i32_1 = arith.constant 0 : i32
    return %c0_i32, %c0_i32_0 : i32, i32
  }
  func.func @transform_6(%arg0: i32) -> (i32, i32) {
    %c0_i32 = arith.constant 0 : i32
    %c0_i32_0 = arith.constant 0 : i32
    %c0_i32_1 = arith.constant 0 : i32
    return %c0_i32, %c0_i32_0 : i32, i32
  }
  func.func @transform_7(%arg0: i32) -> (i32, i32) {
    %c0_i32 = arith.constant 0 : i32
    %c0_i32_0 = arith.constant 0 : i32
    %c0_i32_1 = arith.constant 0 : i32
    return %c0_i32, %c0_i32_0 : i32, i32
  }
  func.func @transform_8(%arg0: i32) -> (i32, i32) {
    %c0_i32 = arith.constant 0 : i32
    %c0_i32_0 = arith.constant 0 : i32
    %c0_i32_1 = arith.constant 0 : i32
    return %c0_i32, %c0_i32_0 : i32, i32
  }
  func.func @transform_9(%arg0: i32) -> (i32, i32) {
    %c0_i32 = arith.constant 0 : i32
    %c0_i32_0 = arith.constant 0 : i32
    return %arg0, %c0_i32 : i32, i32
  }
}

</mosaic_0001>

<llo_original>
// kernel: tpu_custom_call.1
$region0: #{tpu_custom_call.1}
  #allocation0 [shape = 'u32[]', space=smem, size = 0x4, offset = 0x4, fixed_abs, tag = 'smem constant byte address 0x4 - core index']
  #allocation1 [shape = 'u32[144,128]{1,0:T(1,128)}', space=vmem, size = 0x12000, scoped, tag = 'internal scratch']
  %s0 = inlined_call_operand.vmem [shape: bf16[16,32], index: 0, kind: input, shape index: {}]
  %s1 = inlined_call_operand.vmem [shape: bf16[32,512], index: 1, kind: input, shape index: {}]
  %s2 = inlined_call_operand.vmem [shape: f32[1,512], index: 2, kind: input, shape index: {}]
  %s3 = inlined_call_operand.hbm [shape: bf16[512,512], index: 3, kind: input, shape index: {}]
  %s4 = inlined_call_operand.vmem [shape: f32[1,512], index: 4, kind: input, shape index: {}]
  %s5 = inlined_call_operand.hbm [shape: bf16[512,512], index: 5, kind: input, shape index: {}]
  %s6 = inlined_call_operand.vmem [shape: f32[1,512], index: 6, kind: input, shape index: {}]
  %s7 = inlined_call_operand.vmem [shape: bf16[512,4], index: 7, kind: input, shape index: {}]
  %s8 = inlined_call_operand.vmem [shape: f32[1,4], index: 8, kind: input, shape index: {}]
  %s9 = inlined_call_operand.vmem [shape: f32[16,4], index: 9, kind: output, shape index: {}]
  %s10 = sld [smem:[#allocation0]]
  $region54: #{tpu_custom_call.1} parent=0
    _
  %s12 = ssub.s32 1, %s10
  %s13 = scalar_select 0, %s12, %s10
  $region1: #{tpu_custom_call.1} parent=0
    #allocation2 [shape = 'u8[524288]{0}', space=vmem, size = 0x80000, scoped, tag = 'input window, operand 3, single buffered']
    #allocation3 [shape = 's32[1]{0}', space=sflag, size = 0x4, scoped, tag = 'scoped memory for tpu_custom_call.1']
    #allocation4 [shape = 'u8[524288]{0}', space=vmem, size = 0x80000, scoped, tag = 'input window, operand 5, single buffered']
    #allocation5 [shape = 's32[1]{0}', space=sflag, size = 0x4, scoped, tag = 'scoped memory for tpu_custom_call.1']
    %14 = vsyncpa [#allocation3], 0
    %15 = vsyncpa [#allocation5], 0
    // Predicated region
    $region2: #{tpu_custom_call.1} parent=1 // pred_check
      _
    $region3: #{tpu_custom_call.1} parent=1 // pred_check_branch
      %17 = sbr.rel (0) target = $region5
    $region4: #{tpu_custom_call.1} parent=1 // pred_region
      _
    $region5: #{tpu_custom_call.1} parent=1 // pred_fallthru
      _
    // Predicated region
    $region6: #{tpu_custom_call.1} parent=1 // pred_check
      _
    $region7: #{tpu_custom_call.1} parent=1 // pred_check_branch
      %19 = sbr.rel (0) target = $region9
    $region8: #{tpu_custom_call.1} parent=1 // pred_region
      _
    $region9: #{tpu_custom_call.1} parent=1 // pred_fallthru
      _
    // Predicated region
    $region10: #{tpu_custom_call.1} parent=1 // pred_check
      _
    $region11: #{tpu_custom_call.1} parent=1 // pred_check_branch
      %21 = sbr.rel (0) target = $region13
    $region12: #{tpu_custom_call.1} parent=1 // pred_region
      _
    $region13: #{tpu_custom_call.1} parent=1 // pred_fallthru
      _
    // Predicated region
    $region14: #{tpu_custom_call.1} parent=1 // pred_check
      _
    $region15: #{tpu_custom_call.1} parent=1 // pred_check_branch
      %23 = sbr.rel (0) target = $region17
    $region16: #{tpu_custom_call.1} parent=1 // pred_region
      %s25 = ssub.s32 16384, 16384
      %26 = vsyncadd [#allocation3], %s25
      %s27 = sshll.u32 [#allocation2], 4
      %s28 = int_to_ptr.vmem [resolvable:$true] %s27
      %33 = dma.hbm_to_vmem [thread:$0]  %s3, 16384, %s28, [#allocation3], 256, 256, 16
    $region17: #{tpu_custom_call.1} parent=1 // pred_fallthru
      _
    // Predicated region
    $region18: #{tpu_custom_call.1} parent=1 // pred_check
      _
    $region19: #{tpu_custom_call.1} parent=1 // pred_check_branch
      %35 = sbr.rel (0) target = $region21
    $region20: #{tpu_custom_call.1} parent=1 // pred_region
      _
    $region21: #{tpu_custom_call.1} parent=1 // pred_fallthru
      _
    // Predicated region
    $region22: #{tpu_custom_call.1} parent=1 // pred_check
      _
    $region23: #{tpu_custom_call.1} parent=1 // pred_check_branch
      %37 = sbr.rel (0) target = $region25
    $region24: #{tpu_custom_call.1} parent=1 // pred_region
      %s39 = ssub.s32 16384, 16384
      %40 = vsyncadd [#allocation5], %s39
      %s41 = sshll.u32 [#allocation4], 4
      %s42 = int_to_ptr.vmem [resolvable:$true] %s41
      %47 = dma.hbm_to_vmem [thread:$0]  %s5, 16384, %s42, [#allocation5], 256, 256, 16
    $region25: #{tpu_custom_call.1} parent=1 // pred_fallthru
      _
    // Predicated region
    $region26: #{tpu_custom_call.1} parent=1 // pred_check
      _
    $region27: #{tpu_custom_call.1} parent=1 // pred_check_branch
      %49 = sbr.rel (0) target = $region29
    $region28: #{tpu_custom_call.1} parent=1 // pred_region
      _
    $region29: #{tpu_custom_call.1} parent=1 // pred_fallthru
      _
    // Predicated region
    $region30: #{tpu_custom_call.1} parent=1 // pred_check
      _
    $region31: #{tpu_custom_call.1} parent=1 // pred_check_branch
      %51 = sbr.rel (0) target = $region33
    $region32: #{tpu_custom_call.1} parent=1 // pred_region
      _
    $region33: #{tpu_custom_call.1} parent=1 // pred_fallthru
      _
    // Predicated region
    $region34: #{tpu_custom_call.1} parent=1 // pred_check
      _
    $region35: #{tpu_custom_call.1} parent=1 // pred_check_branch
      %53 = sbr.rel (0) target = $region37
    $region36: #{tpu_custom_call.1} parent=1 // pred_region
      _
    $region37: #{tpu_custom_call.1} parent=1 // pred_fallthru
      _
    // Predicated region
    $region38: #{tpu_custom_call.1} parent=1 // pred_check
      _
    $region39: #{tpu_custom_call.1} parent=1 // pred_check_branch
      %55 = sbr.rel (0) target = $region41
    $region40: #{tpu_custom_call.1} parent=1 // pred_region
      %56 = dma.done [#allocation3], 16384
    $region41: #{tpu_custom_call.1} parent=1 // pred_fallthru
      _
    // Predicated region
    $region42: #{tpu_custom_call.1} parent=1 // pred_check
      _
    $region43: #{tpu_custom_call.1} parent=1 // pred_check_branch
      %58 = sbr.rel (0) target = $region45
    $region44: #{tpu_custom_call.1} parent=1 // pred_region
      %59 = dma.done [#allocation5], 16384
    $region45: #{tpu_custom_call.1} parent=1 // pred_fallthru
      _
    %v61 = vld [vmem:[%s0] sm:$0xf]
    %v62 = vld [vmem:[%s0 + $0x4] sm:$0xf]
    %v63 = vld [vmem:[%s1] sm:$0xff]
    %v64 = vld [vmem:[%s1 + $0x8] sm:$0xff]
    %v65 = vld [vmem:[%s1 + $0x10] sm:$0xff]
    %v66 = vld [vmem:[%s1 + $0x18] sm:$0xff]
    %v67 = vld [vmem:[%s1 + $0x20] sm:$0xff]
    %v68 = vld [vmem:[%s1 + $0x28] sm:$0xff]
    %v69 = vld [vmem:[%s1 + $0x30] sm:$0xff]
    %v70 = vld [vmem:[%s1 + $0x38] sm:$0xff]
    %v71 = vld [vmem:[%s2] sm:$0xf]
    %v73 = vlaneseq
    %v74 = vshrl.u32 %v73, 7
    %v75 = vsub.s32 0, %v74
    %v76 = vrot.slane %v71, %v75
    %v77 = vlaneseq
    %v78 = vshrl.u32 %v77, 7
    %v79 = vsub.s32 1, %v78
    %v80 = vrot.slane %v71, %v79
    %v81 = vlaneseq
    %v82 = vshrl.u32 %v81, 7
    %v83 = vsub.s32 2, %v82
    %v84 = vrot.slane %v71, %v83
    %v85 = vlaneseq
    %v86 = vshrl.u32 %v85, 7
    %v87 = vsub.s32 3, %v86
    %v88 = vrot.slane %v71, %v87
    %v95 = vunpack.c.l.b16 %v61
    %v96 = vunpack.c.l.b16 %v62
    %v97 = vpack.c.b16 %v96, %v95
    %v106 = vunpack.c.l.b16 %v63
    %v107 = vunpack.c.h.b16 %v63
    %v108 = vunpack.c.l.b16 %v64
    %v109 = vunpack.c.h.b16 %v64
    %v110 = vunpack.c.l.b16 %v65
    %v111 = vunpack.c.h.b16 %v65
    %v112 = vunpack.c.l.b16 %v66
    %v113 = vunpack.c.h.b16 %v66
    %v114 = vunpack.c.l.b16 %v67
    %v115 = vunpack.c.h.b16 %v67
    %v116 = vunpack.c.l.b16 %v68
    %v117 = vunpack.c.h.b16 %v68
    %v118 = vunpack.c.l.b16 %v69
    %v119 = vunpack.c.h.b16 %v69
    %v120 = vunpack.c.l.b16 %v70
    %v121 = vunpack.c.h.b16 %v70
    %v122 = vpack.c.b16 %v110, %v106
    %v123 = vpack.c.b16 %v111, %v107
    %v124 = vpack.c.b16 %v112, %v108
    %v125 = vpack.c.b16 %v113, %v109
    %v126 = vpack.c.b16 %v118, %v114
    %v127 = vpack.c.b16 %v119, %v115
    %v128 = vpack.c.b16 %v120, %v116
    %v129 = vpack.c.b16 %v121, %v117
    %vm138 = vcmask 261120
    %v140 = vsel %vm138, %v97, 0
    %142 = vmatprep.subr.bf16.mxu0 0
    %143 = vmatpush1.bf16.msra.mxu0 0
    %144 = vmatprep.subr.bf16.mxu0 0
    %145 = vmatpush1.bf16.msra.mxu0 0
    %146 = vmatprep.subr.bf16.mxu0 0
    %147 = vmatpush1.bf16.msra.mxu0 0
    %148 = vmatprep.subr.bf16.mxu0 0
    %149 = vmatpush1.bf16.msra.mxu0 0
    %150 = vmatprep.subr.bf16.mxu0 0
    %151 = vmatpush1.bf16.msra.mxu0 0
    %152 = vmatprep.subr.bf16.mxu0 0
    %153 = vmatpush1.bf16.msra.mxu0 0
    %154 = vmatprep.subr.bf16.mxu0 %v127
    %155 = vmatpush1.bf16.msra.mxu0 %v126
    %156 = vmatprep.subr.bf16.mxu0 %v123
    %157 = vmatpush1.bf16.msra.mxu0 %v122
    %158 = vmatprep.subr.bf16.mxu0 0
    %159 = vmatpush2.bf16.msra.mxu0 0
    %160 = vmatprep.subr.bf16.mxu0 0
    %161 = vmatpush2.bf16.msra.mxu0 0
    %162 = vmatprep.subr.bf16.mxu0 0
    %163 = vmatpush2.bf16.msra.mxu0 0
    %164 = vmatprep.subr.bf16.mxu0 0
    %165 = vmatpush2.bf16.msra.mxu0 0
    %166 = vmatprep.subr.bf16.mxu0 0
    %167 = vmatpush2.bf16.msra.mxu0 0
    %168 = vmatprep.subr.bf16.mxu0 0
    %169 = vmatpush2.bf16.msra.mxu0 0
    %170 = vmatprep.subr.bf16.mxu0 0
    %171 = vmatpush2.bf16.msra.mxu0 0
    %172 = vmatprep.subr.bf16.mxu0 0
    %173 = vmatpush2.bf16.msra.mxu0 0
    %174 = vmatprep.mubr.bf16.mxu0 0
    %175 = vmatmul.mubr.bf16.gmra.mxu0 %v140
    %v176 = vpop.f32.mrf.mxu0
    %v177 = vadd.f32 %v76, %v176
    %v178 = vpop.f32.mrf.mxu0
    %v179 = vadd.f32 %v80, %v178
    %v180 = vpop.f32.mrf.mxu0
    %v181 = vadd.f32 %v76, %v180
    %v182 = vpop.f32.mrf.mxu0
    %v183 = vadd.f32 %v80, %v182
    %184 = vdwg.mxu0
    %185 = vmatprep.subr.bf16.mxu0 0
    %186 = vmatpush1.bf16.msra.mxu0 0
    %187 = vmatprep.subr.bf16.mxu0 0
    %188 = vmatpush1.bf16.msra.mxu0 0
    %189 = vmatprep.subr.bf16.mxu0 0
    %190 = vmatpush1.bf16.msra.mxu0 0
    %191 = vmatprep.subr.bf16.mxu0 0
    %192 = vmatpush1.bf16.msra.mxu0 0
    %193 = vmatprep.subr.bf16.mxu0 0
    %194 = vmatpush1.bf16.msra.mxu0 0
    %195 = vmatprep.subr.bf16.mxu0 0
    %196 = vmatpush1.bf16.msra.mxu0 0
    %197 = vmatprep.subr.bf16.mxu0 %v129
    %198 = vmatpush1.bf16.msra.mxu0 %v128
    %199 = vmatprep.subr.bf16.mxu0 %v125
    %200 = vmatpush1.bf16.msra.mxu0 %v124
    %201 = vmatprep.subr.bf16.mxu0 0
    %202 = vmatpush2.bf16.msra.mxu0 0
    %203 = vmatprep.subr.bf16.mxu0 0
    %204 = vmatpush2.bf16.msra.mxu0 0
    %205 = vmatprep.subr.bf16.mxu0 0
    %206 = vmatpush2.bf16.msra.mxu0 0
    %207 = vmatprep.subr.bf16.mxu0 0
    %208 = vmatpush2.bf16.msra.mxu0 0
    %209 = vmatprep.subr.bf16.mxu0 0
    %210 = vmatpush2.bf16.msra.mxu0 0
    %211 = vmatprep.subr.bf16.mxu0 0
    %212 = vmatpush2.bf16.msra.mxu0 0
    %213 = vmatprep.subr.bf16.mxu0 0
    %214 = vmatpush2.bf16.msra.mxu0 0
    %215 = vmatprep.subr.bf16.mxu0 0
    %216 = vmatpush2.bf16.msra.mxu0 0
    %217 = vmatprep.mubr.bf16.mxu0 0
    %218 = vmatmul.mubr.bf16.gmra.mxu0 %v140
    %v219 = vpop.f32.mrf.mxu0
    %v220 = vadd.f32 %v84, %v219
    %v221 = vpop.f32.mrf.mxu0
    %v222 = vadd.f32 %v88, %v221
    %v223 = vpop.f32.mrf.mxu0
    %v224 = vadd.f32 %v84, %v223
    %v225 = vpop.f32.mrf.mxu0
    %v226 = vadd.f32 %v88, %v225
    %227 = vdwg.mxu0
    %v228 = vmax.f32 %v177, 0.0
    %v229 = vmax.f32 %v179, 0.0
    %v230 = vmax.f32 %v220, 0.0
    %v231 = vmax.f32 %v222, 0.0
    %v232 = vmax.f32 %v181, 0.0
    %v233 = vmax.f32 %v183, 0.0
    %v234 = vmax.f32 %v224, 0.0
    %v235 = vmax.f32 %v226, 0.0
    %v236 = vpack.c.bf16 %v232, %v228
    %v237 = vpack.c.bf16 %v233, %v229
    %v238 = vpack.c.bf16 %v234, %v230
    %v239 = vpack.c.bf16 %v235, %v231
    %v240 = vld [vmem:[#allocation2] sm:$0xff]
    %v241 = vld [vmem:[#allocation2 + $0x8] sm:$0xff]
    %v242 = vld [vmem:[#allocation2 + $0x10] sm:$0xff]
    %v243 = vld [vmem:[#allocation2 + $0x18] sm:$0xff]
    %v244 = vld [vmem:[#allocation2 + $0x20] sm:$0xff]
    %v245 = vld [vmem:[#allocation2 + $0x28] sm:$0xff]
    %v246 = vld [vmem:[#allocation2 + $0x30] sm:$0xff]
    %v247 = vld [vmem:[#allocation2 + $0x38] sm:$0xff]
    %v248 = vld [vmem:[#allocation2 + $0x40] sm:$0xff]
    %v249 = vld [vmem:[#allocation2 + $0x48] sm:$0xff]
    %v250 = vld [vmem:[#allocation2 + $0x50] sm:$0xff]
    %v251 = vld [vmem:[#allocation2 + $0x58] sm:$0xff]
    %v252 = vld [vmem:[#allocation2 + $0x60] sm:$0xff]
    %v253 = vld [vmem:[#allocation2 + $0x68] sm:$0xff]
    %v254 = vld [vmem:[#allocation2 + $0x70] sm:$0xff]
    %v255 = vld [vmem:[#allocation2 + $0x78] sm:$0xff]
    %v256 = vld [vmem:[#allocation2 + $0x80] sm:$0xff]
    %v257 = vld [vmem:[#allocation2 + $0x88] sm:$0xff]
    %v258 = vld [vmem:[#allocation2 + $0x90] sm:$0xff]
    %v259 = vld [vmem:[#allocation2 + $0x98] sm:$0xff]
    %v260 = vld [vmem:[#allocation2 + $0xa0] sm:$0xff]
    %v261 = vld [vmem:[#allocation2 + $0xa8] sm:$0xff]
    %v262 = vld [vmem:[#allocation2 + $0xb0] sm:$0xff]
    %v263 = vld [vmem:[#allocation2 + $0xb8] sm:$0xff]
    %v264 = vld [vmem:[#allocation2 + $0xc0] sm:$0xff]
    %v265 = vld [vmem:[#allocation2 + $0xc8] sm:$0xff]
    %v266 = vld [vmem:[#allocation2 + $0xd0] sm:$0xff]
    %v267 = vld [vmem:[#allocation2 + $0xd8] sm:$0xff]
    %v268 = vld [vmem:[#allocation2 + $0xe0] sm:$0xff]
    %v269 = vld [vmem:[#allocation2 + $0xe8] sm:$0xff]
    %v270 = vld [vmem:[#allocation2 + $0xf0] sm:$0xff]
    %v271 = vld [vmem:[#allocation2 + $0xf8] sm:$0xff]
    %v272 = vld [vmem:[#allocation2 + $0x100] sm:$0xff]
    %v273 = vld [vmem:[#allocation2 + $0x108] sm:$0xff]
    %v274 = vld [vmem:[#allocation2 + $0x110] sm:$0xff]
    %v275 = vld [vmem:[#allocation2 + $0x118] sm:$0xff]
    %v276 = vld [vmem:[#allocation2 + $0x120] sm:$0xff]
    %v277 = vld [vmem:[#allocation2 + $0x128] sm:$0xff]
    %v278 = vld [vmem:[#allocation2 + $0x130] sm:$0xff]
    %v279 = vld [vmem:[#allocation2 + $0x138] sm:$0xff]
    %v280 = vld [vmem:[#allocation2 + $0x140] sm:$0xff]
    %v281 = vld [vmem:[#allocation2 + $0x148] sm:$0xff]
    %v282 = vld [vmem:[#allocation2 + $0x150] sm:$0xff]
    %v283 = vld [vmem:[#allocation2 + $0x158] sm:$0xff]
    %v284 = vld [vmem:[#allocation2 + $0x160] sm:$0xff]
    %v285 = vld [vmem:[#allocation2 + $0x168] sm:$0xff]
    %v286 = vld [vmem:[#allocation2 + $0x170] sm:$0xff]
    %v287 = vld [vmem:[#allocation2 + $0x178] sm:$0xff]
    %v288 = vld [vmem:[#allocation2 + $0x180] sm:$0xff]
    %v289 = vld [vmem:[#allocation2 + $0x188] sm:$0xff]
    %v290 = vld [vmem:[#allocation2 + $0x190] sm:$0xff]
    %v291 = vld [vmem:[#allocation2 + $0x198] sm:$0xff]
    %v292 = vld [vmem:[#allocation2 + $0x1a0] sm:$0xff]
    %v293 = vld [vmem:[#allocation2 + $0x1a8] sm:$0xff]
    %v294 = vld [vmem:[#allocation2 + $0x1b0] sm:$0xff]
    %v295 = vld [vmem:[#allocation2 + $0x1b8] sm:$0xff]
    %v296 = vld [vmem:[#allocation2 + $0x1c0] sm:$0xff]
    %v297 = vld [vmem:[#allocation2 + $0x1c8] sm:$0xff]
    %v298 = vld [vmem:[#allocation2 + $0x1d0] sm:$0xff]
    %v299 = vld [vmem:[#allocation2 + $0x1d8] sm:$0xff]
    %v300 = vld [vmem:[#allocation2 + $0x1e0] sm:$0xff]
    %v301 = vld [vmem:[#allocation2 + $0x1e8] sm:$0xff]
    %v302 = vld [vmem:[#allocation2 + $0x1f0] sm:$0xff]
    %v303 = vld [vmem:[#allocation2 + $0x1f8] sm:$0xff]
    %v304 = vld [vmem:[#allocation2 + $0x200] sm:$0xff]
    %v305 = vld [vmem:[#allocation2 + $0x208] sm:$0xff]
    %v306 = vld [vmem:[#allocation2 + $0x210] sm:$0xff]
    %v307 = vld [vmem:[#allocation2 + $0x218] sm:$0xff]
    %v308 = vld [vmem:[#allocation2 + $0x220] sm:$0xff]
    %v309 = vld [vmem:[#allocation2 + $0x228] sm:$0xff]
    %v310 = vld [vmem:[#allocation2 + $0x230] sm:$0xff]
    %v311 = vld [vmem:[#allocation2 + $0x238] sm:$0xff]
    %v312 = vld [vmem:[#allocation2 + $0x240] sm:$0xff]
    %v313 = vld [vmem:[#allocation2 + $0x248] sm:$0xff]
    %v314 = vld [vmem:[#allocation2 + $0x250] sm:$0xff]
    %v315 = vld [vmem:[#allocation2 + $0x258] sm:$0xff]
    %v316 = vld [vmem:[#allocation2 + $0x260] sm:$0xff]
    %v317 = vld [vmem:[#allocation2 + $0x268] sm:$0xff]
    %v318 = vld [vmem:[#allocation2 + $0x270] sm:$0xff]
    %v319 = vld [vmem:[#allocation2 + $0x278] sm:$0xff]
    %v320 = vld [vmem:[#allocation2 + $0x280] sm:$0xff]
    %v321 = vld [vmem:[#allocation2 + $0x288] sm:$0xff]
    %v322 = vld [vmem:[#allocation2 + $0x290] sm:$0xff]
    %v323 = vld [vmem:[#allocation2 + $0x298] sm:$0xff]
    %v324 = vld [vmem:[#allocation2 + $0x2a0] sm:$0xff]
    %v325 = vld [vmem:[#allocation2 + $0x2a8] sm:$0xff]
    %v326 = vld [vmem:[#allocation2 + $0x2b0] sm:$0xff]
    %v327 = vld [vmem:[#allocation2 + $0x2b8] sm:$0xff]
    %v328 = vld [vmem:[#allocation2 + $0x2c0] sm:$0xff]
    %v329 = vld [vmem:[#allocation2 + $0x2c8] sm:$0xff]
    %v330 = vld [vmem:[#allocation2 + $0x2d0] sm:$0xff]
    %v331 = vld [vmem:[#allocation2 + $0x2d8] sm:$0xff]
    %v332 = vld [vmem:[#allocation2 + $0x2e0] sm:$0xff]
    %v333 = vld [vmem:[#allocation2 + $0x2e8] sm:$0xff]
    %v334 = vld [vmem:[#allocation2 + $0x2f0] sm:$0xff]
    %v335 = vld [vmem:[#allocation2 + $0x2f8] sm:$0xff]
    %v336 = vld [vmem:[#allocation2 + $0x300] sm:$0xff]
    %v337 = vld [vmem:[#allocation2 + $0x308] sm:$0xff]
    %v338 = vld [vmem:[#allocation2 + $0x310] sm:$0xff]
    %v339 = vld [vmem:[#allocation2 + $0x318] sm:$0xff]
    %v340 = vld [vmem:[#allocation2 + $0x320] sm:$0xff]
    %v341 = vld [vmem:[#allocation2 + $0x328] sm:$0xff]
    %v342 = vld [vmem:[#allocation2 + $0x330] sm:$0xff]
    %v343 = vld [vmem:[#allocation2 + $0x338] sm:$0xff]
    %v344 = vld [vmem:[#allocation2 + $0x340] sm:$0xff]
    %v345 = vld [vmem:[#allocation2 + $0x348] sm:$0xff]
    %v346 = vld [vmem:[#allocation2 + $0x350] sm:$0xff]
    %v347 = vld [vmem:[#allocation2 + $0x358] sm:$0xff]
    %v348 = vld [vmem:[#allocation2 + $0x360] sm:$0xff]
    %v349 = vld [vmem:[#allocation2 + $0x368] sm:$0xff]
    %v350 = vld [vmem:[#allocation2 + $0x370] sm:$0xff]
    %v351 = vld [vmem:[#allocation2 + $0x378] sm:$0xff]
    %v352 = vld [vmem:[#allocation2 + $0x380] sm:$0xff]
    %v353 = vld [vmem:[#allocation2 + $0x388] sm:$0xff]
    %v354 = vld [vmem:[#allocation2 + $0x390] sm:$0xff]
    %v355 = vld [vmem:[#allocation2 + $0x398] sm:$0xff]
    %v356 = vld [vmem:[#allocation2 + $0x3a0] sm:$0xff]
    %v357 = vld [vmem:[#allocation2 + $0x3a8] sm:$0xff]
    %v358 = vld [vmem:[#allocation2 + $0x3b0] sm:$0xff]
    %v359 = vld [vmem:[#allocation2 + $0x3b8] sm:$0xff]
    %v360 = vld [vmem:[#allocation2 + $0x3c0] sm:$0xff]
    %v361 = vld [vmem:[#allocation2 + $0x3c8] sm:$0xff]
    %v362 = vld [vmem:[#allocation2 + $0x3d0] sm:$0xff]
    %v363 = vld [vmem:[#allocation2 + $0x3d8] sm:$0xff]
    %v364 = vld [vmem:[#allocation2 + $0x3e0] sm:$0xff]
    %v365 = vld [vmem:[#allocation2 + $0x3e8] sm:$0xff]
    %v366 = vld [vmem:[#allocation2 + $0x3f0] sm:$0xff]
    %v367 = vld [vmem:[#allocation2 + $0x3f8] sm:$0xff]
    %v368 = vld [vmem:[%s4] sm:$0xf]
    %v370 = vlaneseq
    %v371 = vshrl.u32 %v370, 7
    %v372 = vsub.s32 0, %v371
    %v373 = vrot.slane %v368, %v372
    %v374 = vlaneseq
    %v375 = vshrl.u32 %v374, 7
    %v376 = vsub.s32 1, %v375
    %v377 = vrot.slane %v368, %v376
    %v378 = vlaneseq
    %v379 = vshrl.u32 %v378, 7
    %v380 = vsub.s32 2, %v379
    %v381 = vrot.slane %v368, %v380
    %v382 = vlaneseq
    %v383 = vshrl.u32 %v382, 7
    %v384 = vsub.s32 3, %v383
    %v385 = vrot.slane %v368, %v384
    %v518 = vunpack.c.l.b16 %v240
    %v519 = vunpack.c.h.b16 %v240
    %v520 = vunpack.c.l.b16 %v241
    %v521 = vunpack.c.h.b16 %v241
    %v522 = vunpack.c.l.b16 %v242
    %v523 = vunpack.c.h.b16 %v242
    %v524 = vunpack.c.l.b16 %v243
    %v525 = vunpack.c.h.b16 %v243
    %v526 = vunpack.c.l.b16 %v244
    %v527 = vunpack.c.h.b16 %v244
    %v528 = vunpack.c.l.b16 %v245
    %v529 = vunpack.c.h.b16 %v245
    %v530 = vunpack.c.l.b16 %v246
    %v531 = vunpack.c.h.b16 %v246
    %v532 = vunpack.c.l.b16 %v247
    %v533 = vunpack.c.h.b16 %v247
    %v534 = vunpack.c.l.b16 %v248
    %v535 = vunpack.c.h.b16 %v248
    %v536 = vunpack.c.l.b16 %v249
    %v537 = vunpack.c.h.b16 %v249
    %v538 = vunpack.c.l.b16 %v250
    %v539 = vunpack.c.h.b16 %v250
    %v540 = vunpack.c.l.b16 %v251
    %v541 = vunpack.c.h.b16 %v251
    %v542 = vunpack.c.l.b16 %v252
    %v543 = vunpack.c.h.b16 %v252
    %v544 = vunpack.c.l.b16 %v253
    %v545 = vunpack.c.h.b16 %v253
    %v546 = vunpack.c.l.b16 %v254
    %v547 = vunpack.c.h.b16 %v254
    %v548 = vunpack.c.l.b16 %v255
    %v549 = vunpack.c.h.b16 %v255
    %v550 = vunpack.c.l.b16 %v256
    %v551 = vunpack.c.h.b16 %v256
    %v552 = vunpack.c.l.b16 %v257
    %v553 = vunpack.c.h.b16 %v257
    %v554 = vunpack.c.l.b16 %v258
    %v555 = vunpack.c.h.b16 %v258
    %v556 = vunpack.c.l.b16 %v259
    %v557 = vunpack.c.h.b16 %v259
    %v558 = vunpack.c.l.b16 %v260
    %v559 = vunpack.c.h.b16 %v260
    %v560 = vunpack.c.l.b16 %v261
    %v561 = vunpack.c.h.b16 %v261
    %v562 = vunpack.c.l.b16 %v262
    %v563 = vunpack.c.h.b16 %v262
    %v564 = vunpack.c.l.b16 %v263
    %v565 = vunpack.c.h.b16 %v263
    %v566 = vunpack.c.l.b16 %v264
    %v567 = vunpack.c.h.b16 %v264
    %v568 = vunpack.c.l.b16 %v265
    %v569 = vunpack.c.h.b16 %v265
    %v570 = vunpack.c.l.b16 %v266
    %v571 = vunpack.c.h.b16 %v266
    %v572 = vunpack.c.l.b16 %v267
    %v573 = vunpack.c.h.b16 %v267
    %v574 = vunpack.c.l.b16 %v268
    %v575 = vunpack.c.h.b16 %v268
    %v576 = vunpack.c.l.b16 %v269
    %v577 = vunpack.c.h.b16 %v269
    %v578 = vunpack.c.l.b16 %v270
    %v579 = vunpack.c.h.b16 %v270
    %v580 = vunpack.c.l.b16 %v271
    %v581 = vunpack.c.h.b16 %v271
    %v582 = vunpack.c.l.b16 %v272
    %v583 = vunpack.c.h.b16 %v272
    %v584 = vunpack.c.l.b16 %v273
    %v585 = vunpack.c.h.b16 %v273
    %v586 = vunpack.c.l.b16 %v274
    %v587 = vunpack.c.h.b16 %v274
    %v588 = vunpack.c.l.b16 %v275
    %v589 = vunpack.c.h.b16 %v275
    %v590 = vunpack.c.l.b16 %v276
    %v591 = vunpack.c.h.b16 %v276
    %v592 = vunpack.c.l.b16 %v277
    %v593 = vunpack.c.h.b16 %v277
    %v594 = vunpack.c.l.b16 %v278
    %v595 = vunpack.c.h.b16 %v278
    %v596 = vunpack.c.l.b16 %v279
    %v597 = vunpack.c.h.b16 %v279
    %v598 = vunpack.c.l.b16 %v280
    %v599 = vunpack.c.h.b16 %v280
    %v600 = vunpack.c.l.b16 %v281
    %v601 = vunpack.c.h.b16 %v281
    %v602 = vunpack.c.l.b16 %v282
    %v603 = vunpack.c.h.b16 %v282
    %v604 = vunpack.c.l.b16 %v283
    %v605 = vunpack.c.h.b16 %v283
    %v606 = vunpack.c.l.b16 %v284
    %v607 = vunpack.c.h.b16 %v284
    %v608 = vunpack.c.l.b16 %v285
    %v609 = vunpack.c.h.b16 %v285
    %v610 = vunpack.c.l.b16 %v286
    %v611 = vunpack.c.h.b16 %v286
    %v612 = vunpack.c.l.b16 %v287
    %v613 = vunpack.c.h.b16 %v287
    %v614 = vunpack.c.l.b16 %v288
    %v615 = vunpack.c.h.b16 %v288
    %v616 = vunpack.c.l.b16 %v289
    %v617 = vunpack.c.h.b16 %v289
    %v618 = vunpack.c.l.b16 %v290
    %v619 = vunpack.c.h.b16 %v290
    %v620 = vunpack.c.l.b16 %v291
    %v621 = vunpack.c.h.b16 %v291
    %v622 = vunpack.c.l.b16 %v292
    %v623 = vunpack.c.h.b16 %v292
    %v624 = vunpack.c.l.b16 %v293
    %v625 = vunpack.c.h.b16 %v293
    %v626 = vunpack.c.l.b16 %v294
    %v627 = vunpack.c.h.b16 %v294
    %v628 = vunpack.c.l.b16 %v295
    %v629 = vunpack.c.h.b16 %v295
    %v630 = vunpack.c.l.b16 %v296
    %v631 = vunpack.c.h.b16 %v296
    %v632 = vunpack.c.l.b16 %v297
    %v633 = vunpack.c.h.b16 %v297
    %v634 = vunpack.c.l.b16 %v298
    %v635 = vunpack.c.h.b16 %v298
    %v636 = vunpack.c.l.b16 %v299
    %v637 = vunpack.c.h.b16 %v299
    %v638 = vunpack.c.l.b16 %v300
    %v639 = vunpack.c.h.b16 %v300
    %v640 = vunpack.c.l.b16 %v301
    %v641 = vunpack.c.h.b16 %v301
    %v642 = vunpack.c.l.b16 %v302
    %v643 = vunpack.c.h.b16 %v302
    %v644 = vunpack.c.l.b16 %v303
    %v645 = vunpack.c.h.b16 %v303
    %v646 = vunpack.c.l.b16 %v304
    %v647 = vunpack.c.h.b16 %v304
    %v648 = vunpack.c.l.b16 %v305
    %v649 = vunpack.c.h.b16 %v305
    %v650 = vunpack.c.l.b16 %v306
    %v651 = vunpack.c.h.b16 %v306
    %v652 = vunpack.c.l.b16 %v307
    %v653 = vunpack.c.h.b16 %v307
    %v654 = vunpack.c.l.b16 %v308
    %v655 = vunpack.c.h.b16 %v308
    %v656 = vunpack.c.l.b16 %v309
    %v657 = vunpack.c.h.b16 %v309
    %v658 = vunpack.c.l.b16 %v310
    %v659 = vunpack.c.h.b16 %v310
    %v660 = vunpack.c.l.b16 %v311
    %v661 = vunpack.c.h.b16 %v311
    %v662 = vunpack.c.l.b16 %v312
    %v663 = vunpack.c.h.b16 %v312
    %v664 = vunpack.c.l.b16 %v313
    %v665 = vunpack.c.h.b16 %v313
    %v666 = vunpack.c.l.b16 %v314
    %v667 = vunpack.c.h.b16 %v314
    %v668 = vunpack.c.l.b16 %v315
    %v669 = vunpack.c.h.b16 %v315
    %v670 = vunpack.c.l.b16 %v316
    %v671 = vunpack.c.h.b16 %v316
    %v672 = vunpack.c.l.b16 %v317
    %v673 = vunpack.c.h.b16 %v317
    %v674 = vunpack.c.l.b16 %v318
    %v675 = vunpack.c.h.b16 %v318
    %v676 = vunpack.c.l.b16 %v319
    %v677 = vunpack.c.h.b16 %v319
    %v678 = vunpack.c.l.b16 %v320
    %v679 = vunpack.c.h.b16 %v320
    %v680 = vunpack.c.l.b16 %v321
    %v681 = vunpack.c.h.b16 %v321
    %v682 = vunpack.c.l.b16 %v322
    %v683 = vunpack.c.h.b16 %v322
    %v684 = vunpack.c.l.b16 %v323
    %v685 = vunpack.c.h.b16 %v323
    %v686 = vunpack.c.l.b16 %v324
    %v687 = vunpack.c.h.b16 %v324
    %v688 = vunpack.c.l.b16 %v325
    %v689 = vunpack.c.h.b16 %v325
    %v690 = vunpack.c.l.b16 %v326
    %v691 = vunpack.c.h.b16 %v326
    %v692 = vunpack.c.l.b16 %v327
    %v693 = vunpack.c.h.b16 %v327
    %v694 = vunpack.c.l.b16 %v328
    %v695 = vunpack.c.h.b16 %v328
    %v696 = vunpack.c.l.b16 %v329
    %v697 = vunpack.c.h.b16 %v329
    %v698 = vunpack.c.l.b16 %v330
    %v699 = vunpack.c.h.b16 %v330
    %v700 = vunpack.c.l.b16 %v331
    %v701 = vunpack.c.h.b16 %v331
    %v702 = vunpack.c.l.b16 %v332
    %v703 = vunpack.c.h.b16 %v332
    %v704 = vunpack.c.l.b16 %v333
    %v705 = vunpack.c.h.b16 %v333
    %v706 = vunpack.c.l.b16 %v334
    %v707 = vunpack.c.h.b16 %v334
    %v708 = vunpack.c.l.b16 %v335
    %v709 = vunpack.c.h.b16 %v335
    %v710 = vunpack.c.l.b16 %v336
    %v711 = vunpack.c.h.b16 %v336
    %v712 = vunpack.c.l.b16 %v337
    %v713 = vunpack.c.h.b16 %v337
    %v714 = vunpack.c.l.b16 %v338
    %v715 = vunpack.c.h.b16 %v338
    %v716 = vunpack.c.l.b16 %v339
    %v717 = vunpack.c.h.b16 %v339
    %v718 = vunpack.c.l.b16 %v340
    %v719 = vunpack.c.h.b16 %v340
    %v720 = vunpack.c.l.b16 %v341
    %v721 = vunpack.c.h.b16 %v341
    %v722 = vunpack.c.l.b16 %v342
    %v723 = vunpack.c.h.b16 %v342
    %v724 = vunpack.c.l.b16 %v343
    %v725 = vunpack.c.h.b16 %v343
    %v726 = vunpack.c.l.b16 %v344
    %v727 = vunpack.c.h.b16 %v344
    %v728 = vunpack.c.l.b16 %v345
    %v729 = vunpack.c.h.b16 %v345
    %v730 = vunpack.c.l.b16 %v346
    %v731 = vunpack.c.h.b16 %v346
    %v732 = vunpack.c.l.b16 %v347
    %v733 = vunpack.c.h.b16 %v347
    %v734 = vunpack.c.l.b16 %v348
    %v735 = vunpack.c.h.b16 %v348
    %v736 = vunpack.c.l.b16 %v349
    %v737 = vunpack.c.h.b16 %v349
    %v738 = vunpack.c.l.b16 %v350
    %v739 = vunpack.c.h.b16 %v350
    %v740 = vunpack.c.l.b16 %v351
    %v741 = vunpack.c.h.b16 %v351
    %v742 = vunpack.c.l.b16 %v352
    %v743 = vunpack.c.h.b16 %v352
    %v744 = vunpack.c.l.b16 %v353
    %v745 = vunpack.c.h.b16 %v353
    %v746 = vunpack.c.l.b16 %v354
    %v747 = vunpack.c.h.b16 %v354
    %v748 = vunpack.c.l.b16 %v355
    %v749 = vunpack.c.h.b16 %v355
    %v750 = vunpack.c.l.b16 %v356
    %v751 = vunpack.c.h.b16 %v356
    %v752 = vunpack.c.l.b16 %v357
    %v753 = vunpack.c.h.b16 %v357
    %v754 = vunpack.c.l.b16 %v358
    %v755 = vunpack.c.h.b16 %v358
    %v756 = vunpack.c.l.b16 %v359
    %v757 = vunpack.c.h.b16 %v359
    %v758 = vunpack.c.l.b16 %v360
    %v759 = vunpack.c.h.b16 %v360
    %v760 = vunpack.c.l.b16 %v361
    %v761 = vunpack.c.h.b16 %v361
    %v762 = vunpack.c.l.b16 %v362
    %v763 = vunpack.c.h.b16 %v362
    %v764 = vunpack.c.l.b16 %v363
    %v765 = vunpack.c.h.b16 %v363
    %v766 = vunpack.c.l.b16 %v364
    %v767 = vunpack.c.h.b16 %v364
    %v768 = vunpack.c.l.b16 %v365
    %v769 = vunpack.c.h.b16 %v365
    %v770 = vunpack.c.l.b16 %v366
    %v771 = vunpack.c.h.b16 %v366
    %v772 = vunpack.c.l.b16 %v367
    %v773 = vunpack.c.h.b16 %v367
    %v774 = vpack.c.b16 %v522, %v518
    %v775 = vpack.c.b16 %v523, %v519
    %v776 = vpack.c.b16 %v524, %v520
    %v777 = vpack.c.b16 %v525, %v521
    %v778 = vpack.c.b16 %v530, %v526
    %v779 = vpack.c.b16 %v531, %v527
    %v780 = vpack.c.b16 %v532, %v528
    %v781 = vpack.c.b16 %v533, %v529
    %v782 = vpack.c.b16 %v538, %v534
    %v783 = vpack.c.b16 %v539, %v535
    %v784 = vpack.c.b16 %v540, %v536
    %v785 = vpack.c.b16 %v541, %v537
    %v786 = vpack.c.b16 %v546, %v542
    %v787 = vpack.c.b16 %v547, %v543
    %v788 = vpack.c.b16 %v548, %v544
    %v789 = vpack.c.b16 %v549, %v545
    %v790 = vpack.c.b16 %v554, %v550
    %v791 = vpack.c.b16 %v555, %v551
    %v792 = vpack.c.b16 %v556, %v552
    %v793 = vpack.c.b16 %v557, %v553
    %v794 = vpack.c.b16 %v562, %v558
    %v795 = vpack.c.b16 %v563, %v559
    %v796 = vpack.c.b16 %v564, %v560
    %v797 = vpack.c.b16 %v565, %v561
    %v798 = vpack.c.b16 %v570, %v566
    %v799 = vpack.c.b16 %v571, %v567
    %v800 = vpack.c.b16 %v572, %v568
    %v801 = vpack.c.b16 %v573, %v569
    %v802 = vpack.c.b16 %v578, %v574
    %v803 = vpack.c.b16 %v579, %v575
    %v804 = vpack.c.b16 %v580, %v576
    %v805 = vpack.c.b16 %v581, %v577
    %v806 = vpack.c.b16 %v586, %v582
    %v807 = vpack.c.b16 %v587, %v583
    %v808 = vpack.c.b16 %v588, %v584
    %v809 = vpack.c.b16 %v589, %v585
    %v810 = vpack.c.b16 %v594, %v590
    %v811 = vpack.c.b16 %v595, %v591
    %v812 = vpack.c.b16 %v596, %v592
    %v813 = vpack.c.b16 %v597, %v593
    %v814 = vpack.c.b16 %v602, %v598
    %v815 = vpack.c.b16 %v603, %v599
    %v816 = vpack.c.b16 %v604, %v600
    %v817 = vpack.c.b16 %v605, %v601
    %v818 = vpack.c.b16 %v610, %v606
    %v819 = vpack.c.b16 %v611, %v607
    %v820 = vpack.c.b16 %v612, %v608
    %v821 = vpack.c.b16 %v613, %v609
    %v822 = vpack.c.b16 %v618, %v614
    %v823 = vpack.c.b16 %v619, %v615
    %v824 = vpack.c.b16 %v620, %v616
    %v825 = vpack.c.b16 %v621, %v617
    %v826 = vpack.c.b16 %v626, %v622
    %v827 = vpack.c.b16 %v627, %v623
    %v828 = vpack.c.b16 %v628, %v624
    %v829 = vpack.c.b16 %v629, %v625
    %v830 = vpack.c.b16 %v634, %v630
    %v831 = vpack.c.b16 %v635, %v631
    %v832 = vpack.c.b16 %v636, %v632
    %v833 = vpack.c.b16 %v637, %v633
    %v834 = vpack.c.b16 %v642, %v638
    %v835 = vpack.c.b16 %v643, %v639
    %v836 = vpack.c.b16 %v644, %v640
    %v837 = vpack.c.b16 %v645, %v641
    %v838 = vpack.c.b16 %v650, %v646
    %v839 = vpack.c.b16 %v651, %v647
    %v840 = vpack.c.b16 %v652, %v648
    %v841 = vpack.c.b16 %v653, %v649
    %v842 = vpack.c.b16 %v658, %v654
    %v843 = vpack.c.b16 %v659, %v655
    %v844 = vpack.c.b16 %v660, %v656
    %v845 = vpack.c.b16 %v661, %v657
    %v846 = vpack.c.b16 %v666, %v662
    %v847 = vpack.c.b16 %v667, %v663
    %v848 = vpack.c.b16 %v668, %v664
    %v849 = vpack.c.b16 %v669, %v665
    %v850 = vpack.c.b16 %v674, %v670
    %v851 = vpack.c.b16 %v675, %v671
    %v852 = vpack.c.b16 %v676, %v672
    %v853 = vpack.c.b16 %v677, %v673
    %v854 = vpack.c.b16 %v682, %v678
    %v855 = vpack.c.b16 %v683, %v679
    %v856 = vpack.c.b16 %v684, %v680
    %v857 = vpack.c.b16 %v685, %v681
    %v858 = vpack.c.b16 %v690, %v686
    %v859 = vpack.c.b16 %v691, %v687
    %v860 = vpack.c.b16 %v692, %v688
    %v861 = vpack.c.b16 %v693, %v689
    %v862 = vpack.c.b16 %v698, %v694
    %v863 = vpack.c.b16 %v699, %v695
    %v864 = vpack.c.b16 %v700, %v696
    %v865 = vpack.c.b16 %v701, %v697
    %v866 = vpack.c.b16 %v706, %v702
    %v867 = vpack.c.b16 %v707, %v703
    %v868 = vpack.c.b16 %v708, %v704
    %v869 = vpack.c.b16 %v709, %v705
    %v870 = vpack.c.b16 %v714, %v710
    %v871 = vpack.c.b16 %v715, %v711
    %v872 = vpack.c.b16 %v716, %v712
    %v873 = vpack.c.b16 %v717, %v713
    %v874 = vpack.c.b16 %v722, %v718
    %v875 = vpack.c.b16 %v723, %v719
    %v876 = vpack.c.b16 %v724, %v720
    %v877 = vpack.c.b16 %v725, %v721
    %v878 = vpack.c.b16 %v730, %v726
    %v879 = vpack.c.b16 %v731, %v727
    %v880 = vpack.c.b16 %v732, %v728
    %v881 = vpack.c.b16 %v733, %v729
    %v882 = vpack.c.b16 %v738, %v734
    %v883 = vpack.c.b16 %v739, %v735
    %v884 = vpack.c.b16 %v740, %v736
    %v885 = vpack.c.b16 %v741, %v737
    %v886 = vpack.c.b16 %v746, %v742
    %v887 = vpack.c.b16 %v747, %v743
    %v888 = vpack.c.b16 %v748, %v744
    %v889 = vpack.c.b16 %v749, %v745
    %v890 = vpack.c.b16 %v754, %v750
    %v891 = vpack.c.b16 %v755, %v751
    %v892 = vpack.c.b16 %v756, %v752
    %v893 = vpack.c.b16 %v757, %v753
    %v894 = vpack.c.b16 %v762, %v758
    %v895 = vpack.c.b16 %v763, %v759
    %v896 = vpack.c.b16 %v764, %v760
    %v897 = vpack.c.b16 %v765, %v761
    %v898 = vpack.c.b16 %v770, %v766
    %v899 = vpack.c.b16 %v771, %v767
    %v900 = vpack.c.b16 %v772, %v768
    %v901 = vpack.c.b16 %v773, %v769
    %1030 = vmatprep.subr.bf16.mxu0 %v803
    %1031 = vmatpush1.bf16.msra.mxu0 %v802
    %1032 = vmatprep.subr.bf16.mxu0 %v799
    %1033 = vmatpush1.bf16.msra.mxu0 %v798
    %1034 = vmatprep.subr.bf16.mxu0 %v795
    %1035 = vmatpush1.bf16.msra.mxu0 %v794
    %1036 = vmatprep.subr.bf16.mxu0 %v791
    %1037 = vmatpush1.bf16.msra.mxu0 %v790
    %1038 = vmatprep.subr.bf16.mxu0 %v787
    %1039 = vmatpush1.bf16.msra.mxu0 %v786
    %1040 = vmatprep.subr.bf16.mxu0 %v783
    %1041 = vmatpush1.bf16.msra.mxu0 %v782
    %1042 = vmatprep.subr.bf16.mxu0 %v779
    %1043 = vmatpush1.bf16.msra.mxu0 %v778
    %1044 = vmatprep.subr.bf16.mxu0 %v775
    %1045 = vmatpush1.bf16.msra.mxu0 %v774
    %1046 = vmatprep.subr.bf16.mxu0 %v835
    %1047 = vmatpush2.bf16.msra.mxu0 %v834
    %1048 = vmatprep.subr.bf16.mxu0 %v831
    %1049 = vmatpush2.bf16.msra.mxu0 %v830
    %1050 = vmatprep.subr.bf16.mxu0 %v827
    %1051 = vmatpush2.bf16.msra.mxu0 %v826
    %1052 = vmatprep.subr.bf16.mxu0 %v823
    %1053 = vmatpush2.bf16.msra.mxu0 %v822
    %1054 = vmatprep.subr.bf16.mxu0 %v819
    %1055 = vmatpush2.bf16.msra.mxu0 %v818
    %1056 = vmatprep.subr.bf16.mxu0 %v815
    %1057 = vmatpush2.bf16.msra.mxu0 %v814
    %1058 = vmatprep.subr.bf16.mxu0 %v811
    %1059 = vmatpush2.bf16.msra.mxu0 %v810
    %1060 = vmatprep.subr.bf16.mxu0 %v807
    %1061 = vmatpush2.bf16.msra.mxu0 %v806
    %1062 = vmatprep.mubr.bf16.mxu0 %v237
    %1063 = vmatmul.mubr.bf16.gmra.mxu0 %v236
    %v1064 = vpop.f32.mrf.mxu0
    %v1065 = vadd.f32 %v373, %v1064
    %v1066 = vpop.f32.mrf.mxu0
    %v1067 = vadd.f32 %v377, %v1066
    %v1068 = vpop.f32.mrf.mxu0
    %v1069 = vadd.f32 %v373, %v1068
    %v1070 = vpop.f32.mrf.mxu0
    %v1071 = vadd.f32 %v377, %v1070
    %1072 = vdwg.mxu0
    %1073 = vmatprep.subr.bf16.mxu0 %v867
    %1074 = vmatpush1.bf16.msra.mxu0 %v866
    %1075 = vmatprep.subr.bf16.mxu0 %v863
    %1076 = vmatpush1.bf16.msra.mxu0 %v862
    %1077 = vmatprep.subr.bf16.mxu0 %v859
    %1078 = vmatpush1.bf16.msra.mxu0 %v858
    %1079 = vmatprep.subr.bf16.mxu0 %v855
    %1080 = vmatpush1.bf16.msra.mxu0 %v854
    %1081 = vmatprep.subr.bf16.mxu0 %v851
    %1082 = vmatpush1.bf16.msra.mxu0 %v850
    %1083 = vmatprep.subr.bf16.mxu0 %v847
    %1084 = vmatpush1.bf16.msra.mxu0 %v846
    %1085 = vmatprep.subr.bf16.mxu0 %v843
    %1086 = vmatpush1.bf16.msra.mxu0 %v842
    %1087 = vmatprep.subr.bf16.mxu0 %v839
    %1088 = vmatpush1.bf16.msra.mxu0 %v838
    %1089 = vmatprep.subr.bf16.mxu0 %v899
    %1090 = vmatpush2.bf16.msra.mxu0 %v898
    %1091 = vmatprep.subr.bf16.mxu0 %v895
    %1092 = vmatpush2.bf16.msra.mxu0 %v894
    %1093 = vmatprep.subr.bf16.mxu0 %v891
    %1094 = vmatpush2.bf16.msra.mxu0 %v890
    %1095 = vmatprep.subr.bf16.mxu0 %v887
    %1096 = vmatpush2.bf16.msra.mxu0 %v886
    %1097 = vmatprep.subr.bf16.mxu0 %v883
    %1098 = vmatpush2.bf16.msra.mxu0 %v882
    %1099 = vmatprep.subr.bf16.mxu0 %v879
    %1100 = vmatpush2.bf16.msra.mxu0 %v878
    %1101 = vmatprep.subr.bf16.mxu0 %v875
    %1102 = vmatpush2.bf16.msra.mxu0 %v874
    %1103 = vmatprep.subr.bf16.mxu0 %v871
    %1104 = vmatpush2.bf16.msra.mxu0 %v870
    %1105 = vmatprep.mubr.bf16.mxu0 %v239
    %1106 = vmatmul.mubr.bf16.gmra.mxu0 %v238
    %v1107 = vpop.f32.mrf.mxu0
    %v1108 = vadd.f32 %v1065, %v1107
    %v1109 = vpop.f32.mrf.mxu0
    %v1110 = vadd.f32 %v1067, %v1109
    %v1111 = vpop.f32.mrf.mxu0
    %v1112 = vadd.f32 %v1069, %v1111
    %v1113 = vpop.f32.mrf.mxu0
    %v1114 = vadd.f32 %v1071, %v1113
    %1115 = vdwg.mxu0
    %1116 = vmatprep.subr.bf16.mxu0 %v805
    %1117 = vmatpush1.bf16.msra.mxu0 %v804
    %1118 = vmatprep.subr.bf16.mxu0 %v801
    %1119 = vmatpush1.bf16.msra.mxu0 %v800
    %1120 = vmatprep.subr.bf16.mxu0 %v797
    %1121 = vmatpush1.bf16.msra.mxu0 %v796
    %1122 = vmatprep.subr.bf16.mxu0 %v793
    %1123 = vmatpush1.bf16.msra.mxu0 %v792
    %1124 = vmatprep.subr.bf16.mxu0 %v789
    %1125 = vmatpush1.bf16.msra.mxu0 %v788
    %1126 = vmatprep.subr.bf16.mxu0 %v785
    %1127 = vmatpush1.bf16.msra.mxu0 %v784
    %1128 = vmatprep.subr.bf16.mxu0 %v781
    %1129 = vmatpush1.bf16.msra.mxu0 %v780
    %1130 = vmatprep.subr.bf16.mxu0 %v777
    %1131 = vmatpush1.bf16.msra.mxu0 %v776
    %1132 = vmatprep.subr.bf16.mxu0 %v837
    %1133 = vmatpush2.bf16.msra.mxu0 %v836
    %1134 = vmatprep.subr.bf16.mxu0 %v833
    %1135 = vmatpush2.bf16.msra.mxu0 %v832
    %1136 = vmatprep.subr.bf16.mxu0 %v829
    %1137 = vmatpush2.bf16.msra.mxu0 %v828
    %1138 = vmatprep.subr.bf16.mxu0 %v825
    %1139 = vmatpush2.bf16.msra.mxu0 %v824
    %1140 = vmatprep.subr.bf16.mxu0 %v821
    %1141 = vmatpush2.bf16.msra.mxu0 %v820
    %1142 = vmatprep.subr.bf16.mxu0 %v817
    %1143 = vmatpush2.bf16.msra.mxu0 %v816
    %1144 = vmatprep.subr.bf16.mxu0 %v813
    %1145 = vmatpush2.bf16.msra.mxu0 %v812
    %1146 = vmatprep.subr.bf16.mxu0 %v809
    %1147 = vmatpush2.bf16.msra.mxu0 %v808
    %1148 = vmatprep.mubr.bf16.mxu0 %v237
    %1149 = vmatmul.mubr.bf16.gmra.mxu0 %v236
    %v1150 = vpop.f32.mrf.mxu0
    %v1151 = vadd.f32 %v381, %v1150
    %v1152 = vpop.f32.mrf.mxu0
    %v1153 = vadd.f32 %v385, %v1152
    %v1154 = vpop.f32.mrf.mxu0
    %v1155 = vadd.f32 %v381, %v1154
    %v1156 = vpop.f32.mrf.mxu0
    %v1157 = vadd.f32 %v385, %v1156
    %1158 = vdwg.mxu0
    %1159 = vmatprep.subr.bf16.mxu0 %v869
    %1160 = vmatpush1.bf16.msra.mxu0 %v868
    %1161 = vmatprep.subr.bf16.mxu0 %v865
    %1162 = vmatpush1.bf16.msra.mxu0 %v864
    %1163 = vmatprep.subr.bf16.mxu0 %v861
    %1164 = vmatpush1.bf16.msra.mxu0 %v860
    %1165 = vmatprep.subr.bf16.mxu0 %v857
    %1166 = vmatpush1.bf16.msra.mxu0 %v856
    %1167 = vmatprep.subr.bf16.mxu0 %v853
    %1168 = vmatpush1.bf16.msra.mxu0 %v852
    %1169 = vmatprep.subr.bf16.mxu0 %v849
    %1170 = vmatpush1.bf16.msra.mxu0 %v848
    %1171 = vmatprep.subr.bf16.mxu0 %v845
    %1172 = vmatpush1.bf16.msra.mxu0 %v844
    %1173 = vmatprep.subr.bf16.mxu0 %v841
    %1174 = vmatpush1.bf16.msra.mxu0 %v840
    %1175 = vmatprep.subr.bf16.mxu0 %v901
    %1176 = vmatpush2.bf16.msra.mxu0 %v900
    %1177 = vmatprep.subr.bf16.mxu0 %v897
    %1178 = vmatpush2.bf16.msra.mxu0 %v896
    %1179 = vmatprep.subr.bf16.mxu0 %v893
    %1180 = vmatpush2.bf16.msra.mxu0 %v892
    %1181 = vmatprep.subr.bf16.mxu0 %v889
    %1182 = vmatpush2.bf16.msra.mxu0 %v888
    %1183 = vmatprep.subr.bf16.mxu0 %v885
    %1184 = vmatpush2.bf16.msra.mxu0 %v884
    %1185 = vmatprep.subr.bf16.mxu0 %v881
    %1186 = vmatpush2.bf16.msra.mxu0 %v880
    %1187 = vmatprep.subr.bf16.mxu0 %v877
    %1188 = vmatpush2.bf16.msra.mxu0 %v876
    %1189 = vmatprep.subr.bf16.mxu0 %v873
    %1190 = vmatpush2.bf16.msra.mxu0 %v872
    %1191 = vmatprep.mubr.bf16.mxu0 %v239
    %1192 = vmatmul.mubr.bf16.gmra.mxu0 %v238
    %v1193 = vpop.f32.mrf.mxu0
    %v1194 = vadd.f32 %v1151, %v1193
    %v1195 = vpop.f32.mrf.mxu0
    %v1196 = vadd.f32 %v1153, %v1195
    %v1197 = vpop.f32.mrf.mxu0
    %v1198 = vadd.f32 %v1155, %v1197
    %v1199 = vpop.f32.mrf.mxu0
    %v1200 = vadd.f32 %v1157, %v1199
    %1201 = vdwg.mxu0
    %v1202 = vmax.f32 %v1108, 0.0
    %v1203 = vmax.f32 %v1110, 0.0
    %v1204 = vmax.f32 %v1194, 0.0
    %v1205 = vmax.f32 %v1196, 0.0
    %v1206 = vmax.f32 %v1112, 0.0
    %v1207 = vmax.f32 %v1114, 0.0
    %v1208 = vmax.f32 %v1198, 0.0
    %v1209 = vmax.f32 %v1200, 0.0
    %v1210 = vpack.c.bf16 %v1206, %v1202
    %v1211 = vpack.c.bf16 %v1207, %v1203
    %v1212 = vpack.c.bf16 %v1208, %v1204
    %v1213 = vpack.c.bf16 %v1209, %v1205
    %v1214 = vld [vmem:[#allocation4] sm:$0xff]
    %v1215 = vld [vmem:[#allocation4 + $0x8] sm:$0xff]
    %v1216 = vld [vmem:[#allocation4 + $0x10] sm:$0xff]
    %v1217 = vld [vmem:[#allocation4 + $0x18] sm:$0xff]
    %v1218 = vld [vmem:[#allocation4 + $0x20] sm:$0xff]
    %v1219 = vld [vmem:[#allocation4 + $0x28] sm:$0xff]
    %v1220 = vld [vmem:[#allocation4 + $0x30] sm:$0xff]
    %v1221 = vld [vmem:[#allocation4 + $0x38] sm:$0xff]
    %v1222 = vld [vmem:[#allocation4 + $0x40] sm:$0xff]
    %v1223 = vld [vmem:[#allocation4 + $0x48] sm:$0xff]
    %v1224 = vld [vmem:[#allocation4 + $0x50] sm:$0xff]
    %v1225 = vld [vmem:[#allocation4 + $0x58] sm:$0xff]
    %v1226 = vld [vmem:[#allocation4 + $0x60] sm:$0xff]
    %v1227 = vld [vmem:[#allocation4 + $0x68] sm:$0xff]
    %v1228 = vld [vmem:[#allocation4 + $0x70] sm:$0xff]
    %v1229 = vld [vmem:[#allocation4 + $0x78] sm:$0xff]
    %v1230 = vld [vmem:[#allocation4 + $0x80] sm:$0xff]
    %v1231 = vld [vmem:[#allocation4 + $0x88] sm:$0xff]
    %v1232 = vld [vmem:[#allocation4 + $0x90] sm:$0xff]
    %v1233 = vld [vmem:[#allocation4 + $0x98] sm:$0xff]
    %v1234 = vld [vmem:[#allocation4 + $0xa0] sm:$0xff]
    %v1235 = vld [vmem:[#allocation4 + $0xa8] sm:$0xff]
    %v1236 = vld [vmem:[#allocation4 + $0xb0] sm:$0xff]
    %v1237 = vld [vmem:[#allocation4 + $0xb8] sm:$0xff]
    %v1238 = vld [vmem:[#allocation4 + $0xc0] sm:$0xff]
    %v1239 = vld [vmem:[#allocation4 + $0xc8] sm:$0xff]
    %v1240 = vld [vmem:[#allocation4 + $0xd0] sm:$0xff]
    %v1241 = vld [vmem:[#allocation4 + $0xd8] sm:$0xff]
    %v1242 = vld [vmem:[#allocation4 + $0xe0] sm:$0xff]
    %v1243 = vld [vmem:[#allocation4 + $0xe8] sm:$0xff]
    %v1244 = vld [vmem:[#allocation4 + $0xf0] sm:$0xff]
    %v1245 = vld [vmem:[#allocation4 + $0xf8] sm:$0xff]
    %v1246 = vld [vmem:[#allocation4 + $0x100] sm:$0xff]
    %v1247 = vld [vmem:[#allocation4 + $0x108] sm:$0xff]
    %v1248 = vld [vmem:[#allocation4 + $0x110] sm:$0xff]
    %v1249 = vld [vmem:[#allocation4 + $0x118] sm:$0xff]
    %v1250 = vld [vmem:[#allocation4 + $0x120] sm:$0xff]
    %v1251 = vld [vmem:[#allocation4 + $0x128] sm:$0xff]
    %v1252 = vld [vmem:[#allocation4 + $0x130] sm:$0xff]
    %v1253 = vld [vmem:[#allocation4 + $0x138] sm:$0xff]
    %v1254 = vld [vmem:[#allocation4 + $0x140] sm:$0xff]
    %v1255 = vld [vmem:[#allocation4 + $0x148] sm:$0xff]
    %v1256 = vld [vmem:[#allocation4 + $0x150] sm:$0xff]
    %v1257 = vld [vmem:[#allocation4 + $0x158] sm:$0xff]
    %v1258 = vld [vmem:[#allocation4 + $0x160] sm:$0xff]
    %v1259 = vld [vmem:[#allocation4 + $0x168] sm:$0xff]
    %v1260 = vld [vmem:[#allocation4 + $0x170] sm:$0xff]
    %v1261 = vld [vmem:[#allocation4 + $0x178] sm:$0xff]
    %v1262 = vld [vmem:[#allocation4 + $0x180] sm:$0xff]
    %v1263 = vld [vmem:[#allocation4 + $0x188] sm:$0xff]
    %v1264 = vld [vmem:[#allocation4 + $0x190] sm:$0xff]
    %v1265 = vld [vmem:[#allocation4 + $0x198] sm:$0xff]
    %v1266 = vld [vmem:[#allocation4 + $0x1a0] sm:$0xff]
    %v1267 = vld [vmem:[#allocation4 + $0x1a8] sm:$0xff]
    %v1268 = vld [vmem:[#allocation4 + $0x1b0] sm:$0xff]
    %v1269 = vld [vmem:[#allocation4 + $0x1b8] sm:$0xff]
    %v1270 = vld [vmem:[#allocation4 + $0x1c0] sm:$0xff]
    %v1271 = vld [vmem:[#allocation4 + $0x1c8] sm:$0xff]
    %v1272 = vld [vmem:[#allocation4 + $0x1d0] sm:$0xff]
    %v1273 = vld [vmem:[#allocation4 + $0x1d8] sm:$0xff]
    %v1274 = vld [vmem:[#allocation4 + $0x1e0] sm:$0xff]
    %v1275 = vld [vmem:[#allocation4 + $0x1e8] sm:$0xff]
    %v1276 = vld [vmem:[#allocation4 + $0x1f0] sm:$0xff]
    %v1277 = vld [vmem:[#allocation4 + $0x1f8] sm:$0xff]
    %v1278 = vld [vmem:[#allocation4 + $0x200] sm:$0xff]
    %v1279 = vld [vmem:[#allocation4 + $0x208] sm:$0xff]
    %v1280 = vld [vmem:[#allocation4 + $0x210] sm:$0xff]
    %v1281 = vld [vmem:[#allocation4 + $0x218] sm:$0xff]
    %v1282 = vld [vmem:[#allocation4 + $0x220] sm:$0xff]
    %v1283 = vld [vmem:[#allocation4 + $0x228] sm:$0xff]
    %v1284 = vld [vmem:[#allocation4 + $0x230] sm:$0xff]
    %v1285 = vld [vmem:[#allocation4 + $0x238] sm:$0xff]
    %v1286 = vld [vmem:[#allocation4 + $0x240] sm:$0xff]
    %v1287 = vld [vmem:[#allocation4 + $0x248] sm:$0xff]
    %v1288 = vld [vmem:[#allocation4 + $0x250] sm:$0xff]
    %v1289 = vld [vmem:[#allocation4 + $0x258] sm:$0xff]
    %v1290 = vld [vmem:[#allocation4 + $0x260] sm:$0xff]
    %v1291 = vld [vmem:[#allocation4 + $0x268] sm:$0xff]
    %v1292 = vld [vmem:[#allocation4 + $0x270] sm:$0xff]
    %v1293 = vld [vmem:[#allocation4 + $0x278] sm:$0xff]
    %v1294 = vld [vmem:[#allocation4 + $0x280] sm:$0xff]
    %v1295 = vld [vmem:[#allocation4 + $0x288] sm:$0xff]
    %v1296 = vld [vmem:[#allocation4 + $0x290] sm:$0xff]
    %v1297 = vld [vmem:[#allocation4 + $0x298] sm:$0xff]
    %v1298 = vld [vmem:[#allocation4 + $0x2a0] sm:$0xff]
    %v1299 = vld [vmem:[#allocation4 + $0x2a8] sm:$0xff]
    %v1300 = vld [vmem:[#allocation4 + $0x2b0] sm:$0xff]
    %v1301 = vld [vmem:[#allocation4 + $0x2b8] sm:$0xff]
    %v1302 = vld [vmem:[#allocation4 + $0x2c0] sm:$0xff]
    %v1303 = vld [vmem:[#allocation4 + $0x2c8] sm:$0xff]
    %v1304 = vld [vmem:[#allocation4 + $0x2d0] sm:$0xff]
    %v1305 = vld [vmem:[#allocation4 + $0x2d8] sm:$0xff]
    %v1306 = vld [vmem:[#allocation4 + $0x2e0] sm:$0xff]
    %v1307 = vld [vmem:[#allocation4 + $0x2e8] sm:$0xff]
    %v1308 = vld [vmem:[#allocation4 + $0x2f0] sm:$0xff]
    %v1309 = vld [vmem:[#allocation4 + $0x2f8] sm:$0xff]
    %v1310 = vld [vmem:[#allocation4 + $0x300] sm:$0xff]
    %v1311 = vld [vmem:[#allocation4 + $0x308] sm:$0xff]
    %v1312 = vld [vmem:[#allocation4 + $0x310] sm:$0xff]
    %v1313 = vld [vmem:[#allocation4 + $0x318] sm:$0xff]
    %v1314 = vld [vmem:[#allocation4 + $0x320] sm:$0xff]
    %v1315 = vld [vmem:[#allocation4 + $0x328] sm:$0xff]
    %v1316 = vld [vmem:[#allocation4 + $0x330] sm:$0xff]
    %v1317 = vld [vmem:[#allocation4 + $0x338] sm:$0xff]
    %v1318 = vld [vmem:[#allocation4 + $0x340] sm:$0xff]
    %v1319 = vld [vmem:[#allocation4 + $0x348] sm:$0xff]
    %v1320 = vld [vmem:[#allocation4 + $0x350] sm:$0xff]
    %v1321 = vld [vmem:[#allocation4 + $0x358] sm:$0xff]
    %v1322 = vld [vmem:[#allocation4 + $0x360] sm:$0xff]
    %v1323 = vld [vmem:[#allocation4 + $0x368] sm:$0xff]
    %v1324 = vld [vmem:[#allocation4 + $0x370] sm:$0xff]
    %v1325 = vld [vmem:[#allocation4 + $0x378] sm:$0xff]
    %v1326 = vld [vmem:[#allocation4 + $0x380] sm:$0xff]
    %v1327 = vld [vmem:[#allocation4 + $0x388] sm:$0xff]
    %v1328 = vld [vmem:[#allocation4 + $0x390] sm:$0xff]
    %v1329 = vld [vmem:[#allocation4 + $0x398] sm:$0xff]
    %v1330 = vld [vmem:[#allocation4 + $0x3a0] sm:$0xff]
    %v1331 = vld [vmem:[#allocation4 + $0x3a8] sm:$0xff]
    %v1332 = vld [vmem:[#allocation4 + $0x3b0] sm:$0xff]
    %v1333 = vld [vmem:[#allocation4 + $0x3b8] sm:$0xff]
    %v1334 = vld [vmem:[#allocation4 + $0x3c0] sm:$0xff]
    %v1335 = vld [vmem:[#allocation4 + $0x3c8] sm:$0xff]
    %v1336 = vld [vmem:[#allocation4 + $0x3d0] sm:$0xff]
    %v1337 = vld [vmem:[#allocation4 + $0x3d8] sm:$0xff]
    %v1338 = vld [vmem:[#allocation4 + $0x3e0] sm:$0xff]
    %v1339 = vld [vmem:[#allocation4 + $0x3e8] sm:$0xff]
    %v1340 = vld [vmem:[#allocation4 + $0x3f0] sm:$0xff]
    %v1341 = vld [vmem:[#allocation4 + $0x3f8] sm:$0xff]
    %v1342 = vld [vmem:[%s6] sm:$0xf]
    %v1344 = vlaneseq
    %v1345 = vshrl.u32 %v1344, 7
    %v1346 = vsub.s32 0, %v1345
    %v1347 = vrot.slane %v1342, %v1346
    %v1348 = vlaneseq
    %v1349 = vshrl.u32 %v1348, 7
    %v1350 = vsub.s32 1, %v1349
    %v1351 = vrot.slane %v1342, %v1350
    %v1352 = vlaneseq
    %v1353 = vshrl.u32 %v1352, 7
    %v1354 = vsub.s32 2, %v1353
    %v1355 = vrot.slane %v1342, %v1354
    %v1356 = vlaneseq
    %v1357 = vshrl.u32 %v1356, 7
    %v1358 = vsub.s32 3, %v1357
    %v1359 = vrot.slane %v1342, %v1358
    %v1492 = vunpack.c.l.b16 %v1214
    %v1493 = vunpack.c.h.b16 %v1214
    %v1494 = vunpack.c.l.b16 %v1215
    %v1495 = vunpack.c.h.b16 %v1215
    %v1496 = vunpack.c.l.b16 %v1216
    %v1497 = vunpack.c.h.b16 %v1216
    %v1498 = vunpack.c.l.b16 %v1217
    %v1499 = vunpack.c.h.b16 %v1217
    %v1500 = vunpack.c.l.b16 %v1218
    %v1501 = vunpack.c.h.b16 %v1218
    %v1502 = vunpack.c.l.b16 %v1219
    %v1503 = vunpack.c.h.b16 %v1219
    %v1504 = vunpack.c.l.b16 %v1220
    %v1505 = vunpack.c.h.b16 %v1220
    %v1506 = vunpack.c.l.b16 %v1221
    %v1507 = vunpack.c.h.b16 %v1221
    %v1508 = vunpack.c.l.b16 %v1222
    %v1509 = vunpack.c.h.b16 %v1222
    %v1510 = vunpack.c.l.b16 %v1223
    %v1511 = vunpack.c.h.b16 %v1223
    %v1512 = vunpack.c.l.b16 %v1224
    %v1513 = vunpack.c.h.b16 %v1224
    %v1514 = vunpack.c.l.b16 %v1225
    %v1515 = vunpack.c.h.b16 %v1225
    %v1516 = vunpack.c.l.b16 %v1226
    %v1517 = vunpack.c.h.b16 %v1226
    %v1518 = vunpack.c.l.b16 %v1227
    %v1519 = vunpack.c.h.b16 %v1227
    %v1520 = vunpack.c.l.b16 %v1228
    %v1521 = vunpack.c.h.b16 %v1228
    %v1522 = vunpack.c.l.b16 %v1229
    %v1523 = vunpack.c.h.b16 %v1229
    %v1524 = vunpack.c.l.b16 %v1230
    %v1525 = vunpack.c.h.b16 %v1230
    %v1526 = vunpack.c.l.b16 %v1231
    %v1527 = vunpack.c.h.b16 %v1231
    %v1528 = vunpack.c.l.b16 %v1232
    %v1529 = vunpack.c.h.b16 %v1232
    %v1530 = vunpack.c.l.b16 %v1233
    %v1531 = vunpack.c.h.b16 %v1233
    %v1532 = vunpack.c.l.b16 %v1234
    %v1533 = vunpack.c.h.b16 %v1234
    %v1534 = vunpack.c.l.b16 %v1235
    %v1535 = vunpack.c.h.b16 %v1235
    %v1536 = vunpack.c.l.b16 %v1236
    %v1537 = vunpack.c.h.b16 %v1236
    %v1538 = vunpack.c.l.b16 %v1237
    %v1539 = vunpack.c.h.b16 %v1237
    %v1540 = vunpack.c.l.b16 %v1238
    %v1541 = vunpack.c.h.b16 %v1238
    %v1542 = vunpack.c.l.b16 %v1239
    %v1543 = vunpack.c.h.b16 %v1239
    %v1544 = vunpack.c.l.b16 %v1240
    %v1545 = vunpack.c.h.b16 %v1240
    %v1546 = vunpack.c.l.b16 %v1241
    %v1547 = vunpack.c.h.b16 %v1241
    %v1548 = vunpack.c.l.b16 %v1242
    %v1549 = vunpack.c.h.b16 %v1242
    %v1550 = vunpack.c.l.b16 %v1243
    %v1551 = vunpack.c.h.b16 %v1243
    %v1552 = vunpack.c.l.b16 %v1244
    %v1553 = vunpack.c.h.b16 %v1244
    %v1554 = vunpack.c.l.b16 %v1245
    %v1555 = vunpack.c.h.b16 %v1245
    %v1556 = vunpack.c.l.b16 %v1246
    %v1557 = vunpack.c.h.b16 %v1246
    %v1558 = vunpack.c.l.b16 %v1247
    %v1559 = vunpack.c.h.b16 %v1247
    %v1560 = vunpack.c.l.b16 %v1248
    %v1561 = vunpack.c.h.b16 %v1248
    %v1562 = vunpack.c.l.b16 %v1249
    %v1563 = vunpack.c.h.b16 %v1249
    %v1564 = vunpack.c.l.b16 %v1250
    %v1565 = vunpack.c.h.b16 %v1250
    %v1566 = vunpack.c.l.b16 %v1251
    %v1567 = vunpack.c.h.b16 %v1251
    %v1568 = vunpack.c.l.b16 %v1252
    %v1569 = vunpack.c.h.b16 %v1252
    %v1570 = vunpack.c.l.b16 %v1253
    %v1571 = vunpack.c.h.b16 %v1253
    %v1572 = vunpack.c.l.b16 %v1254
    %v1573 = vunpack.c.h.b16 %v1254
    %v1574 = vunpack.c.l.b16 %v1255
    %v1575 = vunpack.c.h.b16 %v1255
    %v1576 = vunpack.c.l.b16 %v1256
    %v1577 = vunpack.c.h.b16 %v1256
    %v1578 = vunpack.c.l.b16 %v1257
    %v1579 = vunpack.c.h.b16 %v1257
    %v1580 = vunpack.c.l.b16 %v1258
    %v1581 = vunpack.c.h.b16 %v1258
    %v1582 = vunpack.c.l.b16 %v1259
    %v1583 = vunpack.c.h.b16 %v1259
    %v1584 = vunpack.c.l.b16 %v1260
    %v1585 = vunpack.c.h.b16 %v1260
    %v1586 = vunpack.c.l.b16 %v1261
    %v1587 = vunpack.c.h.b16 %v1261
    %v1588 = vunpack.c.l.b16 %v1262
    %v1589 = vunpack.c.h.b16 %v1262
    %v1590 = vunpack.c.l.b16 %v1263
    %v1591 = vunpack.c.h.b16 %v1263
    %v1592 = vunpack.c.l.b16 %v1264
    %v1593 = vunpack.c.h.b16 %v1264
    %v1594 = vunpack.c.l.b16 %v1265
    %v1595 = vunpack.c.h.b16 %v1265
    %v1596 = vunpack.c.l.b16 %v1266
    %v1597 = vunpack.c.h.b16 %v1266
    %v1598 = vunpack.c.l.b16 %v1267
    %v1599 = vunpack.c.h.b16 %v1267
    %v1600 = vunpack.c.l.b16 %v1268
    %v1601 = vunpack.c.h.b16 %v1268
    %v1602 = vunpack.c.l.b16 %v1269
    %v1603 = vunpack.c.h.b16 %v1269
    %v1604 = vunpack.c.l.b16 %v1270
    %v1605 = vunpack.c.h.b16 %v1270
    %v1606 = vunpack.c.l.b16 %v1271
    %v1607 = vunpack.c.h.b16 %v1271
    %v1608 = vunpack.c.l.b16 %v1272
    %v1609 = vunpack.c.h.b16 %v1272
    %v1610 = vunpack.c.l.b16 %v1273
    %v1611 = vunpack.c.h.b16 %v1273
    %v1612 = vunpack.c.l.b16 %v1274
    %v1613 = vunpack.c.h.b16 %v1274
    %v1614 = vunpack.c.l.b16 %v1275
    %v1615 = vunpack.c.h.b16 %v1275
    %v1616 = vunpack.c.l.b16 %v1276
    %v1617 = vunpack.c.h.b16 %v1276
    %v1618 = vunpack.c.l.b16 %v1277
    %v1619 = vunpack.c.h.b16 %v1277
    %v1620 = vunpack.c.l.b16 %v1278
    %v1621 = vunpack.c.h.b16 %v1278
    %v1622 = vunpack.c.l.b16 %v1279
    %v1623 = vunpack.c.h.b16 %v1279
    %v1624 = vunpack.c.l.b16 %v1280
    %v1625 = vunpack.c.h.b16 %v1280
    %v1626 = vunpack.c.l.b16 %v1281
    %v1627 = vunpack.c.h.b16 %v1281
    %v1628 = vunpack.c.l.b16 %v1282
    %v1629 = vunpack.c.h.b16 %v1282
    %v1630 = vunpack.c.l.b16 %v1283
    %v1631 = vunpack.c.h.b16 %v1283
    %v1632 = vunpack.c.l.b16 %v1284
    %v1633 = vunpack.c.h.b16 %v1284
    %v1634 = vunpack.c.l.b16 %v1285
    %v1635 = vunpack.c.h.b16 %v1285
    %v1636 = vunpack.c.l.b16 %v1286
    %v1637 = vunpack.c.h.b16 %v1286
    %v1638 = vunpack.c.l.b16 %v1287
    %v1639 = vunpack.c.h.b16 %v1287
    %v1640 = vunpack.c.l.b16 %v1288
    %v1641 = vunpack.c.h.b16 %v1288
    %v1642 = vunpack.c.l.b16 %v1289
    %v1643 = vunpack.c.h.b16 %v1289
    %v1644 = vunpack.c.l.b16 %v1290
    %v1645 = vunpack.c.h.b16 %v1290
    %v1646 = vunpack.c.l.b16 %v1291
    %v1647 = vunpack.c.h.b16 %v1291
    %v1648 = vunpack.c.l.b16 %v1292
    %v1649 = vunpack.c.h.b16 %v1292
    %v1650 = vunpack.c.l.b16 %v1293
    %v1651 = vunpack.c.h.b16 %v1293
    %v1652 = vunpack.c.l.b16 %v1294
    %v1653 = vunpack.c.h.b16 %v1294
    %v1654 = vunpack.c.l.b16 %v1295
    %v1655 = vunpack.c.h.b16 %v1295
    %v1656 = vunpack.c.l.b16 %v1296
    %v1657 = vunpack.c.h.b16 %v1296
    %v1658 = vunpack.c.l.b16 %v1297
    %v1659 = vunpack.c.h.b16 %v1297
    %v1660 = vunpack.c.l.b16 %v1298
    %v1661 = vunpack.c.h.b16 %v1298
    %v1662 = vunpack.c.l.b16 %v1299
    %v1663 = vunpack.c.h.b16 %v1299
    %v1664 = vunpack.c.l.b16 %v1300
    %v1665 = vunpack.c.h.b16 %v1300
    %v1666 = vunpack.c.l.b16 %v1301
    %v1667 = vunpack.c.h.b16 %v1301
    %v1668 = vunpack.c.l.b16 %v1302
    %v1669 = vunpack.c.h.b16 %v1302
    %v1670 = vunpack.c.l.b16 %v1303
    %v1671 = vunpack.c.h.b16 %v1303
    %v1672 = vunpack.c.l.b16 %v1304
    %v1673 = vunpack.c.h.b16 %v1304
    %v1674 = vunpack.c.l.b16 %v1305
    %v1675 = vunpack.c.h.b16 %v1305
    %v1676 = vunpack.c.l.b16 %v1306
    %v1677 = vunpack.c.h.b16 %v1306
    %v1678 = vunpack.c.l.b16 %v1307
    %v1679 = vunpack.c.h.b16 %v1307
    %v1680 = vunpack.c.l.b16 %v1308
    %v1681 = vunpack.c.h.b16 %v1308
    %v1682 = vunpack.c.l.b16 %v1309
    %v1683 = vunpack.c.h.b16 %v1309
    %v1684 = vunpack.c.l.b16 %v1310
    %v1685 = vunpack.c.h.b16 %v1310
    %v1686 = vunpack.c.l.b16 %v1311
    %v1687 = vunpack.c.h.b16 %v1311
    %v1688 = vunpack.c.l.b16 %v1312
    %v1689 = vunpack.c.h.b16 %v1312
    %v1690 = vunpack.c.l.b16 %v1313
    %v1691 = vunpack.c.h.b16 %v1313
    %v1692 = vunpack.c.l.b16 %v1314
    %v1693 = vunpack.c.h.b16 %v1314
    %v1694 = vunpack.c.l.b16 %v1315
    %v1695 = vunpack.c.h.b16 %v1315
    %v1696 = vunpack.c.l.b16 %v1316
    %v1697 = vunpack.c.h.b16 %v1316
    %v1698 = vunpack.c.l.b16 %v1317
    %v1699 = vunpack.c.h.b16 %v1317
    %v1700 = vunpack.c.l.b16 %v1318
    %v1701 = vunpack.c.h.b16 %v1318
    %v1702 = vunpack.c.l.b16 %v1319
    %v1703 = vunpack.c.h.b16 %v1319
    %v1704 = vunpack.c.l.b16 %v1320
    %v1705 = vunpack.c.h.b16 %v1320
    %v1706 = vunpack.c.l.b16 %v1321
    %v1707 = vunpack.c.h.b16 %v1321
    %v1708 = vunpack.c.l.b16 %v1322
    %v1709 = vunpack.c.h.b16 %v1322
    %v1710 = vunpack.c.l.b16 %v1323
    %v1711 = vunpack.c.h.b16 %v1323
    %v1712 = vunpack.c.l.b16 %v1324
    %v1713 = vunpack.c.h.b16 %v1324
    %v1714 = vunpack.c.l.b16 %v1325
    %v1715 = vunpack.c.h.b16 %v1325
    %v1716 = vunpack.c.l.b16 %v1326
    %v1717 = vunpack.c.h.b16 %v1326
    %v1718 = vunpack.c.l.b16 %v1327
    %v1719 = vunpack.c.h.b16 %v1327
    %v1720 = vunpack.c.l.b16 %v1328
    %v1721 = vunpack.c.h.b16 %v1328
    %v1722 = vunpack.c.l.b16 %v1329
    %v1723 = vunpack.c.h.b16 %v1329
    %v1724 = vunpack.c.l.b16 %v1330
    %v1725 = vunpack.c.h.b16 %v1330
    %v1726 = vunpack.c.l.b16 %v1331
    %v1727 = vunpack.c.h.b16 %v1331
    %v1728 = vunpack.c.l.b16 %v1332
    %v1729 = vunpack.c.h.b16 %v1332
    %v1730 = vunpack.c.l.b16 %v1333
    %v1731 = vunpack.c.h.b16 %v1333
    %v1732 = vunpack.c.l.b16 %v1334
    %v1733 = vunpack.c.h.b16 %v1334
    %v1734 = vunpack.c.l.b16 %v1335
    %v1735 = vunpack.c.h.b16 %v1335
    %v1736 = vunpack.c.l.b16 %v1336
    %v1737 = vunpack.c.h.b16 %v1336
    %v1738 = vunpack.c.l.b16 %v1337
    %v1739 = vunpack.c.h.b16 %v1337
    %v1740 = vunpack.c.l.b16 %v1338
    %v1741 = vunpack.c.h.b16 %v1338
    %v1742 = vunpack.c.l.b16 %v1339
    %v1743 = vunpack.c.h.b16 %v1339
    %v1744 = vunpack.c.l.b16 %v1340
    %v1745 = vunpack.c.h.b16 %v1340
    %v1746 = vunpack.c.l.b16 %v1341
    %v1747 = vunpack.c.h.b16 %v1341
    %v1748 = vpack.c.b16 %v1496, %v1492
    %v1749 = vpack.c.b16 %v1497, %v1493
    %v1750 = vpack.c.b16 %v1498, %v1494
    %v1751 = vpack.c.b16 %v1499, %v1495
    %v1752 = vpack.c.b16 %v1504, %v1500
    %v1753 = vpack.c.b16 %v1505, %v1501
    %v1754 = vpack.c.b16 %v1506, %v1502
    %v1755 = vpack.c.b16 %v1507, %v1503
    %v1756 = vpack.c.b16 %v1512, %v1508
    %v1757 = vpack.c.b16 %v1513, %v1509
    %v1758 = vpack.c.b16 %v1514, %v1510
    %v1759 = vpack.c.b16 %v1515, %v1511
    %v1760 = vpack.c.b16 %v1520, %v1516
    %v1761 = vpack.c.b16 %v1521, %v1517
    %v1762 = vpack.c.b16 %v1522, %v1518
    %v1763 = vpack.c.b16 %v1523, %v1519
    %v1764 = vpack.c.b16 %v1528, %v1524
    %v1765 = vpack.c.b16 %v1529, %v1525
    %v1766 = vpack.c.b16 %v1530, %v1526
    %v1767 = vpack.c.b16 %v1531, %v1527
    %v1768 = vpack.c.b16 %v1536, %v1532
    %v1769 = vpack.c.b16 %v1537, %v1533
    %v1770 = vpack.c.b16 %v1538, %v1534
    %v1771 = vpack.c.b16 %v1539, %v1535
    %v1772 = vpack.c.b16 %v1544, %v1540
    %v1773 = vpack.c.b16 %v1545, %v1541
    %v1774 = vpack.c.b16 %v1546, %v1542
    %v1775 = vpack.c.b16 %v1547, %v1543
    %v1776 = vpack.c.b16 %v1552, %v1548
    %v1777 = vpack.c.b16 %v1553, %v1549
    %v1778 = vpack.c.b16 %v1554, %v1550
    %v1779 = vpack.c.b16 %v1555, %v1551
    %v1780 = vpack.c.b16 %v1560, %v1556
    %v1781 = vpack.c.b16 %v1561, %v1557
    %v1782 = vpack.c.b16 %v1562, %v1558
    %v1783 = vpack.c.b16 %v1563, %v1559
    %v1784 = vpack.c.b16 %v1568, %v1564
    %v1785 = vpack.c.b16 %v1569, %v1565
    %v1786 = vpack.c.b16 %v1570, %v1566
    %v1787 = vpack.c.b16 %v1571, %v1567
    %v1788 = vpack.c.b16 %v1576, %v1572
    %v1789 = vpack.c.b16 %v1577, %v1573
    %v1790 = vpack.c.b16 %v1578, %v1574
    %v1791 = vpack.c.b16 %v1579, %v1575
    %v1792 = vpack.c.b16 %v1584, %v1580
    %v1793 = vpack.c.b16 %v1585, %v1581
    %v1794 = vpack.c.b16 %v1586, %v1582
    %v1795 = vpack.c.b16 %v1587, %v1583
    %v1796 = vpack.c.b16 %v1592, %v1588
    %v1797 = vpack.c.b16 %v1593, %v1589
    %v1798 = vpack.c.b16 %v1594, %v1590
    %v1799 = vpack.c.b16 %v1595, %v1591
    %v1800 = vpack.c.b16 %v1600, %v1596
    %v1801 = vpack.c.b16 %v1601, %v1597
    %v1802 = vpack.c.b16 %v1602, %v1598
    %v1803 = vpack.c.b16 %v1603, %v1599
    %v1804 = vpack.c.b16 %v1608, %v1604
    %v1805 = vpack.c.b16 %v1609, %v1605
    %v1806 = vpack.c.b16 %v1610, %v1606
    %v1807 = vpack.c.b16 %v1611, %v1607
    %v1808 = vpack.c.b16 %v1616, %v1612
    %v1809 = vpack.c.b16 %v1617, %v1613
    %v1810 = vpack.c.b16 %v1618, %v1614
    %v1811 = vpack.c.b16 %v1619, %v1615
    %v1812 = vpack.c.b16 %v1624, %v1620
    %v1813 = vpack.c.b16 %v1625, %v1621
    %v1814 = vpack.c.b16 %v1626, %v1622
    %v1815 = vpack.c.b16 %v1627, %v1623
    %v1816 = vpack.c.b16 %v1632, %v1628
    %v1817 = vpack.c.b16 %v1633, %v1629
    %v1818 = vpack.c.b16 %v1634, %v1630
    %v1819 = vpack.c.b16 %v1635, %v1631
    %v1820 = vpack.c.b16 %v1640, %v1636
    %v1821 = vpack.c.b16 %v1641, %v1637
    %v1822 = vpack.c.b16 %v1642, %v1638
    %v1823 = vpack.c.b16 %v1643, %v1639
    %v1824 = vpack.c.b16 %v1648, %v1644
    %v1825 = vpack.c.b16 %v1649, %v1645
    %v1826 = vpack.c.b16 %v1650, %v1646
    %v1827 = vpack.c.b16 %v1651, %v1647
    %v1828 = vpack.c.b16 %v1656, %v1652
    %v1829 = vpack.c.b16 %v1657, %v1653
    %v1830 = vpack.c.b16 %v1658, %v1654
    %v1831 = vpack.c.b16 %v1659, %v1655
    %v1832 = vpack.c.b16 %v1664, %v1660
    %v1833 = vpack.c.b16 %v1665, %v1661
    %v1834 = vpack.c.b16 %v1666, %v1662
    %v1835 = vpack.c.b16 %v1667, %v1663
    %v1836 = vpack.c.b16 %v1672, %v1668
    %v1837 = vpack.c.b16 %v1673, %v1669
    %v1838 = vpack.c.b16 %v1674, %v1670
    %v1839 = vpack.c.b16 %v1675, %v1671
    %v1840 = vpack.c.b16 %v1680, %v1676
    %v1841 = vpack.c.b16 %v1681, %v1677
    %v1842 = vpack.c.b16 %v1682, %v1678
    %v1843 = vpack.c.b16 %v1683, %v1679
    %v1844 = vpack.c.b16 %v1688, %v1684
    %v1845 = vpack.c.b16 %v1689, %v1685
    %v1846 = vpack.c.b16 %v1690, %v1686
    %v1847 = vpack.c.b16 %v1691, %v1687
    %v1848 = vpack.c.b16 %v1696, %v1692
    %v1849 = vpack.c.b16 %v1697, %v1693
    %v1850 = vpack.c.b16 %v1698, %v1694
    %v1851 = vpack.c.b16 %v1699, %v1695
    %v1852 = vpack.c.b16 %v1704, %v1700
    %v1853 = vpack.c.b16 %v1705, %v1701
    %v1854 = vpack.c.b16 %v1706, %v1702
    %v1855 = vpack.c.b16 %v1707, %v1703
    %v1856 = vpack.c.b16 %v1712, %v1708
    %v1857 = vpack.c.b16 %v1713, %v1709
    %v1858 = vpack.c.b16 %v1714, %v1710
    %v1859 = vpack.c.b16 %v1715, %v1711
    %v1860 = vpack.c.b16 %v1720, %v1716
    %v1861 = vpack.c.b16 %v1721, %v1717
    %v1862 = vpack.c.b16 %v1722, %v1718
    %v1863 = vpack.c.b16 %v1723, %v1719
    %v1864 = vpack.c.b16 %v1728, %v1724
    %v1865 = vpack.c.b16 %v1729, %v1725
    %v1866 = vpack.c.b16 %v1730, %v1726
    %v1867 = vpack.c.b16 %v1731, %v1727
    %v1868 = vpack.c.b16 %v1736, %v1732
    %v1869 = vpack.c.b16 %v1737, %v1733
    %v1870 = vpack.c.b16 %v1738, %v1734
    %v1871 = vpack.c.b16 %v1739, %v1735
    %v1872 = vpack.c.b16 %v1744, %v1740
    %v1873 = vpack.c.b16 %v1745, %v1741
    %v1874 = vpack.c.b16 %v1746, %v1742
    %v1875 = vpack.c.b16 %v1747, %v1743
    %2004 = vmatprep.subr.bf16.mxu0 %v1777
    %2005 = vmatpush1.bf16.msra.mxu0 %v1776
    %2006 = vmatprep.subr.bf16.mxu0 %v1773
    %2007 = vmatpush1.bf16.msra.mxu0 %v1772
    %2008 = vmatprep.subr.bf16.mxu0 %v1769
    %2009 = vmatpush1.bf16.msra.mxu0 %v1768
    %2010 = vmatprep.subr.bf16.mxu0 %v1765
    %2011 = vmatpush1.bf16.msra.mxu0 %v1764
    %2012 = vmatprep.subr.bf16.mxu0 %v1761
    %2013 = vmatpush1.bf16.msra.mxu0 %v1760
    %2014 = vmatprep.subr.bf16.mxu0 %v1757
    %2015 = vmatpush1.bf16.msra.mxu0 %v1756
    %2016 = vmatprep.subr.bf16.mxu0 %v1753
    %2017 = vmatpush1.bf16.msra.mxu0 %v1752
    %2018 = vmatprep.subr.bf16.mxu0 %v1749
    %2019 = vmatpush1.bf16.msra.mxu0 %v1748
    %2020 = vmatprep.subr.bf16.mxu0 %v1809
    %2021 = vmatpush2.bf16.msra.mxu0 %v1808
    %2022 = vmatprep.subr.bf16.mxu0 %v1805
    %2023 = vmatpush2.bf16.msra.mxu0 %v1804
    %2024 = vmatprep.subr.bf16.mxu0 %v1801
    %2025 = vmatpush2.bf16.msra.mxu0 %v1800
    %2026 = vmatprep.subr.bf16.mxu0 %v1797
    %2027 = vmatpush2.bf16.msra.mxu0 %v1796
    %2028 = vmatprep.subr.bf16.mxu0 %v1793
    %2029 = vmatpush2.bf16.msra.mxu0 %v1792
    %2030 = vmatprep.subr.bf16.mxu0 %v1789
    %2031 = vmatpush2.bf16.msra.mxu0 %v1788
    %2032 = vmatprep.subr.bf16.mxu0 %v1785
    %2033 = vmatpush2.bf16.msra.mxu0 %v1784
    %2034 = vmatprep.subr.bf16.mxu0 %v1781
    %2035 = vmatpush2.bf16.msra.mxu0 %v1780
    %2036 = vmatprep.mubr.bf16.mxu0 %v1211
    %2037 = vmatmul.mubr.bf16.gmra.mxu0 %v1210
    %v2038 = vpop.f32.mrf.mxu0
    %v2039 = vadd.f32 %v1347, %v2038
    %v2040 = vpop.f32.mrf.mxu0
    %v2041 = vadd.f32 %v1351, %v2040
    %v2042 = vpop.f32.mrf.mxu0
    %v2043 = vadd.f32 %v1347, %v2042
    %v2044 = vpop.f32.mrf.mxu0
    %v2045 = vadd.f32 %v1351, %v2044
    %2046 = vdwg.mxu0
    %2047 = vmatprep.subr.bf16.mxu0 %v1841
    %2048 = vmatpush1.bf16.msra.mxu0 %v1840
    %2049 = vmatprep.subr.bf16.mxu0 %v1837
    %2050 = vmatpush1.bf16.msra.mxu0 %v1836
    %2051 = vmatprep.subr.bf16.mxu0 %v1833
    %2052 = vmatpush1.bf16.msra.mxu0 %v1832
    %2053 = vmatprep.subr.bf16.mxu0 %v1829
    %2054 = vmatpush1.bf16.msra.mxu0 %v1828
    %2055 = vmatprep.subr.bf16.mxu0 %v1825
    %2056 = vmatpush1.bf16.msra.mxu0 %v1824
    %2057 = vmatprep.subr.bf16.mxu0 %v1821
    %2058 = vmatpush1.bf16.msra.mxu0 %v1820
    %2059 = vmatprep.subr.bf16.mxu0 %v1817
    %2060 = vmatpush1.bf16.msra.mxu0 %v1816
    %2061 = vmatprep.subr.bf16.mxu0 %v1813
    %2062 = vmatpush1.bf16.msra.mxu0 %v1812
    %2063 = vmatprep.subr.bf16.mxu0 %v1873
    %2064 = vmatpush2.bf16.msra.mxu0 %v1872
    %2065 = vmatprep.subr.bf16.mxu0 %v1869
    %2066 = vmatpush2.bf16.msra.mxu0 %v1868
    %2067 = vmatprep.subr.bf16.mxu0 %v1865
    %2068 = vmatpush2.bf16.msra.mxu0 %v1864
    %2069 = vmatprep.subr.bf16.mxu0 %v1861
    %2070 = vmatpush2.bf16.msra.mxu0 %v1860
    %2071 = vmatprep.subr.bf16.mxu0 %v1857
    %2072 = vmatpush2.bf16.msra.mxu0 %v1856
    %2073 = vmatprep.subr.bf16.mxu0 %v1853
    %2074 = vmatpush2.bf16.msra.mxu0 %v1852
    %2075 = vmatprep.subr.bf16.mxu0 %v1849
    %2076 = vmatpush2.bf16.msra.mxu0 %v1848
    %2077 = vmatprep.subr.bf16.mxu0 %v1845
    %2078 = vmatpush2.bf16.msra.mxu0 %v1844
    %2079 = vmatprep.mubr.bf16.mxu0 %v1213
    %2080 = vmatmul.mubr.bf16.gmra.mxu0 %v1212
    %v2081 = vpop.f32.mrf.mxu0
    %v2082 = vadd.f32 %v2039, %v2081
    %v2083 = vpop.f32.mrf.mxu0
    %v2084 = vadd.f32 %v2041, %v2083
    %v2085 = vpop.f32.mrf.mxu0
    %v2086 = vadd.f32 %v2043, %v2085
    %v2087 = vpop.f32.mrf.mxu0
    %v2088 = vadd.f32 %v2045, %v2087
    %2089 = vdwg.mxu0
    %2090 = vmatprep.subr.bf16.mxu0 %v1779
    %2091 = vmatpush1.bf16.msra.mxu0 %v1778
    %2092 = vmatprep.subr.bf16.mxu0 %v1775
    %2093 = vmatpush1.bf16.msra.mxu0 %v1774
    %2094 = vmatprep.subr.bf16.mxu0 %v1771
    %2095 = vmatpush1.bf16.msra.mxu0 %v1770
    %2096 = vmatprep.subr.bf16.mxu0 %v1767
    %2097 = vmatpush1.bf16.msra.mxu0 %v1766
    %2098 = vmatprep.subr.bf16.mxu0 %v1763
    %2099 = vmatpush1.bf16.msra.mxu0 %v1762
    %2100 = vmatprep.subr.bf16.mxu0 %v1759
    %2101 = vmatpush1.bf16.msra.mxu0 %v1758
    %2102 = vmatprep.subr.bf16.mxu0 %v1755
    %2103 = vmatpush1.bf16.msra.mxu0 %v1754
    %2104 = vmatprep.subr.bf16.mxu0 %v1751
    %2105 = vmatpush1.bf16.msra.mxu0 %v1750
    %2106 = vmatprep.subr.bf16.mxu0 %v1811
    %2107 = vmatpush2.bf16.msra.mxu0 %v1810
    %2108 = vmatprep.subr.bf16.mxu0 %v1807
    %2109 = vmatpush2.bf16.msra.mxu0 %v1806
    %2110 = vmatprep.subr.bf16.mxu0 %v1803
    %2111 = vmatpush2.bf16.msra.mxu0 %v1802
    %2112 = vmatprep.subr.bf16.mxu0 %v1799
    %2113 = vmatpush2.bf16.msra.mxu0 %v1798
    %2114 = vmatprep.subr.bf16.mxu0 %v1795
    %2115 = vmatpush2.bf16.msra.mxu0 %v1794
    %2116 = vmatprep.subr.bf16.mxu0 %v1791
    %2117 = vmatpush2.bf16.msra.mxu0 %v1790
    %2118 = vmatprep.subr.bf16.mxu0 %v1787
    %2119 = vmatpush2.bf16.msra.mxu0 %v1786
    %2120 = vmatprep.subr.bf16.mxu0 %v1783
    %2121 = vmatpush2.bf16.msra.mxu0 %v1782
    %2122 = vmatprep.mubr.bf16.mxu0 %v1211
    %2123 = vmatmul.mubr.bf16.gmra.mxu0 %v1210
    %v2124 = vpop.f32.mrf.mxu0
    %v2125 = vadd.f32 %v1355, %v2124
    %v2126 = vpop.f32.mrf.mxu0
    %v2127 = vadd.f32 %v1359, %v2126
    %v2128 = vpop.f32.mrf.mxu0
    %v2129 = vadd.f32 %v1355, %v2128
    %v2130 = vpop.f32.mrf.mxu0
    %v2131 = vadd.f32 %v1359, %v2130
    %2132 = vdwg.mxu0
    %2133 = vmatprep.subr.bf16.mxu0 %v1843
    %2134 = vmatpush1.bf16.msra.mxu0 %v1842
    %2135 = vmatprep.subr.bf16.mxu0 %v1839
    %2136 = vmatpush1.bf16.msra.mxu0 %v1838
    %2137 = vmatprep.subr.bf16.mxu0 %v1835
    %2138 = vmatpush1.bf16.msra.mxu0 %v1834
    %2139 = vmatprep.subr.bf16.mxu0 %v1831
    %2140 = vmatpush1.bf16.msra.mxu0 %v1830
    %2141 = vmatprep.subr.bf16.mxu0 %v1827
    %2142 = vmatpush1.bf16.msra.mxu0 %v1826
    %2143 = vmatprep.subr.bf16.mxu0 %v1823
    %2144 = vmatpush1.bf16.msra.mxu0 %v1822
    %2145 = vmatprep.subr.bf16.mxu0 %v1819
    %2146 = vmatpush1.bf16.msra.mxu0 %v1818
    %2147 = vmatprep.subr.bf16.mxu0 %v1815
    %2148 = vmatpush1.bf16.msra.mxu0 %v1814
    %2149 = vmatprep.subr.bf16.mxu0 %v1875
    %2150 = vmatpush2.bf16.msra.mxu0 %v1874
    %2151 = vmatprep.subr.bf16.mxu0 %v1871
    %2152 = vmatpush2.bf16.msra.mxu0 %v1870
    %2153 = vmatprep.subr.bf16.mxu0 %v1867
    %2154 = vmatpush2.bf16.msra.mxu0 %v1866
    %2155 = vmatprep.subr.bf16.mxu0 %v1863
    %2156 = vmatpush2.bf16.msra.mxu0 %v1862
    %2157 = vmatprep.subr.bf16.mxu0 %v1859
    %2158 = vmatpush2.bf16.msra.mxu0 %v1858
    %2159 = vmatprep.subr.bf16.mxu0 %v1855
    %2160 = vmatpush2.bf16.msra.mxu0 %v1854
    %2161 = vmatprep.subr.bf16.mxu0 %v1851
    %2162 = vmatpush2.bf16.msra.mxu0 %v1850
    %2163 = vmatprep.subr.bf16.mxu0 %v1847
    %2164 = vmatpush2.bf16.msra.mxu0 %v1846
    %2165 = vmatprep.mubr.bf16.mxu0 %v1213
    %2166 = vmatmul.mubr.bf16.gmra.mxu0 %v1212
    %v2167 = vpop.f32.mrf.mxu0
    %v2168 = vadd.f32 %v2125, %v2167
    %v2169 = vpop.f32.mrf.mxu0
    %v2170 = vadd.f32 %v2127, %v2169
    %v2171 = vpop.f32.mrf.mxu0
    %v2172 = vadd.f32 %v2129, %v2171
    %v2173 = vpop.f32.mrf.mxu0
    %v2174 = vadd.f32 %v2131, %v2173
    %2175 = vdwg.mxu0
    %v2176 = vmax.f32 %v2082, 0.0
    %v2177 = vmax.f32 %v2084, 0.0
    %v2178 = vmax.f32 %v2168, 0.0
    %v2179 = vmax.f32 %v2170, 0.0
    %v2180 = vmax.f32 %v2086, 0.0
    %v2181 = vmax.f32 %v2088, 0.0
    %v2182 = vmax.f32 %v2172, 0.0
    %v2183 = vmax.f32 %v2174, 0.0
    %v2184 = vpack.c.bf16 %v2180, %v2176
    %v2185 = vpack.c.bf16 %v2181, %v2177
    %v2186 = vpack.c.bf16 %v2182, %v2178
    %v2187 = vpack.c.bf16 %v2183, %v2179
    %v2188 = vld [vmem:[%s7] sm:$0xf]
    %v2189 = vld [vmem:[%s7 + $0x4] sm:$0xf]
    %v2190 = vld [vmem:[%s7 + $0x8] sm:$0xf]
    %v2191 = vld [vmem:[%s7 + $0xc] sm:$0xf]
    %v2192 = vld [vmem:[%s7 + $0x10] sm:$0xf]
    %v2193 = vld [vmem:[%s7 + $0x14] sm:$0xf]
    %v2194 = vld [vmem:[%s7 + $0x18] sm:$0xf]
    %v2195 = vld [vmem:[%s7 + $0x1c] sm:$0xf]
    %v2196 = vld [vmem:[%s7 + $0x20] sm:$0xf]
    %v2197 = vld [vmem:[%s7 + $0x24] sm:$0xf]
    %v2198 = vld [vmem:[%s7 + $0x28] sm:$0xf]
    %v2199 = vld [vmem:[%s7 + $0x2c] sm:$0xf]
    %v2200 = vld [vmem:[%s7 + $0x30] sm:$0xf]
    %v2201 = vld [vmem:[%s7 + $0x34] sm:$0xf]
    %v2202 = vld [vmem:[%s7 + $0x38] sm:$0xf]
    %v2203 = vld [vmem:[%s7 + $0x3c] sm:$0xf]
    %v2204 = vld [vmem:[%s7 + $0x40] sm:$0xf]
    %v2205 = vld [vmem:[%s7 + $0x44] sm:$0xf]
    %v2206 = vld [vmem:[%s7 + $0x48] sm:$0xf]
    %v2207 = vld [vmem:[%s7 + $0x4c] sm:$0xf]
    %v2208 = vld [vmem:[%s7 + $0x50] sm:$0xf]
    %v2209 = vld [vmem:[%s7 + $0x54] sm:$0xf]
    %v2210 = vld [vmem:[%s7 + $0x58] sm:$0xf]
    %v2211 = vld [vmem:[%s7 + $0x5c] sm:$0xf]
    %v2212 = vld [vmem:[%s7 + $0x60] sm:$0xf]
    %v2213 = vld [vmem:[%s7 + $0x64] sm:$0xf]
    %v2214 = vld [vmem:[%s7 + $0x68] sm:$0xf]
    %v2215 = vld [vmem:[%s7 + $0x6c] sm:$0xf]
    %v2216 = vld [vmem:[%s7 + $0x70] sm:$0xf]
    %v2217 = vld [vmem:[%s7 + $0x74] sm:$0xf]
    %v2218 = vld [vmem:[%s7 + $0x78] sm:$0xf]
    %v2219 = vld [vmem:[%s7 + $0x7c] sm:$0xf]
    %v2220 = vld [vmem:[%s7 + $0x80] sm:$0xf]
    %v2221 = vld [vmem:[%s7 + $0x84] sm:$0xf]
    %v2222 = vld [vmem:[%s7 + $0x88] sm:$0xf]
    %v2223 = vld [vmem:[%s7 + $0x8c] sm:$0xf]
    %v2224 = vld [vmem:[%s7 + $0x90] sm:$0xf]
    %v2225 = vld [vmem:[%s7 + $0x94] sm:$0xf]
    %v2226 = vld [vmem:[%s7 + $0x98] sm:$0xf]
    %v2227 = vld [vmem:[%s7 + $0x9c] sm:$0xf]
    %v2228 = vld [vmem:[%s7 + $0xa0] sm:$0xf]
    %v2229 = vld [vmem:[%s7 + $0xa4] sm:$0xf]
    %v2230 = vld [vmem:[%s7 + $0xa8] sm:$0xf]
    %v2231 = vld [vmem:[%s7 + $0xac] sm:$0xf]
    %v2232 = vld [vmem:[%s7 + $0xb0] sm:$0xf]
    %v2233 = vld [vmem:[%s7 + $0xb4] sm:$0xf]
    %v2234 = vld [vmem:[%s7 + $0xb8] sm:$0xf]
    %v2235 = vld [vmem:[%s7 + $0xbc] sm:$0xf]
    %v2236 = vld [vmem:[%s7 + $0xc0] sm:$0xf]
    %v2237 = vld [vmem:[%s7 + $0xc4] sm:$0xf]
    %v2238 = vld [vmem:[%s7 + $0xc8] sm:$0xf]
    %v2239 = vld [vmem:[%s7 + $0xcc] sm:$0xf]
    %v2240 = vld [vmem:[%s7 + $0xd0] sm:$0xf]
    %v2241 = vld [vmem:[%s7 + $0xd4] sm:$0xf]
    %v2242 = vld [vmem:[%s7 + $0xd8] sm:$0xf]
    %v2243 = vld [vmem:[%s7 + $0xdc] sm:$0xf]
    %v2244 = vld [vmem:[%s7 + $0xe0] sm:$0xf]
    %v2245 = vld [vmem:[%s7 + $0xe4] sm:$0xf]
    %v2246 = vld [vmem:[%s7 + $0xe8] sm:$0xf]
    %v2247 = vld [vmem:[%s7 + $0xec] sm:$0xf]
    %v2248 = vld [vmem:[%s7 + $0xf0] sm:$0xf]
    %v2249 = vld [vmem:[%s7 + $0xf4] sm:$0xf]
    %v2250 = vld [vmem:[%s7 + $0xf8] sm:$0xf]
    %v2251 = vld [vmem:[%s7 + $0xfc] sm:$0xf]
    %v2252 = vld [vmem:[%s8] sm:$0x1]
    %v2254 = vlaneseq
    %v2255 = vshrl.u32 %v2254, 7
    %v2256 = vsub.s32 0, %v2255
    %v2257 = vrot.slane %v2252, %v2256
    %v2323 = vunpack.c.l.b16 %v2188
    %v2324 = vunpack.c.l.b16 %v2189
    %v2325 = vunpack.c.l.b16 %v2190
    %v2326 = vunpack.c.l.b16 %v2191
    %v2327 = vunpack.c.l.b16 %v2192
    %v2328 = vunpack.c.l.b16 %v2193
    %v2329 = vunpack.c.l.b16 %v2194
    %v2330 = vunpack.c.l.b16 %v2195
    %v2331 = vunpack.c.l.b16 %v2196
    %v2332 = vunpack.c.l.b16 %v2197
    %v2333 = vunpack.c.l.b16 %v2198
    %v2334 = vunpack.c.l.b16 %v2199
    %v2335 = vunpack.c.l.b16 %v2200
    %v2336 = vunpack.c.l.b16 %v2201
    %v2337 = vunpack.c.l.b16 %v2202
    %v2338 = vunpack.c.l.b16 %v2203
    %v2339 = vunpack.c.l.b16 %v2204
    %v2340 = vunpack.c.l.b16 %v2205
    %v2341 = vunpack.c.l.b16 %v2206
    %v2342 = vunpack.c.l.b16 %v2207
    %v2343 = vunpack.c.l.b16 %v2208
    %v2344 = vunpack.c.l.b16 %v2209
    %v2345 = vunpack.c.l.b16 %v2210
    %v2346 = vunpack.c.l.b16 %v2211
    %v2347 = vunpack.c.l.b16 %v2212
    %v2348 = vunpack.c.l.b16 %v2213
    %v2349 = vunpack.c.l.b16 %v2214
    %v2350 = vunpack.c.l.b16 %v2215
    %v2351 = vunpack.c.l.b16 %v2216
    %v2352 = vunpack.c.l.b16 %v2217
    %v2353 = vunpack.c.l.b16 %v2218
    %v2354 = vunpack.c.l.b16 %v2219
    %v2355 = vunpack.c.l.b16 %v2220
    %v2356 = vunpack.c.l.b16 %v2221
    %v2357 = vunpack.c.l.b16 %v2222
    %v2358 = vunpack.c.l.b16 %v2223
    %v2359 = vunpack.c.l.b16 %v2224
    %v2360 = vunpack.c.l.b16 %v2225
    %v2361 = vunpack.c.l.b16 %v2226
    %v2362 = vunpack.c.l.b16 %v2227
    %v2363 = vunpack.c.l.b16 %v2228
    %v2364 = vunpack.c.l.b16 %v2229
    %v2365 = vunpack.c.l.b16 %v2230
    %v2366 = vunpack.c.l.b16 %v2231
    %v2367 = vunpack.c.l.b16 %v2232
    %v2368 = vunpack.c.l.b16 %v2233
    %v2369 = vunpack.c.l.b16 %v2234
    %v2370 = vunpack.c.l.b16 %v2235
    %v2371 = vunpack.c.l.b16 %v2236
    %v2372 = vunpack.c.l.b16 %v2237
    %v2373 = vunpack.c.l.b16 %v2238
    %v2374 = vunpack.c.l.b16 %v2239
    %v2375 = vunpack.c.l.b16 %v2240
    %v2376 = vunpack.c.l.b16 %v2241
    %v2377 = vunpack.c.l.b16 %v2242
    %v2378 = vunpack.c.l.b16 %v2243
    %v2379 = vunpack.c.l.b16 %v2244
    %v2380 = vunpack.c.l.b16 %v2245
    %v2381 = vunpack.c.l.b16 %v2246
    %v2382 = vunpack.c.l.b16 %v2247
    %v2383 = vunpack.c.l.b16 %v2248
    %v2384 = vunpack.c.l.b16 %v2249
    %v2385 = vunpack.c.l.b16 %v2250
    %v2386 = vunpack.c.l.b16 %v2251
    %v2387 = vpack.c.b16 %v2324, %v2323
    %v2388 = vpack.c.b16 %v2326, %v2325
    %v2389 = vpack.c.b16 %v2328, %v2327
    %v2390 = vpack.c.b16 %v2330, %v2329
    %v2391 = vpack.c.b16 %v2332, %v2331
    %v2392 = vpack.c.b16 %v2334, %v2333
    %v2393 = vpack.c.b16 %v2336, %v2335
    %v2394 = vpack.c.b16 %v2338, %v2337
    %v2395 = vpack.c.b16 %v2340, %v2339
    %v2396 = vpack.c.b16 %v2342, %v2341
    %v2397 = vpack.c.b16 %v2344, %v2343
    %v2398 = vpack.c.b16 %v2346, %v2345
    %v2399 = vpack.c.b16 %v2348, %v2347
    %v2400 = vpack.c.b16 %v2350, %v2349
    %v2401 = vpack.c.b16 %v2352, %v2351
    %v2402 = vpack.c.b16 %v2354, %v2353
    %v2403 = vpack.c.b16 %v2356, %v2355
    %v2404 = vpack.c.b16 %v2358, %v2357
    %v2405 = vpack.c.b16 %v2360, %v2359
    %v2406 = vpack.c.b16 %v2362, %v2361
    %v2407 = vpack.c.b16 %v2364, %v2363
    %v2408 = vpack.c.b16 %v2366, %v2365
    %v2409 = vpack.c.b16 %v2368, %v2367
    %v2410 = vpack.c.b16 %v2370, %v2369
    %v2411 = vpack.c.b16 %v2372, %v2371
    %v2412 = vpack.c.b16 %v2374, %v2373
    %v2413 = vpack.c.b16 %v2376, %v2375
    %v2414 = vpack.c.b16 %v2378, %v2377
    %v2415 = vpack.c.b16 %v2380, %v2379
    %v2416 = vpack.c.b16 %v2382, %v2381
    %v2417 = vpack.c.b16 %v2384, %v2383
    %v2418 = vpack.c.b16 %v2386, %v2385
    %2451 = vmatprep.subr.bf16.mxu0 0
    %2452 = vmatpush1.bf16.msra.mxu0 %v2394
    %2453 = vmatprep.subr.bf16.mxu0 0
    %2454 = vmatpush1.bf16.msra.mxu0 %v2393
    %2455 = vmatprep.subr.bf16.mxu0 0
    %2456 = vmatpush1.bf16.msra.mxu0 %v2392
    %2457 = vmatprep.subr.bf16.mxu0 0
    %2458 = vmatpush1.bf16.msra.mxu0 %v2391
    %2459 = vmatprep.subr.bf16.mxu0 0
    %2460 = vmatpush1.bf16.msra.mxu0 %v2390
    %2461 = vmatprep.subr.bf16.mxu0 0
    %2462 = vmatpush1.bf16.msra.mxu0 %v2389
    %2463 = vmatprep.subr.bf16.mxu0 0
    %2464 = vmatpush1.bf16.msra.mxu0 %v2388
    %2465 = vmatprep.subr.bf16.mxu0 0
    %2466 = vmatpush1.bf16.msra.mxu0 %v2387
    %2467 = vmatprep.subr.bf16.mxu0 0
    %2468 = vmatpush2.bf16.msra.mxu0 %v2402
    %2469 = vmatprep.subr.bf16.mxu0 0
    %2470 = vmatpush2.bf16.msra.mxu0 %v2401
    %2471 = vmatprep.subr.bf16.mxu0 0
    %2472 = vmatpush2.bf16.msra.mxu0 %v2400
    %2473 = vmatprep.subr.bf16.mxu0 0
    %2474 = vmatpush2.bf16.msra.mxu0 %v2399
    %2475 = vmatprep.subr.bf16.mxu0 0
    %2476 = vmatpush2.bf16.msra.mxu0 %v2398
    %2477 = vmatprep.subr.bf16.mxu0 0
    %2478 = vmatpush2.bf16.msra.mxu0 %v2397
    %2479 = vmatprep.subr.bf16.mxu0 0
    %2480 = vmatpush2.bf16.msra.mxu0 %v2396
    %2481 = vmatprep.subr.bf16.mxu0 0
    %2482 = vmatpush2.bf16.msra.mxu0 %v2395
    %2483 = vmatprep.mubr.bf16.mxu0 %v2185
    %2484 = vmatmul.mubr.bf16.gmra.mxu0 %v2184
    %v2485 = vpop.f32.mrf.mxu0
    %v2486 = vadd.f32 %v2257, %v2485
    %v2487 = vpop.f32.mrf.mxu0
    %v2488 = vpop.f32.mrf.mxu0
    %v2489 = vadd.f32 %v2257, %v2488
    %v2490 = vpop.f32.mrf.mxu0
    %2491 = vdwg.mxu0
    %2492 = vmatprep.subr.bf16.mxu0 0
    %2493 = vmatpush1.bf16.msra.mxu0 %v2410
    %2494 = vmatprep.subr.bf16.mxu0 0
    %2495 = vmatpush1.bf16.msra.mxu0 %v2409
    %2496 = vmatprep.subr.bf16.mxu0 0
    %2497 = vmatpush1.bf16.msra.mxu0 %v2408
    %2498 = vmatprep.subr.bf16.mxu0 0
    %2499 = vmatpush1.bf16.msra.mxu0 %v2407
    %2500 = vmatprep.subr.bf16.mxu0 0
    %2501 = vmatpush1.bf16.msra.mxu0 %v2406
    %2502 = vmatprep.subr.bf16.mxu0 0
    %2503 = vmatpush1.bf16.msra.mxu0 %v2405
    %2504 = vmatprep.subr.bf16.mxu0 0
    %2505 = vmatpush1.bf16.msra.mxu0 %v2404
    %2506 = vmatprep.subr.bf16.mxu0 0
    %2507 = vmatpush1.bf16.msra.mxu0 %v2403
    %2508 = vmatprep.subr.bf16.mxu0 0
    %2509 = vmatpush2.bf16.msra.mxu0 %v2418
    %2510 = vmatprep.subr.bf16.mxu0 0
    %2511 = vmatpush2.bf16.msra.mxu0 %v2417
    %2512 = vmatprep.subr.bf16.mxu0 0
    %2513 = vmatpush2.bf16.msra.mxu0 %v2416
    %2514 = vmatprep.subr.bf16.mxu0 0
    %2515 = vmatpush2.bf16.msra.mxu0 %v2415
    %2516 = vmatprep.subr.bf16.mxu0 0
    %2517 = vmatpush2.bf16.msra.mxu0 %v2414
    %2518 = vmatprep.subr.bf16.mxu0 0
    %2519 = vmatpush2.bf16.msra.mxu0 %v2413
    %2520 = vmatprep.subr.bf16.mxu0 0
    %2521 = vmatpush2.bf16.msra.mxu0 %v2412
    %2522 = vmatprep.subr.bf16.mxu0 0
    %2523 = vmatpush2.bf16.msra.mxu0 %v2411
    %2524 = vmatprep.mubr.bf16.mxu0 %v2187
    %2525 = vmatmul.mubr.bf16.gmra.mxu0 %v2186
    %v2526 = vpop.f32.mrf.mxu0
    %v2527 = vadd.f32 %v2486, %v2526
    %v2528 = vpop.f32.mrf.mxu0
    %v2529 = vpop.f32.mrf.mxu0
    %v2530 = vadd.f32 %v2489, %v2529
    %v2531 = vpop.f32.mrf.mxu0
    %2532 = vdwg.mxu0
    %v2533 = vlaneseq
    %v2534 = vand.u32 %v2533, 127
    %vm2535 = vcmp.lt.s32.totalorder %v2534, 2
    %v2536 = vtanh.pop %v2527
    %v2537 = vtanh.pop %v2530
    %v2538 = vmax.f32 %v2527, -20.0
    %v2539 = vmax.f32 %v2530, -20.0
    %v2540 = vmin.f32 %v2538, 2.0
    %v2541 = vmin.f32 %v2539, 2.0
    %v2542 = vsel %vm2535, %v2536, %v2540
    %v2543 = vsel %vm2535, %v2537, %v2541
    %vm2544 = vcmask 31744
    %2545 = vst.msk [vmem:[%s9] sm:$0xff] %vm2544, %v2542
    %2546 = vst.msk [vmem:[%s9 + $0x8] sm:$0xff] %vm2544, %v2543
    // Predicated region
    $region46: #{tpu_custom_call.1} parent=1 // pred_check
      _
    $region47: #{tpu_custom_call.1} parent=1 // pred_check_branch
      %2548 = sbr.rel (0) target = $region49
    $region48: #{tpu_custom_call.1} parent=1 // pred_region
      _
    $region49: #{tpu_custom_call.1} parent=1 // pred_fallthru
      _
    // Predicated region
    $region50: #{tpu_custom_call.1} parent=1 // pred_check
      _
    $region51: #{tpu_custom_call.1} parent=1 // pred_check_branch
      %2550 = sbr.rel (0) target = $region53
    $region52: #{tpu_custom_call.1} parent=1 // pred_region
      _
    $region53: #{tpu_custom_call.1} parent=1 // pred_fallthru
      _
    %2551 = vsyncpa [#allocation3], 1
    %2552 = vsyncpa [#allocation5], 1

// kernel: tpu_custom_call.1
$region0: #{tpu_custom_call.1}
  #allocation0 [shape = 'u32[]', space=smem, size = 0x4, offset = 0x4, fixed_abs, tag = 'smem constant byte address 0x4 - core index']
  #allocation1 [shape = 'u32[144,128]{1,0:T(1,128)}', space=vmem, size = 0x12000, scoped, tag = 'internal scratch']
  %s0 = inlined_call_operand.vmem [shape: bf16[16,32], index: 0, kind: input, shape index: {}]
  %s1 = inlined_call_operand.vmem [shape: bf16[32,512], index: 1, kind: input, shape index: {}]
  %s2 = inlined_call_operand.vmem [shape: f32[1,512], index: 2, kind: input, shape index: {}]
  %s3 = inlined_call_operand.hbm [shape: bf16[512,512], index: 3, kind: input, shape index: {}]
  %s4 = inlined_call_operand.vmem [shape: f32[1,512], index: 4, kind: input, shape index: {}]
  %s5 = inlined_call_operand.hbm [shape: bf16[512,512], index: 5, kind: input, shape index: {}]
  %s6 = inlined_call_operand.vmem [shape: f32[1,512], index: 6, kind: input, shape index: {}]
  %s7 = inlined_call_operand.vmem [shape: bf16[512,4], index: 7, kind: input, shape index: {}]
  %s8 = inlined_call_operand.vmem [shape: f32[1,4], index: 8, kind: input, shape index: {}]
  %s9 = inlined_call_operand.vmem [shape: f32[16,4], index: 9, kind: output, shape index: {}]
  %s10 = sld [smem:[#allocation0]]
  $region54: #{tpu_custom_call.1} parent=0
    _
  %s12 = ssub.s32 1, %s10
  %s13 = scalar_select 0, %s12, %s10
  $region1: #{tpu_custom_call.1} parent=0
    #allocation2 [shape = 'u8[524288]{0}', space=vmem, size = 0x80000, scoped, tag = 'input window, operand 3, single buffered']
    #allocation3 [shape = 's32[1]{0}', space=sflag, size = 0x4, scoped, tag = 'scoped memory for tpu_custom_call.1']
    #allocation4 [shape = 'u8[524288]{0}', space=vmem, size = 0x80000, scoped, tag = 'input window, operand 5, single buffered']
    #allocation5 [shape = 's32[1]{0}', space=sflag, size = 0x4, scoped, tag = 'scoped memory for tpu_custom_call.1']
    %14 = vsyncpa [#allocation3], 0
    %15 = vsyncpa [#allocation5], 0
    // Predicated region
    $region2: #{tpu_custom_call.1} parent=1 // pred_check
      _
    $region3: #{tpu_custom_call.1} parent=1 // pred_check_branch
      %17 = sbr.rel (0) target = $region5
    $region4: #{tpu_custom_call.1} parent=1 // pred_region
      _
    $region5: #{tpu_custom_call.1} parent=1 // pred_fallthru
      _
    // Predicated region
    $region6: #{tpu_custom_call.1} parent=1 // pred_check
      _
    $region7: #{tpu_custom_call.1} parent=1 // pred_check_branch
      %19 = sbr.rel (0) target = $region9
    $region8: #{tpu_custom_call.1} parent=1 // pred_region
      _
    $region9: #{tpu_custom_call.1} parent=1 // pred_fallthru
      _
    // Predicated region
    $region10: #{tpu_custom_call.1} parent=1 // pred_check
      _
    $region11: #{tpu_custom_call.1} parent=1 // pred_check_branch
      %21 = sbr.rel (0) target = $region13
    $region12: #{tpu_custom_call.1} parent=1 // pred_region
      _
    $region13: #{tpu_custom_call.1} parent=1 // pred_fallthru
      _
    // Predicated region
    $region14: #{tpu_custom_call.1} parent=1 // pred_check
      _
    $region15: #{tpu_custom_call.1} parent=1 // pred_check_branch
      %23 = sbr.rel (0) target = $region17
    $region16: #{tpu_custom_call.1} parent=1 // pred_region
      %s25 = ssub.s32 16384, 16384
      %26 = vsyncadd [#allocation3], %s25
      %s27 = sshll.u32 [#allocation2], 4
      %s28 = int_to_ptr.vmem [resolvable:$true] %s27
      %33 = dma.hbm_to_vmem [thread:$0]  %s3, 16384, %s28, [#allocation3], 256, 256, 16
    $region17: #{tpu_custom_call.1} parent=1 // pred_fallthru
      _
    // Predicated region
    $region18: #{tpu_custom_call.1} parent=1 // pred_check
      _
    $region19: #{tpu_custom_call.1} parent=1 // pred_check_branch
      %35 = sbr.rel (0) target = $region21
    $region20: #{tpu_custom_call.1} parent=1 // pred_region
      _
    $region21: #{tpu_custom_call.1} parent=1 // pred_fallthru
      _
    // Predicated region
    $region22: #{tpu_custom_call.1} parent=1 // pred_check
      _
    $region23: #{tpu_custom_call.1} parent=1 // pred_check_branch
      %37 = sbr.rel (0) target = $region25
    $region24: #{tpu_custom_call.1} parent=1 // pred_region
      %s39 = ssub.s32 16384, 16384
      %40 = vsyncadd [#allocation5], %s39
      %s41 = sshll.u32 [#allocation4], 4
      %s42 = int_to_ptr.vmem [resolvable:$true] %s41
      %47 = dma.hbm_to_vmem [thread:$0]  %s5, 16384, %s42, [#allocation5], 256, 256, 16
    $region25: #{tpu_custom_call.1} parent=1 // pred_fallthru
      _
    // Predicated region
    $region26: #{tpu_custom_call.1} parent=1 // pred_check
      _
    $region27: #{tpu_custom_call.1} parent=1 // pred_check_branch
      %49 = sbr.rel (0) target = $region29
    $region28: #{tpu_custom_call.1} parent=1 // pred_region
      _
    $region29: #{tpu_custom_call.1} parent=1 // pred_fallthru
      _
    // Predicated region
    $region30: #{tpu_custom_call.1} parent=1 // pred_check
      _
    $region31: #{tpu_custom_call.1} parent=1 // pred_check_branch
      %51 = sbr.rel (0) target = $region33
    $region32: #{tpu_custom_call.1} parent=1 // pred_region
      _
    $region33: #{tpu_custom_call.1} parent=1 // pred_fallthru
      _
    // Predicated region
    $region34: #{tpu_custom_call.1} parent=1 // pred_check
      _
    $region35: #{tpu_custom_call.1} parent=1 // pred_check_branch
      %53 = sbr.rel (0) target = $region37
    $region36: #{tpu_custom_call.1} parent=1 // pred_region
      _
    $region37: #{tpu_custom_call.1} parent=1 // pred_fallthru
      _
    // Predicated region
    $region38: #{tpu_custom_call.1} parent=1 // pred_check
      _
    $region39: #{tpu_custom_call.1} parent=1 // pred_check_branch
      %55 = sbr.rel (0) target = $region41
    $region40: #{tpu_custom_call.1} parent=1 // pred_region
      %56 = dma.done [#allocation3], 16384
    $region41: #{tpu_custom_call.1} parent=1 // pred_fallthru
      _
    // Predicated region
    $region42: #{tpu_custom_call.1} parent=1 // pred_check
      _
    $region43: #{tpu_custom_call.1} parent=1 // pred_check_branch
      %58 = sbr.rel (0) target = $region45
    $region44: #{tpu_custom_call.1} parent=1 // pred_region
      %59 = dma.done [#allocation5], 16384
    $region45: #{tpu_custom_call.1} parent=1 // pred_fallthru
      _
    %v61 = vld [vmem:[%s0] sm:$0xf]
    %v62 = vld [vmem:[%s0 + $0x4] sm:$0xf]
    %v63 = vld [vmem:[%s1] sm:$0xff]
    %v64 = vld [vmem:[%s1 + $0x8] sm:$0xff]
    %v65 = vld [vmem:[%s1 + $0x10] sm:$0xff]
    %v66 = vld [vmem:[%s1 + $0x18] sm:$0xff]
    %v67 = vld [vmem:[%s1 + $0x20] sm:$0xff]
    %v68 = vld [vmem:[%s1 + $0x28] sm:$0xff]
    %v69 = vld [vmem:[%s1 + $0x30] sm:$0xff]
    %v70 = vld [vmem:[%s1 + $0x38] sm:$0xff]
    %v71 = vld [vmem:[%s2] sm:$0xf]
    %v73 = vlaneseq
    %v74 = vshrl.u32 %v73, 7
    %v75 = vsub.s32 0, %v74
    %v76 = vrot.slane %v71, %v75
    %v77 = vlaneseq
    %v78 = vshrl.u32 %v77, 7
    %v79 = vsub.s32 1, %v78
    %v80 = vrot.slane %v71, %v79
    %v81 = vlaneseq
    %v82 = vshrl.u32 %v81, 7
    %v83 = vsub.s32 2, %v82
    %v84 = vrot.slane %v71, %v83
    %v85 = vlaneseq
    %v86 = vshrl.u32 %v85, 7
    %v87 = vsub.s32 3, %v86
    %v88 = vrot.slane %v71, %v87
    %v95 = vunpack.c.l.b16 %v61
    %v96 = vunpack.c.l.b16 %v62
    %v97 = vpack.c.b16 %v96, %v95
    %v106 = vunpack.c.l.b16 %v63
    %v107 = vunpack.c.h.b16 %v63
    %v108 = vunpack.c.l.b16 %v64
    %v109 = vunpack.c.h.b16 %v64
    %v110 = vunpack.c.l.b16 %v65
    %v111 = vunpack.c.h.b16 %v65
    %v112 = vunpack.c.l.b16 %v66
    %v113 = vunpack.c.h.b16 %v66
    %v114 = vunpack.c.l.b16 %v67
    %v115 = vunpack.c.h.b16 %v67
    %v116 = vunpack.c.l.b16 %v68
    %v117 = vunpack.c.h.b16 %v68
    %v118 = vunpack.c.l.b16 %v69
    %v119 = vunpack.c.h.b16 %v69
    %v120 = vunpack.c.l.b16 %v70
    %v121 = vunpack.c.h.b16 %v70
    %v122 = vpack.c.b16 %v110, %v106
    %v123 = vpack.c.b16 %v111, %v107
    %v124 = vpack.c.b16 %v112, %v108
    %v125 = vpack.c.b16 %v113, %v109
    %v126 = vpack.c.b16 %v118, %v114
    %v127 = vpack.c.b16 %v119, %v115
    %v128 = vpack.c.b16 %v120, %v116
    %v129 = vpack.c.b16 %v121, %v117
    %vm138 = vcmask 261120
    %v140 = vsel %vm138, %v97, 0
    %142 = vmatprep.subr.bf16.mxu0 0
    %143 = vmatpush1.bf16.msra.mxu0 0
    %144 = vmatprep.subr.bf16.mxu0 0
    %145 = vmatpush1.bf16.msra.mxu0 0
    %146 = vmatprep.subr.bf16.mxu0 0
    %147 = vmatpush1.bf16.msra.mxu0 0
    %148 = vmatprep.subr.bf16.mxu0 0
    %149 = vmatpush1.bf16.msra.mxu0 0
    %150 = vmatprep.subr.bf16.mxu0 0
    %151 = vmatpush1.bf16.msra.mxu0 0
    %152 = vmatprep.subr.bf16.mxu0 0
    %153 = vmatpush1.bf16.msra.mxu0 0
    %154 = vmatprep.subr.bf16.mxu0 %v127
    %155 = vmatpush1.bf16.msra.mxu0 %v126
    %156 = vmatprep.subr.bf16.mxu0 %v123
    %157 = vmatpush1.bf16.msra.mxu0 %v122
    %158 = vmatprep.subr.bf16.mxu0 0
    %159 = vmatpush2.bf16.msra.mxu0 0
    %160 = vmatprep.subr.bf16.mxu0 0
    %161 = vmatpush2.bf16.msra.mxu0 0
    %162 = vmatprep.subr.bf16.mxu0 0
    %163 = vmatpush2.bf16.msra.mxu0 0
    %164 = vmatprep.subr.bf16.mxu0 0
    %165 = vmatpush2.bf16.msra.mxu0 0
    %166 = vmatprep.subr.bf16.mxu0 0
    %167 = vmatpush2.bf16.msra.mxu0 0
    %168 = vmatprep.subr.bf16.mxu0 0
    %169 = vmatpush2.bf16.msra.mxu0 0
    %170 = vmatprep.subr.bf16.mxu0 0
    %171 = vmatpush2.bf16.msra.mxu0 0
    %172 = vmatprep.subr.bf16.mxu0 0
    %173 = vmatpush2.bf16.msra.mxu0 0
    %174 = vmatprep.mubr.bf16.mxu0 0
    %175 = vmatmul.mubr.bf16.gmra.mxu0 %v140
    %v176 = vpop.f32.mrf.mxu0
    %v177 = vadd.f32 %v76, %v176
    %v178 = vpop.f32.mrf.mxu0
    %v179 = vadd.f32 %v80, %v178
    %v180 = vpop.f32.mrf.mxu0
    %v181 = vadd.f32 %v76, %v180
    %v182 = vpop.f32.mrf.mxu0
    %v183 = vadd.f32 %v80, %v182
    %184 = vdwg.mxu0
    %185 = vmatprep.subr.bf16.mxu0 0
    %186 = vmatpush1.bf16.msra.mxu0 0
    %187 = vmatprep.subr.bf16.mxu0 0
    %188 = vmatpush1.bf16.msra.mxu0 0
    %189 = vmatprep.subr.bf16.mxu0 0
    %190 = vmatpush1.bf16.msra.mxu0 0
    %191 = vmatprep.subr.bf16.mxu0 0
    %192 = vmatpush1.bf16.msra.mxu0 0
    %193 = vmatprep.subr.bf16.mxu0 0
    %194 = vmatpush1.bf16.msra.mxu0 0
    %195 = vmatprep.subr.bf16.mxu0 0
    %196 = vmatpush1.bf16.msra.mxu0 0
    %197 = vmatprep.subr.bf16.mxu0 %v129
    %198 = vmatpush1.bf16.msra.mxu0 %v128
    %199 = vmatprep.subr.bf16.mxu0 %v125
    %200 = vmatpush1.bf16.msra.mxu0 %v124
    %201 = vmatprep.subr.bf16.mxu0 0
    %202 = vmatpush2.bf16.msra.mxu0 0
    %203 = vmatprep.subr.bf16.mxu0 0
    %204 = vmatpush2.bf16.msra.mxu0 0
    %205 = vmatprep.subr.bf16.mxu0 0
    %206 = vmatpush2.bf16.msra.mxu0 0
    %207 = vmatprep.subr.bf16.mxu0 0
    %208 = vmatpush2.bf16.msra.mxu0 0
    %209 = vmatprep.subr.bf16.mxu0 0
    %210 = vmatpush2.bf16.msra.mxu0 0
    %211 = vmatprep.subr.bf16.mxu0 0
    %212 = vmatpush2.bf16.msra.mxu0 0
    %213 = vmatprep.subr.bf16.mxu0 0
    %214 = vmatpush2.bf16.msra.mxu0 0
    %215 = vmatprep.subr.bf16.mxu0 0
    %216 = vmatpush2.bf16.msra.mxu0 0
    %217 = vmatprep.mubr.bf16.mxu0 0
    %218 = vmatmul.mubr.bf16.gmra.mxu0 %v140
    %v219 = vpop.f32.mrf.mxu0
    %v220 = vadd.f32 %v84, %v219
    %v221 = vpop.f32.mrf.mxu0
    %v222 = vadd.f32 %v88, %v221
    %v223 = vpop.f32.mrf.mxu0
    %v224 = vadd.f32 %v84, %v223
    %v225 = vpop.f32.mrf.mxu0
    %v226 = vadd.f32 %v88, %v225
    %227 = vdwg.mxu0
    %v228 = vmax.f32 %v177, 0.0
    %v229 = vmax.f32 %v179, 0.0
    %v230 = vmax.f32 %v220, 0.0
    %v231 = vmax.f32 %v222, 0.0
    %v232 = vmax.f32 %v181, 0.0
    %v233 = vmax.f32 %v183, 0.0
    %v234 = vmax.f32 %v224, 0.0
    %v235 = vmax.f32 %v226, 0.0
    %v236 = vpack.c.bf16 %v232, %v228
    %v237 = vpack.c.bf16 %v233, %v229
    %v238 = vpack.c.bf16 %v234, %v230
    %v239 = vpack.c.bf16 %v235, %v231
    %v240 = vld [vmem:[#allocation2] sm:$0xff]
    %v241 = vld [vmem:[#allocation2 + $0x8] sm:$0xff]
    %v242 = vld [vmem:[#allocation2 + $0x10] sm:$0xff]
    %v243 = vld [vmem:[#allocation2 + $0x18] sm:$0xff]
    %v244 = vld [vmem:[#allocation2 + $0x20] sm:$0xff]
    %v245 = vld [vmem:[#allocation2 + $0x28] sm:$0xff]
    %v246 = vld [vmem:[#allocation2 + $0x30] sm:$0xff]
    %v247 = vld [vmem:[#allocation2 + $0x38] sm:$0xff]
    %v248 = vld [vmem:[#allocation2 + $0x40] sm:$0xff]
    %v249 = vld [vmem:[#allocation2 + $0x48] sm:$0xff]
    %v250 = vld [vmem:[#allocation2 + $0x50] sm:$0xff]
    %v251 = vld [vmem:[#allocation2 + $0x58] sm:$0xff]
    %v252 = vld [vmem:[#allocation2 + $0x60] sm:$0xff]
    %v253 = vld [vmem:[#allocation2 + $0x68] sm:$0xff]
    %v254 = vld [vmem:[#allocation2 + $0x70] sm:$0xff]
    %v255 = vld [vmem:[#allocation2 + $0x78] sm:$0xff]
    %v256 = vld [vmem:[#allocation2 + $0x80] sm:$0xff]
    %v257 = vld [vmem:[#allocation2 + $0x88] sm:$0xff]
    %v258 = vld [vmem:[#allocation2 + $0x90] sm:$0xff]
    %v259 = vld [vmem:[#allocation2 + $0x98] sm:$0xff]
    %v260 = vld [vmem:[#allocation2 + $0xa0] sm:$0xff]
    %v261 = vld [vmem:[#allocation2 + $0xa8] sm:$0xff]
    %v262 = vld [vmem:[#allocation2 + $0xb0] sm:$0xff]
    %v263 = vld [vmem:[#allocation2 + $0xb8] sm:$0xff]
    %v264 = vld [vmem:[#allocation2 + $0xc0] sm:$0xff]
    %v265 = vld [vmem:[#allocation2 + $0xc8] sm:$0xff]
    %v266 = vld [vmem:[#allocation2 + $0xd0] sm:$0xff]
    %v267 = vld [vmem:[#allocation2 + $0xd8] sm:$0xff]
    %v268 = vld [vmem:[#allocation2 + $0xe0] sm:$0xff]
    %v269 = vld [vmem:[#allocation2 + $0xe8] sm:$0xff]
    %v270 = vld [vmem:[#allocation2 + $0xf0] sm:$0xff]
    %v271 = vld [vmem:[#allocation2 + $0xf8] sm:$0xff]
    %v272 = vld [vmem:[#allocation2 + $0x100] sm:$0xff]
    %v273 = vld [vmem:[#allocation2 + $0x108] sm:$0xff]
    %v274 = vld [vmem:[#allocation2 + $0x110] sm:$0xff]
    %v275 = vld [vmem:[#allocation2 + $0x118] sm:$0xff]
    %v276 = vld [vmem:[#allocation2 + $0x120] sm:$0xff]
    %v277 = vld [vmem:[#allocation2 + $0x128] sm:$0xff]
    %v278 = vld [vmem:[#allocation2 + $0x130] sm:$0xff]
    %v279 = vld [vmem:[#allocation2 + $0x138] sm:$0xff]
    %v280 = vld [vmem:[#allocation2 + $0x140] sm:$0xff]
    %v281 = vld [vmem:[#allocation2 + $0x148] sm:$0xff]
    %v282 = vld [vmem:[#allocation2 + $0x150] sm:$0xff]
    %v283 = vld [vmem:[#allocation2 + $0x158] sm:$0xff]
    %v284 = vld [vmem:[#allocation2 + $0x160] sm:$0xff]
    %v285 = vld [vmem:[#allocation2 + $0x168] sm:$0xff]
    %v286 = vld [vmem:[#allocation2 + $0x170] sm:$0xff]
    %v287 = vld [vmem:[#allocation2 + $0x178] sm:$0xff]
    %v288 = vld [vmem:[#allocation2 + $0x180] sm:$0xff]
    %v289 = vld [vmem:[#allocation2 + $0x188] sm:$0xff]
    %v290 = vld [vmem:[#allocation2 + $0x190] sm:$0xff]
    %v291 = vld [vmem:[#allocation2 + $0x198] sm:$0xff]
    %v292 = vld [vmem:[#allocation2 + $0x1a0] sm:$0xff]
    %v293 = vld [vmem:[#allocation2 + $0x1a8] sm:$0xff]
    %v294 = vld [vmem:[#allocation2 + $0x1b0] sm:$0xff]
    %v295 = vld [vmem:[#allocation2 + $0x1b8] sm:$0xff]
    %v296 = vld [vmem:[#allocation2 + $0x1c0] sm:$0xff]
    %v297 = vld [vmem:[#allocation2 + $0x1c8] sm:$0xff]
    %v298 = vld [vmem:[#allocation2 + $0x1d0] sm:$0xff]
    %v299 = vld [vmem:[#allocation2 + $0x1d8] sm:$0xff]
    %v300 = vld [vmem:[#allocation2 + $0x1e0] sm:$0xff]
    %v301 = vld [vmem:[#allocation2 + $0x1e8] sm:$0xff]
    %v302 = vld [vmem:[#allocation2 + $0x1f0] sm:$0xff]
    %v303 = vld [vmem:[#allocation2 + $0x1f8] sm:$0xff]
    %v304 = vld [vmem:[#allocation2 + $0x200] sm:$0xff]
    %v305 = vld [vmem:[#allocation2 + $0x208] sm:$0xff]
    %v306 = vld [vmem:[#allocation2 + $0x210] sm:$0xff]
    %v307 = vld [vmem:[#allocation2 + $0x218] sm:$0xff]
    %v308 = vld [vmem:[#allocation2 + $0x220] sm:$0xff]
    %v309 = vld [vmem:[#allocation2 + $0x228] sm:$0xff]
    %v310 = vld [vmem:[#allocation2 + $0x230] sm:$0xff]
    %v311 = vld [vmem:[#allocation2 + $0x238] sm:$0xff]
    %v312 = vld [vmem:[#allocation2 + $0x240] sm:$0xff]
    %v313 = vld [vmem:[#allocation2 + $0x248] sm:$0xff]
    %v314 = vld [vmem:[#allocation2 + $0x250] sm:$0xff]
    %v315 = vld [vmem:[#allocation2 + $0x258] sm:$0xff]
    %v316 = vld [vmem:[#allocation2 + $0x260] sm:$0xff]
    %v317 = vld [vmem:[#allocation2 + $0x268] sm:$0xff]
    %v318 = vld [vmem:[#allocation2 + $0x270] sm:$0xff]
    %v319 = vld [vmem:[#allocation2 + $0x278] sm:$0xff]
    %v320 = vld [vmem:[#allocation2 + $0x280] sm:$0xff]
    %v321 = vld [vmem:[#allocation2 + $0x288] sm:$0xff]
    %v322 = vld [vmem:[#allocation2 + $0x290] sm:$0xff]
    %v323 = vld [vmem:[#allocation2 + $0x298] sm:$0xff]
    %v324 = vld [vmem:[#allocation2 + $0x2a0] sm:$0xff]
    %v325 = vld [vmem:[#allocation2 + $0x2a8] sm:$0xff]
    %v326 = vld [vmem:[#allocation2 + $0x2b0] sm:$0xff]
    %v327 = vld [vmem:[#allocation2 + $0x2b8] sm:$0xff]
    %v328 = vld [vmem:[#allocation2 + $0x2c0] sm:$0xff]
    %v329 = vld [vmem:[#allocation2 + $0x2c8] sm:$0xff]
    %v330 = vld [vmem:[#allocation2 + $0x2d0] sm:$0xff]
    %v331 = vld [vmem:[#allocation2 + $0x2d8] sm:$0xff]
    %v332 = vld [vmem:[#allocation2 + $0x2e0] sm:$0xff]
    %v333 = vld [vmem:[#allocation2 + $0x2e8] sm:$0xff]
    %v334 = vld [vmem:[#allocation2 + $0x2f0] sm:$0xff]
    %v335 = vld [vmem:[#allocation2 + $0x2f8] sm:$0xff]
    %v336 = vld [vmem:[#allocation2 + $0x300] sm:$0xff]
    %v337 = vld [vmem:[#allocation2 + $0x308] sm:$0xff]
    %v338 = vld [vmem:[#allocation2 + $0x310] sm:$0xff]
    %v339 = vld [vmem:[#allocation2 + $0x318] sm:$0xff]
    %v340 = vld [vmem:[#allocation2 + $0x320] sm:$0xff]
    %v341 = vld [vmem:[#allocation2 + $0x328] sm:$0xff]
    %v342 = vld [vmem:[#allocation2 + $0x330] sm:$0xff]
    %v343 = vld [vmem:[#allocation2 + $0x338] sm:$0xff]
    %v344 = vld [vmem:[#allocation2 + $0x340] sm:$0xff]
    %v345 = vld [vmem:[#allocation2 + $0x348] sm:$0xff]
    %v346 = vld [vmem:[#allocation2 + $0x350] sm:$0xff]
    %v347 = vld [vmem:[#allocation2 + $0x358] sm:$0xff]
    %v348 = vld [vmem:[#allocation2 + $0x360] sm:$0xff]
    %v349 = vld [vmem:[#allocation2 + $0x368] sm:$0xff]
    %v350 = vld [vmem:[#allocation2 + $0x370] sm:$0xff]
    %v351 = vld [vmem:[#allocation2 + $0x378] sm:$0xff]
    %v352 = vld [vmem:[#allocation2 + $0x380] sm:$0xff]
    %v353 = vld [vmem:[#allocation2 + $0x388] sm:$0xff]
    %v354 = vld [vmem:[#allocation2 + $0x390] sm:$0xff]
    %v355 = vld [vmem:[#allocation2 + $0x398] sm:$0xff]
    %v356 = vld [vmem:[#allocation2 + $0x3a0] sm:$0xff]
    %v357 = vld [vmem:[#allocation2 + $0x3a8] sm:$0xff]
    %v358 = vld [vmem:[#allocation2 + $0x3b0] sm:$0xff]
    %v359 = vld [vmem:[#allocation2 + $0x3b8] sm:$0xff]
    %v360 = vld [vmem:[#allocation2 + $0x3c0] sm:$0xff]
    %v361 = vld [vmem:[#allocation2 + $0x3c8] sm:$0xff]
    %v362 = vld [vmem:[#allocation2 + $0x3d0] sm:$0xff]
    %v363 = vld [vmem:[#allocation2 + $0x3d8] sm:$0xff]
    %v364 = vld [vmem:[#allocation2 + $0x3e0] sm:$0xff]
    %v365 = vld [vmem:[#allocation2 + $0x3e8] sm:$0xff]
    %v366 = vld [vmem:[#allocation2 + $0x3f0] sm:$0xff]
    %v367 = vld [vmem:[#allocation2 + $0x3f8] sm:$0xff]
    %v368 = vld [vmem:[%s4] sm:$0xf]
    %v370 = vlaneseq
    %v371 = vshrl.u32 %v370, 7
    %v372 = vsub.s32 0, %v371
    %v373 = vrot.slane %v368, %v372
    %v374 = vlaneseq
    %v375 = vshrl.u32 %v374, 7
    %v376 = vsub.s32 1, %v375
    %v377 = vrot.slane %v368, %v376
    %v378 = vlaneseq
    %v379 = vshrl.u32 %v378, 7
    %v380 = vsub.s32 2, %v379
    %v381 = vrot.slane %v368, %v380
    %v382 = vlaneseq
    %v383 = vshrl.u32 %v382, 7
    %v384 = vsub.s32 3, %v383
    %v385 = vrot.slane %v368, %v384
    %v518 = vunpack.c.l.b16 %v240
    %v519 = vunpack.c.h.b16 %v240
    %v520 = vunpack.c.l.b16 %v241
    %v521 = vunpack.c.h.b16 %v241
    %v522 = vunpack.c.l.b16 %v242
    %v523 = vunpack.c.h.b16 %v242
    %v524 = vunpack.c.l.b16 %v243
    %v525 = vunpack.c.h.b16 %v243
    %v526 = vunpack.c.l.b16 %v244
    %v527 = vunpack.c.h.b16 %v244
    %v528 = vunpack.c.l.b16 %v245
    %v529 = vunpack.c.h.b16 %v245
    %v530 = vunpack.c.l.b16 %v246
    %v531 = vunpack.c.h.b16 %v246
    %v532 = vunpack.c.l.b16 %v247
    %v533 = vunpack.c.h.b16 %v247
    %v534 = vunpack.c.l.b16 %v248
    %v535 = vunpack.c.h.b16 %v248
    %v536 = vunpack.c.l.b16 %v249
    %v537 = vunpack.c.h.b16 %v249
    %v538 = vunpack.c.l.b16 %v250
    %v539 = vunpack.c.h.b16 %v250
    %v540 = vunpack.c.l.b16 %v251
    %v541 = vunpack.c.h.b16 %v251
    %v542 = vunpack.c.l.b16 %v252
    %v543 = vunpack.c.h.b16 %v252
    %v544 = vunpack.c.l.b16 %v253
    %v545 = vunpack.c.h.b16 %v253
    %v546 = vunpack.c.l.b16 %v254
    %v547 = vunpack.c.h.b16 %v254
    %v548 = vunpack.c.l.b16 %v255
    %v549 = vunpack.c.h.b16 %v255
    %v550 = vunpack.c.l.b16 %v256
    %v551 = vunpack.c.h.b16 %v256
    %v552 = vunpack.c.l.b16 %v257
    %v553 = vunpack.c.h.b16 %v257
    %v554 = vunpack.c.l.b16 %v258
    %v555 = vunpack.c.h.b16 %v258
    %v556 = vunpack.c.l.b16 %v259
    %v557 = vunpack.c.h.b16 %v259
    %v558 = vunpack.c.l.b16 %v260
    %v559 = vunpack.c.h.b16 %v260
    %v560 = vunpack.c.l.b16 %v261
    %v561 = vunpack.c.h.b16 %v261
    %v562 = vunpack.c.l.b16 %v262
    %v563 = vunpack.c.h.b16 %v262
    %v564 = vunpack.c.l.b16 %v263
    %v565 = vunpack.c.h.b16 %v263
    %v566 = vunpack.c.l.b16 %v264
    %v567 = vunpack.c.h.b16 %v264
    %v568 = vunpack.c.l.b16 %v265
    %v569 = vunpack.c.h.b16 %v265
    %v570 = vunpack.c.l.b16 %v266
    %v571 = vunpack.c.h.b16 %v266
    %v572 = vunpack.c.l.b16 %v267
    %v573 = vunpack.c.h.b16 %v267
    %v574 = vunpack.c.l.b16 %v268
    %v575 = vunpack.c.h.b16 %v268
    %v576 = vunpack.c.l.b16 %v269
    %v577 = vunpack.c.h.b16 %v269
    %v578 = vunpack.c.l.b16 %v270
    %v579 = vunpack.c.h.b16 %v270
    %v580 = vunpack.c.l.b16 %v271
    %v581 = vunpack.c.h.b16 %v271
    %v582 = vunpack.c.l.b16 %v272
    %v583 = vunpack.c.h.b16 %v272
    %v584 = vunpack.c.l.b16 %v273
    %v585 = vunpack.c.h.b16 %v273
    %v586 = vunpack.c.l.b16 %v274
    %v587 = vunpack.c.h.b16 %v274
    %v588 = vunpack.c.l.b16 %v275
    %v589 = vunpack.c.h.b16 %v275
    %v590 = vunpack.c.l.b16 %v276
    %v591 = vunpack.c.h.b16 %v276
    %v592 = vunpack.c.l.b16 %v277
    %v593 = vunpack.c.h.b16 %v277
    %v594 = vunpack.c.l.b16 %v278
    %v595 = vunpack.c.h.b16 %v278
    %v596 = vunpack.c.l.b16 %v279
    %v597 = vunpack.c.h.b16 %v279
    %v598 = vunpack.c.l.b16 %v280
    %v599 = vunpack.c.h.b16 %v280
    %v600 = vunpack.c.l.b16 %v281
    %v601 = vunpack.c.h.b16 %v281
    %v602 = vunpack.c.l.b16 %v282
    %v603 = vunpack.c.h.b16 %v282
    %v604 = vunpack.c.l.b16 %v283
    %v605 = vunpack.c.h.b16 %v283
    %v606 = vunpack.c.l.b16 %v284
    %v607 = vunpack.c.h.b16 %v284
    %v608 = vunpack.c.l.b16 %v285
    %v609 = vunpack.c.h.b16 %v285
    %v610 = vunpack.c.l.b16 %v286
    %v611 = vunpack.c.h.b16 %v286
    %v612 = vunpack.c.l.b16 %v287
    %v613 = vunpack.c.h.b16 %v287
    %v614 = vunpack.c.l.b16 %v288
    %v615 = vunpack.c.h.b16 %v288
    %v616 = vunpack.c.l.b16 %v289
    %v617 = vunpack.c.h.b16 %v289
    %v618 = vunpack.c.l.b16 %v290
    %v619 = vunpack.c.h.b16 %v290
    %v620 = vunpack.c.l.b16 %v291
    %v621 = vunpack.c.h.b16 %v291
    %v622 = vunpack.c.l.b16 %v292
    %v623 = vunpack.c.h.b16 %v292
    %v624 = vunpack.c.l.b16 %v293
    %v625 = vunpack.c.h.b16 %v293
    %v626 = vunpack.c.l.b16 %v294
    %v627 = vunpack.c.h.b16 %v294
    %v628 = vunpack.c.l.b16 %v295
    %v629 = vunpack.c.h.b16 %v295
    %v630 = vunpack.c.l.b16 %v296
    %v631 = vunpack.c.h.b16 %v296
    %v632 = vunpack.c.l.b16 %v297
    %v633 = vunpack.c.h.b16 %v297
    %v634 = vunpack.c.l.b16 %v298
    %v635 = vunpack.c.h.b16 %v298
    %v636 = vunpack.c.l.b16 %v299
    %v637 = vunpack.c.h.b16 %v299
    %v638 = vunpack.c.l.b16 %v300
    %v639 = vunpack.c.h.b16 %v300
    %v640 = vunpack.c.l.b16 %v301
    %v641 = vunpack.c.h.b16 %v301
    %v642 = vunpack.c.l.b16 %v302
    %v643 = vunpack.c.h.b16 %v302
    %v644 = vunpack.c.l.b16 %v303
    %v645 = vunpack.c.h.b16 %v303
    %v646 = vunpack.c.l.b16 %v304
    %v647 = vunpack.c.h.b16 %v304
    %v648 = vunpack.c.l.b16 %v305
    %v649 = vunpack.c.h.b16 %v305
    %v650 = vunpack.c.l.b16 %v306
    %v651 = vunpack.c.h.b16 %v306
    %v652 = vunpack.c.l.b16 %v307
    %v653 = vunpack.c.h.b16 %v307
    %v654 = vunpack.c.l.b16 %v308
    %v655 = vunpack.c.h.b16 %v308
    %v656 = vunpack.c.l.b16 %v309
    %v657 = vunpack.c.h.b16 %v309
    %v658 = vunpack.c.l.b16 %v310
    %v659 = vunpack.c.h.b16 %v310
    %v660 = vunpack.c.l.b16 %v311
    %v661 = vunpack.c.h.b16 %v311
    %v662 = vunpack.c.l.b16 %v312
    %v663 = vunpack.c.h.b16 %v312
    %v664 = vunpack.c.l.b16 %v313
    %v665 = vunpack.c.h.b16 %v313
    %v666 = vunpack.c.l.b16 %v314
    %v667 = vunpack.c.h.b16 %v314
    %v668 = vunpack.c.l.b16 %v315
    %v669 = vunpack.c.h.b16 %v315
    %v670 = vunpack.c.l.b16 %v316
    %v671 = vunpack.c.h.b16 %v316
    %v672 = vunpack.c.l.b16 %v317
    %v673 = vunpack.c.h.b16 %v317
    %v674 = vunpack.c.l.b16 %v318
    %v675 = vunpack.c.h.b16 %v318
    %v676 = vunpack.c.l.b16 %v319
    %v677 = vunpack.c.h.b16 %v319
    %v678 = vunpack.c.l.b16 %v320
    %v679 = vunpack.c.h.b16 %v320
    %v680 = vunpack.c.l.b16 %v321
    %v681 = vunpack.c.h.b16 %v321
    %v682 = vunpack.c.l.b16 %v322
    %v683 = vunpack.c.h.b16 %v322
    %v684 = vunpack.c.l.b16 %v323
    %v685 = vunpack.c.h.b16 %v323
    %v686 = vunpack.c.l.b16 %v324
    %v687 = vunpack.c.h.b16 %v324
    %v688 = vunpack.c.l.b16 %v325
    %v689 = vunpack.c.h.b16 %v325
    %v690 = vunpack.c.l.b16 %v326
    %v691 = vunpack.c.h.b16 %v326
    %v692 = vunpack.c.l.b16 %v327
    %v693 = vunpack.c.h.b16 %v327
    %v694 = vunpack.c.l.b16 %v328
    %v695 = vunpack.c.h.b16 %v328
    %v696 = vunpack.c.l.b16 %v329
    %v697 = vunpack.c.h.b16 %v329
    %v698 = vunpack.c.l.b16 %v330
    %v699 = vunpack.c.h.b16 %v330
    %v700 = vunpack.c.l.b16 %v331
    %v701 = vunpack.c.h.b16 %v331
    %v702 = vunpack.c.l.b16 %v332
    %v703 = vunpack.c.h.b16 %v332
    %v704 = vunpack.c.l.b16 %v333
    %v705 = vunpack.c.h.b16 %v333
    %v706 = vunpack.c.l.b16 %v334
    %v707 = vunpack.c.h.b16 %v334
    %v708 = vunpack.c.l.b16 %v335
    %v709 = vunpack.c.h.b16 %v335
    %v710 = vunpack.c.l.b16 %v336
    %v711 = vunpack.c.h.b16 %v336
    %v712 = vunpack.c.l.b16 %v337
    %v713 = vunpack.c.h.b16 %v337
    %v714 = vunpack.c.l.b16 %v338
    %v715 = vunpack.c.h.b16 %v338
    %v716 = vunpack.c.l.b16 %v339
    %v717 = vunpack.c.h.b16 %v339
    %v718 = vunpack.c.l.b16 %v340
    %v719 = vunpack.c.h.b16 %v340
    %v720 = vunpack.c.l.b16 %v341
    %v721 = vunpack.c.h.b16 %v341
    %v722 = vunpack.c.l.b16 %v342
    %v723 = vunpack.c.h.b16 %v342
    %v724 = vunpack.c.l.b16 %v343
    %v725 = vunpack.c.h.b16 %v343
    %v726 = vunpack.c.l.b16 %v344
    %v727 = vunpack.c.h.b16 %v344
    %v728 = vunpack.c.l.b16 %v345
    %v729 = vunpack.c.h.b16 %v345
    %v730 = vunpack.c.l.b16 %v346
    %v731 = vunpack.c.h.b16 %v346
    %v732 = vunpack.c.l.b16 %v347
    %v733 = vunpack.c.h.b16 %v347
    %v734 = vunpack.c.l.b16 %v348
    %v735 = vunpack.c.h.b16 %v348
    %v736 = vunpack.c.l.b16 %v349
    %v737 = vunpack.c.h.b16 %v349
    %v738 = vunpack.c.l.b16 %v350
    %v739 = vunpack.c.h.b16 %v350
    %v740 = vunpack.c.l.b16 %v351
    %v741 = vunpack.c.h.b16 %v351
    %v742 = vunpack.c.l.b16 %v352
    %v743 = vunpack.c.h.b16 %v352
    %v744 = vunpack.c.l.b16 %v353
    %v745 = vunpack.c.h.b16 %v353
    %v746 = vunpack.c.l.b16 %v354
    %v747 = vunpack.c.h.b16 %v354
    %v748 = vunpack.c.l.b16 %v355
    %v749 = vunpack.c.h.b16 %v355
    %v750 = vunpack.c.l.b16 %v356
    %v751 = vunpack.c.h.b16 %v356
    %v752 = vunpack.c.l.b16 %v357
    %v753 = vunpack.c.h.b16 %v357
    %v754 = vunpack.c.l.b16 %v358
    %v755 = vunpack.c.h.b16 %v358
    %v756 = vunpack.c.l.b16 %v359
    %v757 = vunpack.c.h.b16 %v359
    %v758 = vunpack.c.l.b16 %v360
    %v759 = vunpack.c.h.b16 %v360
    %v760 = vunpack.c.l.b16 %v361
    %v761 = vunpack.c.h.b16 %v361
    %v762 = vunpack.c.l.b16 %v362
    %v763 = vunpack.c.h.b16 %v362
    %v764 = vunpack.c.l.b16 %v363
    %v765 = vunpack.c.h.b16 %v363
    %v766 = vunpack.c.l.b16 %v364
    %v767 = vunpack.c.h.b16 %v364
    %v768 = vunpack.c.l.b16 %v365
    %v769 = vunpack.c.h.b16 %v365
    %v770 = vunpack.c.l.b16 %v366
    %v771 = vunpack.c.h.b16 %v366
    %v772 = vunpack.c.l.b16 %v367
    %v773 = vunpack.c.h.b16 %v367
    %v774 = vpack.c.b16 %v522, %v518
    %v775 = vpack.c.b16 %v523, %v519
    %v776 = vpack.c.b16 %v524, %v520
    %v777 = vpack.c.b16 %v525, %v521
    %v778 = vpack.c.b16 %v530, %v526
    %v779 = vpack.c.b16 %v531, %v527
    %v780 = vpack.c.b16 %v532, %v528
    %v781 = vpack.c.b16 %v533, %v529
    %v782 = vpack.c.b16 %v538, %v534
    %v783 = vpack.c.b16 %v539, %v535
    %v784 = vpack.c.b16 %v540, %v536
    %v785 = vpack.c.b16 %v541, %v537
    %v786 = vpack.c.b16 %v546, %v542
    %v787 = vpack.c.b16 %v547, %v543
    %v788 = vpack.c.b16 %v548, %v544
    %v789 = vpack.c.b16 %v549, %v545
    %v790 = vpack.c.b16 %v554, %v550
    %v791 = vpack.c.b16 %v555, %v551
    %v792 = vpack.c.b16 %v556, %v552
    %v793 = vpack.c.b16 %v557, %v553
    %v794 = vpack.c.b16 %v562, %v558
    %v795 = vpack.c.b16 %v563, %v559
    %v796 = vpack.c.b16 %v564, %v560
    %v797 = vpack.c.b16 %v565, %v561
    %v798 = vpack.c.b16 %v570, %v566
    %v799 = vpack.c.b16 %v571, %v567
    %v800 = vpack.c.b16 %v572, %v568
    %v801 = vpack.c.b16 %v573, %v569
    %v802 = vpack.c.b16 %v578, %v574
    %v803 = vpack.c.b16 %v579, %v575
    %v804 = vpack.c.b16 %v580, %v576
    %v805 = vpack.c.b16 %v581, %v577
    %v806 = vpack.c.b16 %v586, %v582
    %v807 = vpack.c.b16 %v587, %v583
    %v808 = vpack.c.b16 %v588, %v584
    %v809 = vpack.c.b16 %v589, %v585
    %v810 = vpack.c.b16 %v594, %v590
    %v811 = vpack.c.b16 %v595, %v591
    %v812 = vpack.c.b16 %v596, %v592
    %v813 = vpack.c.b16 %v597, %v593
    %v814 = vpack.c.b16 %v602, %v598
    %v815 = vpack.c.b16 %v603, %v599
    %v816 = vpack.c.b16 %v604, %v600
    %v817 = vpack.c.b16 %v605, %v601
    %v818 = vpack.c.b16 %v610, %v606
    %v819 = vpack.c.b16 %v611, %v607
    %v820 = vpack.c.b16 %v612, %v608
    %v821 = vpack.c.b16 %v613, %v609
    %v822 = vpack.c.b16 %v618, %v614
    %v823 = vpack.c.b16 %v619, %v615
    %v824 = vpack.c.b16 %v620, %v616
    %v825 = vpack.c.b16 %v621, %v617
    %v826 = vpack.c.b16 %v626, %v622
    %v827 = vpack.c.b16 %v627, %v623
    %v828 = vpack.c.b16 %v628, %v624
    %v829 = vpack.c.b16 %v629, %v625
    %v830 = vpack.c.b16 %v634, %v630
    %v831 = vpack.c.b16 %v635, %v631
    %v832 = vpack.c.b16 %v636, %v632
    %v833 = vpack.c.b16 %v637, %v633
    %v834 = vpack.c.b16 %v642, %v638
    %v835 = vpack.c.b16 %v643, %v639
    %v836 = vpack.c.b16 %v644, %v640
    %v837 = vpack.c.b16 %v645, %v641
    %v838 = vpack.c.b16 %v650, %v646
    %v839 = vpack.c.b16 %v651, %v647
    %v840 = vpack.c.b16 %v652, %v648
    %v841 = vpack.c.b16 %v653, %v649
    %v842 = vpack.c.b16 %v658, %v654
    %v843 = vpack.c.b16 %v659, %v655
    %v844 = vpack.c.b16 %v660, %v656
    %v845 = vpack.c.b16 %v661, %v657
    %v846 = vpack.c.b16 %v666, %v662
    %v847 = vpack.c.b16 %v667, %v663
    %v848 = vpack.c.b16 %v668, %v664
    %v849 = vpack.c.b16 %v669, %v665
    %v850 = vpack.c.b16 %v674, %v670
    %v851 = vpack.c.b16 %v675, %v671
    %v852 = vpack.c.b16 %v676, %v672
    %v853 = vpack.c.b16 %v677, %v673
    %v854 = vpack.c.b16 %v682, %v678
    %v855 = vpack.c.b16 %v683, %v679
    %v856 = vpack.c.b16 %v684, %v680
    %v857 = vpack.c.b16 %v685, %v681
    %v858 = vpack.c.b16 %v690, %v686
    %v859 = vpack.c.b16 %v691, %v687
    %v860 = vpack.c.b16 %v692, %v688
    %v861 = vpack.c.b16 %v693, %v689
    %v862 = vpack.c.b16 %v698, %v694
    %v863 = vpack.c.b16 %v699, %v695
    %v864 = vpack.c.b16 %v700, %v696
    %v865 = vpack.c.b16 %v701, %v697
    %v866 = vpack.c.b16 %v706, %v702
    %v867 = vpack.c.b16 %v707, %v703
    %v868 = vpack.c.b16 %v708, %v704
    %v869 = vpack.c.b16 %v709, %v705
    %v870 = vpack.c.b16 %v714, %v710
    %v871 = vpack.c.b16 %v715, %v711
    %v872 = vpack.c.b16 %v716, %v712
    %v873 = vpack.c.b16 %v717, %v713
    %v874 = vpack.c.b16 %v722, %v718
    %v875 = vpack.c.b16 %v723, %v719
    %v876 = vpack.c.b16 %v724, %v720
    %v877 = vpack.c.b16 %v725, %v721
    %v878 = vpack.c.b16 %v730, %v726
    %v879 = vpack.c.b16 %v731, %v727
    %v880 = vpack.c.b16 %v732, %v728
    %v881 = vpack.c.b16 %v733, %v729
    %v882 = vpack.c.b16 %v738, %v734
    %v883 = vpack.c.b16 %v739, %v735
    %v884 = vpack.c.b16 %v740, %v736
    %v885 = vpack.c.b16 %v741, %v737
    %v886 = vpack.c.b16 %v746, %v742
    %v887 = vpack.c.b16 %v747, %v743
    %v888 = vpack.c.b16 %v748, %v744
    %v889 = vpack.c.b16 %v749, %v745
    %v890 = vpack.c.b16 %v754, %v750
    %v891 = vpack.c.b16 %v755, %v751
    %v892 = vpack.c.b16 %v756, %v752
    %v893 = vpack.c.b16 %v757, %v753
    %v894 = vpack.c.b16 %v762, %v758
    %v895 = vpack.c.b16 %v763, %v759
    %v896 = vpack.c.b16 %v764, %v760
    %v897 = vpack.c.b16 %v765, %v761
    %v898 = vpack.c.b16 %v770, %v766
    %v899 = vpack.c.b16 %v771, %v767
    %v900 = vpack.c.b16 %v772, %v768
    %v901 = vpack.c.b16 %v773, %v769
    %1030 = vmatprep.subr.bf16.mxu0 %v803
    %1031 = vmatpush1.bf16.msra.mxu0 %v802
    %1032 = vmatprep.subr.bf16.mxu0 %v799
    %1033 = vmatpush1.bf16.msra.mxu0 %v798
    %1034 = vmatprep.subr.bf16.mxu0 %v795
    %1035 = vmatpush1.bf16.msra.mxu0 %v794
    %1036 = vmatprep.subr.bf16.mxu0 %v791
    %1037 = vmatpush1.bf16.msra.mxu0 %v790
    %1038 = vmatprep.subr.bf16.mxu0 %v787
    %1039 = vmatpush1.bf16.msra.mxu0 %v786
    %1040 = vmatprep.subr.bf16.mxu0 %v783
    %1041 = vmatpush1.bf16.msra.mxu0 %v782
    %1042 = vmatprep.subr.bf16.mxu0 %v779
    %1043 = vmatpush1.bf16.msra.mxu0 %v778
    %1044 = vmatprep.subr.bf16.mxu0 %v775
    %1045 = vmatpush1.bf16.msra.mxu0 %v774
    %1046 = vmatprep.subr.bf16.mxu0 %v835
    %1047 = vmatpush2.bf16.msra.mxu0 %v834
    %1048 = vmatprep.subr.bf16.mxu0 %v831
    %1049 = vmatpush2.bf16.msra.mxu0 %v830
    %1050 = vmatprep.subr.bf16.mxu0 %v827
    %1051 = vmatpush2.bf16.msra.mxu0 %v826
    %1052 = vmatprep.subr.bf16.mxu0 %v823
    %1053 = vmatpush2.bf16.msra.mxu0 %v822
    %1054 = vmatprep.subr.bf16.mxu0 %v819
    %1055 = vmatpush2.bf16.msra.mxu0 %v818
    %1056 = vmatprep.subr.bf16.mxu0 %v815
    %1057 = vmatpush2.bf16.msra.mxu0 %v814
    %1058 = vmatprep.subr.bf16.mxu0 %v811
    %1059 = vmatpush2.bf16.msra.mxu0 %v810
    %1060 = vmatprep.subr.bf16.mxu0 %v807
    %1061 = vmatpush2.bf16.msra.mxu0 %v806
    %1062 = vmatprep.mubr.bf16.mxu0 %v237
    %1063 = vmatmul.mubr.bf16.gmra.mxu0 %v236
    %v1064 = vpop.f32.mrf.mxu0
    %v1065 = vadd.f32 %v373, %v1064
    %v1066 = vpop.f32.mrf.mxu0
    %v1067 = vadd.f32 %v377, %v1066
    %v1068 = vpop.f32.mrf.mxu0
    %v1069 = vadd.f32 %v373, %v1068
    %v1070 = vpop.f32.mrf.mxu0
    %v1071 = vadd.f32 %v377, %v1070
    %1072 = vdwg.mxu0
    %1073 = vmatprep.subr.bf16.mxu0 %v867
    %1074 = vmatpush1.bf16.msra.mxu0 %v866
    %1075 = vmatprep.subr.bf16.mxu0 %v863
    %1076 = vmatpush1.bf16.msra.mxu0 %v862
    %1077 = vmatprep.subr.bf16.mxu0 %v859
    %1078 = vmatpush1.bf16.msra.mxu0 %v858
    %1079 = vmatprep.subr.bf16.mxu0 %v855
    %1080 = vmatpush1.bf16.msra.mxu0 %v854
    %1081 = vmatprep.subr.bf16.mxu0 %v851
    %1082 = vmatpush1.bf16.msra.mxu0 %v850
    %1083 = vmatprep.subr.bf16.mxu0 %v847
    %1084 = vmatpush1.bf16.msra.mxu0 %v846
    %1085 = vmatprep.subr.bf16.mxu0 %v843
    %1086 = vmatpush1.bf16.msra.mxu0 %v842
    %1087 = vmatprep.subr.bf16.mxu0 %v839
    %1088 = vmatpush1.bf16.msra.mxu0 %v838
    %1089 = vmatprep.subr.bf16.mxu0 %v899
    %1090 = vmatpush2.bf16.msra.mxu0 %v898
    %1091 = vmatprep.subr.bf16.mxu0 %v895
    %1092 = vmatpush2.bf16.msra.mxu0 %v894
    %1093 = vmatprep.subr.bf16.mxu0 %v891
    %1094 = vmatpush2.bf16.msra.mxu0 %v890
    %1095 = vmatprep.subr.bf16.mxu0 %v887
    %1096 = vmatpush2.bf16.msra.mxu0 %v886
    %1097 = vmatprep.subr.bf16.mxu0 %v883
    %1098 = vmatpush2.bf16.msra.mxu0 %v882
    %1099 = vmatprep.subr.bf16.mxu0 %v879
    %1100 = vmatpush2.bf16.msra.mxu0 %v878
    %1101 = vmatprep.subr.bf16.mxu0 %v875
    %1102 = vmatpush2.bf16.msra.mxu0 %v874
    %1103 = vmatprep.subr.bf16.mxu0 %v871
    %1104 = vmatpush2.bf16.msra.mxu0 %v870
    %1105 = vmatprep.mubr.bf16.mxu0 %v239
    %1106 = vmatmul.mubr.bf16.gmra.mxu0 %v238
    %v1107 = vpop.f32.mrf.mxu0
    %v1108 = vadd.f32 %v1065, %v1107
    %v1109 = vpop.f32.mrf.mxu0
    %v1110 = vadd.f32 %v1067, %v1109
    %v1111 = vpop.f32.mrf.mxu0
    %v1112 = vadd.f32 %v1069, %v1111
    %v1113 = vpop.f32.mrf.mxu0
    %v1114 = vadd.f32 %v1071, %v1113
    %1115 = vdwg.mxu0
    %1116 = vmatprep.subr.bf16.mxu0 %v805
    %1117 = vmatpush1.bf16.msra.mxu0 %v804
    %1118 = vmatprep.subr.bf16.mxu0 %v801
    %1119 = vmatpush1.bf16.msra.mxu0 %v800
    %1120 = vmatprep.subr.bf16.mxu0 %v797
    %1121 = vmatpush1.bf16.msra.mxu0 %v796
    %1122 = vmatprep.subr.bf16.mxu0 %v793
    %1123 = vmatpush1.bf16.msra.mxu0 %v792
    %1124 = vmatprep.subr.bf16.mxu0 %v789
    %1125 = vmatpush1.bf16.msra.mxu0 %v788
    %1126 = vmatprep.subr.bf16.mxu0 %v785
    %1127 = vmatpush1.bf16.msra.mxu0 %v784
    %1128 = vmatprep.subr.bf16.mxu0 %v781
    %1129 = vmatpush1.bf16.msra.mxu0 %v780
    %1130 = vmatprep.subr.bf16.mxu0 %v777
    %1131 = vmatpush1.bf16.msra.mxu0 %v776
    %1132 = vmatprep.subr.bf16.mxu0 %v837
    %1133 = vmatpush2.bf16.msra.mxu0 %v836
    %1134 = vmatprep.subr.bf16.mxu0 %v833
    %1135 = vmatpush2.bf16.msra.mxu0 %v832
    %1136 = vmatprep.subr.bf16.mxu0 %v829
    %1137 = vmatpush2.bf16.msra.mxu0 %v828
    %1138 = vmatprep.subr.bf16.mxu0 %v825
    %1139 = vmatpush2.bf16.msra.mxu0 %v824
    %1140 = vmatprep.subr.bf16.mxu0 %v821
    %1141 = vmatpush2.bf16.msra.mxu0 %v820
    %1142 = vmatprep.subr.bf16.mxu0 %v817
    %1143 = vmatpush2.bf16.msra.mxu0 %v816
    %1144 = vmatprep.subr.bf16.mxu0 %v813
    %1145 = vmatpush2.bf16.msra.mxu0 %v812
    %1146 = vmatprep.subr.bf16.mxu0 %v809
    %1147 = vmatpush2.bf16.msra.mxu0 %v808
    %1148 = vmatprep.mubr.bf16.mxu0 %v237
    %1149 = vmatmul.mubr.bf16.gmra.mxu0 %v236
    %v1150 = vpop.f32.mrf.mxu0
    %v1151 = vadd.f32 %v381, %v1150
    %v1152 = vpop.f32.mrf.mxu0
    %v1153 = vadd.f32 %v385, %v1152
    %v1154 = vpop.f32.mrf.mxu0
    %v1155 = vadd.f32 %v381, %v1154
    %v1156 = vpop.f32.mrf.mxu0
    %v1157 = vadd.f32 %v385, %v1156
    %1158 = vdwg.mxu0
    %1159 = vmatprep.subr.bf16.mxu0 %v869
    %1160 = vmatpush1.bf16.msra.mxu0 %v868
    %1161 = vmatprep.subr.bf16.mxu0 %v865
    %1162 = vmatpush1.bf16.msra.mxu0 %v864
    %1163 = vmatprep.subr.bf16.mxu0 %v861
    %1164 = vmatpush1.bf16.msra.mxu0 %v860
    %1165 = vmatprep.subr.bf16.mxu0 %v857
    %1166 = vmatpush1.bf16.msra.mxu0 %v856
    %1167 = vmatprep.subr.bf16.mxu0 %v853
    %1168 = vmatpush1.bf16.msra.mxu0 %v852
    %1169 = vmatprep.subr.bf16.mxu0 %v849
    %1170 = vmatpush1.bf16.msra.mxu0 %v848
    %1171 = vmatprep.subr.bf16.mxu0 %v845
    %1172 = vmatpush1.bf16.msra.mxu0 %v844
    %1173 = vmatprep.subr.bf16.mxu0 %v841
    %1174 = vmatpush1.bf16.msra.mxu0 %v840
    %1175 = vmatprep.subr.bf16.mxu0 %v901
    %1176 = vmatpush2.bf16.msra.mxu0 %v900
    %1177 = vmatprep.subr.bf16.mxu0 %v897
    %1178 = vmatpush2.bf16.msra.mxu0 %v896
    %1179 = vmatprep.subr.bf16.mxu0 %v893
    %1180 = vmatpush2.bf16.msra.mxu0 %v892
    %1181 = vmatprep.subr.bf16.mxu0 %v889
    %1182 = vmatpush2.bf16.msra.mxu0 %v888
    %1183 = vmatprep.subr.bf16.mxu0 %v885
    %1184 = vmatpush2.bf16.msra.mxu0 %v884
    %1185 = vmatprep.subr.bf16.mxu0 %v881
    %1186 = vmatpush2.bf16.msra.mxu0 %v880
    %1187 = vmatprep.subr.bf16.mxu0 %v877
    %1188 = vmatpush2.bf16.msra.mxu0 %v876
    %1189 = vmatprep.subr.bf16.mxu0 %v873
    %1190 = vmatpush2.bf16.msra.mxu0 %v872
    %1191 = vmatprep.mubr.bf16.mxu0 %v239
    %1192 = vmatmul.mubr.bf16.gmra.mxu0 %v238
    %v1193 = vpop.f32.mrf.mxu0
    %v1194 = vadd.f32 %v1151, %v1193
    %v1195 = vpop.f32.mrf.mxu0
    %v1196 = vadd.f32 %v1153, %v1195
    %v1197 = vpop.f32.mrf.mxu0
    %v1198 = vadd.f32 %v1155, %v1197
    %v1199 = vpop.f32.mrf.mxu0
    %v1200 = vadd.f32 %v1157, %v1199
    %1201 = vdwg.mxu0
    %v1202 = vmax.f32 %v1108, 0.0
    %v1203 = vmax.f32 %v1110, 0.0
    %v1204 = vmax.f32 %v1194, 0.0
    %v1205 = vmax.f32 %v1196, 0.0
    %v1206 = vmax.f32 %v1112, 0.0
    %v1207 = vmax.f32 %v1114, 0.0
    %v1208 = vmax.f32 %v1198, 0.0
    %v1209 = vmax.f32 %v1200, 0.0
    %v1210 = vpack.c.bf16 %v1206, %v1202
    %v1211 = vpack.c.bf16 %v1207, %v1203
    %v1212 = vpack.c.bf16 %v1208, %v1204
    %v1213 = vpack.c.bf16 %v1209, %v1205
    %v1214 = vld [vmem:[#allocation4] sm:$0xff]
    %v1215 = vld [vmem:[#allocation4 + $0x8] sm:$0xff]
    %v1216 = vld [vmem:[#allocation4 + $0x10] sm:$0xff]
    %v1217 = vld [vmem:[#allocation4 + $0x18] sm:$0xff]
    %v1218 = vld [vmem:[#allocation4 + $0x20] sm:$0xff]
    %v1219 = vld [vmem:[#allocation4 + $0x28] sm:$0xff]
    %v1220 = vld [vmem:[#allocation4 + $0x30] sm:$0xff]
    %v1221 = vld [vmem:[#allocation4 + $0x38] sm:$0xff]
    %v1222 = vld [vmem:[#allocation4 + $0x40] sm:$0xff]
    %v1223 = vld [vmem:[#allocation4 + $0x48] sm:$0xff]
    %v1224 = vld [vmem:[#allocation4 + $0x50] sm:$0xff]
    %v1225 = vld [vmem:[#allocation4 + $0x58] sm:$0xff]
    %v1226 = vld [vmem:[#allocation4 + $0x60] sm:$0xff]
    %v1227 = vld [vmem:[#allocation4 + $0x68] sm:$0xff]
    %v1228 = vld [vmem:[#allocation4 + $0x70] sm:$0xff]
    %v1229 = vld [vmem:[#allocation4 + $0x78] sm:$0xff]
    %v1230 = vld [vmem:[#allocation4 + $0x80] sm:$0xff]
    %v1231 = vld [vmem:[#allocation4 + $0x88] sm:$0xff]
    %v1232 = vld [vmem:[#allocation4 + $0x90] sm:$0xff]
    %v1233 = vld [vmem:[#allocation4 + $0x98] sm:$0xff]
    %v1234 = vld [vmem:[#allocation4 + $0xa0] sm:$0xff]
    %v1235 = vld [vmem:[#allocation4 + $0xa8] sm:$0xff]
    %v1236 = vld [vmem:[#allocation4 + $0xb0] sm:$0xff]
    %v1237 = vld [vmem:[#allocation4 + $0xb8] sm:$0xff]
    %v1238 = vld [vmem:[#allocation4 + $0xc0] sm:$0xff]
    %v1239 = vld [vmem:[#allocation4 + $0xc8] sm:$0xff]
    %v1240 = vld [vmem:[#allocation4 + $0xd0] sm:$0xff]
    %v1241 = vld [vmem:[#allocation4 + $0xd8] sm:$0xff]
    %v1242 = vld [vmem:[#allocation4 + $0xe0] sm:$0xff]
    %v1243 = vld [vmem:[#allocation4 + $0xe8] sm:$0xff]
    %v1244 = vld [vmem:[#allocation4 + $0xf0] sm:$0xff]
    %v1245 = vld [vmem:[#allocation4 + $0xf8] sm:$0xff]
    %v1246 = vld [vmem:[#allocation4 + $0x100] sm:$0xff]
    %v1247 = vld [vmem:[#allocation4 + $0x108] sm:$0xff]
    %v1248 = vld [vmem:[#allocation4 + $0x110] sm:$0xff]
    %v1249 = vld [vmem:[#allocation4 + $0x118] sm:$0xff]
    %v1250 = vld [vmem:[#allocation4 + $0x120] sm:$0xff]
    %v1251 = vld [vmem:[#allocation4 + $0x128] sm:$0xff]
    %v1252 = vld [vmem:[#allocation4 + $0x130] sm:$0xff]
    %v1253 = vld [vmem:[#allocation4 + $0x138] sm:$0xff]
    %v1254 = vld [vmem:[#allocation4 + $0x140] sm:$0xff]
    %v1255 = vld [vmem:[#allocation4 + $0x148] sm:$0xff]
    %v1256 = vld [vmem:[#allocation4 + $0x150] sm:$0xff]
    %v1257 = vld [vmem:[#allocation4 + $0x158] sm:$0xff]
    %v1258 = vld [vmem:[#allocation4 + $0x160] sm:$0xff]
    %v1259 = vld [vmem:[#allocation4 + $0x168] sm:$0xff]
    %v1260 = vld [vmem:[#allocation4 + $0x170] sm:$0xff]
    %v1261 = vld [vmem:[#allocation4 + $0x178] sm:$0xff]
    %v1262 = vld [vmem:[#allocation4 + $0x180] sm:$0xff]
    %v1263 = vld [vmem:[#allocation4 + $0x188] sm:$0xff]
    %v1264 = vld [vmem:[#allocation4 + $0x190] sm:$0xff]
    %v1265 = vld [vmem:[#allocation4 + $0x198] sm:$0xff]
    %v1266 = vld [vmem:[#allocation4 + $0x1a0] sm:$0xff]
    %v1267 = vld [vmem:[#allocation4 + $0x1a8] sm:$0xff]
    %v1268 = vld [vmem:[#allocation4 + $0x1b0] sm:$0xff]
    %v1269 = vld [vmem:[#allocation4 + $0x1b8] sm:$0xff]
    %v1270 = vld [vmem:[#allocation4 + $0x1c0] sm:$0xff]
    %v1271 = vld [vmem:[#allocation4 + $0x1c8] sm:$0xff]
    %v1272 = vld [vmem:[#allocation4 + $0x1d0] sm:$0xff]
    %v1273 = vld [vmem:[#allocation4 + $0x1d8] sm:$0xff]
    %v1274 = vld [vmem:[#allocation4 + $0x1e0] sm:$0xff]
    %v1275 = vld [vmem:[#allocation4 + $0x1e8] sm:$0xff]
    %v1276 = vld [vmem:[#allocation4 + $0x1f0] sm:$0xff]
    %v1277 = vld [vmem:[#allocation4 + $0x1f8] sm:$0xff]
    %v1278 = vld [vmem:[#allocation4 + $0x200] sm:$0xff]
    %v1279 = vld [vmem:[#allocation4 + $0x208] sm:$0xff]
    %v1280 = vld [vmem:[#allocation4 + $0x210] sm:$0xff]
    %v1281 = vld [vmem:[#allocation4 + $0x218] sm:$0xff]
    %v1282 = vld [vmem:[#allocation4 + $0x220] sm:$0xff]
    %v1283 = vld [vmem:[#allocation4 + $0x228] sm:$0xff]
    %v1284 = vld [vmem:[#allocation4 + $0x230] sm:$0xff]
    %v1285 = vld [vmem:[#allocation4 + $0x238] sm:$0xff]
    %v1286 = vld [vmem:[#allocation4 + $0x240] sm:$0xff]
    %v1287 = vld [vmem:[#allocation4 + $0x248] sm:$0xff]
    %v1288 = vld [vmem:[#allocation4 + $0x250] sm:$0xff]
    %v1289 = vld [vmem:[#allocation4 + $0x258] sm:$0xff]
    %v1290 = vld [vmem:[#allocation4 + $0x260] sm:$0xff]
    %v1291 = vld [vmem:[#allocation4 + $0x268] sm:$0xff]
    %v1292 = vld [vmem:[#allocation4 + $0x270] sm:$0xff]
    %v1293 = vld [vmem:[#allocation4 + $0x278] sm:$0xff]
    %v1294 = vld [vmem:[#allocation4 + $0x280] sm:$0xff]
    %v1295 = vld [vmem:[#allocation4 + $0x288] sm:$0xff]
    %v1296 = vld [vmem:[#allocation4 + $0x290] sm:$0xff]
    %v1297 = vld [vmem:[#allocation4 + $0x298] sm:$0xff]
    %v1298 = vld [vmem:[#allocation4 + $0x2a0] sm:$0xff]
    %v1299 = vld [vmem:[#allocation4 + $0x2a8] sm:$0xff]
    %v1300 = vld [vmem:[#allocation4 + $0x2b0] sm:$0xff]
    %v1301 = vld [vmem:[#allocation4 + $0x2b8] sm:$0xff]
    %v1302 = vld [vmem:[#allocation4 + $0x2c0] sm:$0xff]
    %v1303 = vld [vmem:[#allocation4 + $0x2c8] sm:$0xff]
    %v1304 = vld [vmem:[#allocation4 + $0x2d0] sm:$0xff]
    %v1305 = vld [vmem:[#allocation4 + $0x2d8] sm:$0xff]
    %v1306 = vld [vmem:[#allocation4 + $0x2e0] sm:$0xff]
    %v1307 = vld [vmem:[#allocation4 + $0x2e8] sm:$0xff]
    %v1308 = vld [vmem:[#allocation4 + $0x2f0] sm:$0xff]
    %v1309 = vld [vmem:[#allocation4 + $0x2f8] sm:$0xff]
    %v1310 = vld [vmem:[#allocation4 + $0x300] sm:$0xff]
    %v1311 = vld [vmem:[#allocation4 + $0x308] sm:$0xff]
    %v1312 = vld [vmem:[#allocation4 + $0x310] sm:$0xff]
    %v1313 = vld [vmem:[#allocation4 + $0x318] sm:$0xff]
    %v1314 = vld [vmem:[#allocation4 + $0x320] sm:$0xff]
    %v1315 = vld [vmem:[#allocation4 + $0x328] sm:$0xff]
    %v1316 = vld [vmem:[#allocation4 + $0x330] sm:$0xff]
    %v1317 = vld [vmem:[#allocation4 + $0x338] sm:$0xff]
    %v1318 = vld [vmem:[#allocation4 + $0x340] sm:$0xff]
    %v1319 = vld [vmem:[#allocation4 + $0x348] sm:$0xff]
    %v1320 = vld [vmem:[#allocation4 + $0x350] sm:$0xff]
    %v1321 = vld [vmem:[#allocation4 + $0x358] sm:$0xff]
    %v1322 = vld [vmem:[#allocation4 + $0x360] sm:$0xff]
    %v1323 = vld [vmem:[#allocation4 + $0x368] sm:$0xff]
    %v1324 = vld [vmem:[#allocation4 + $0x370] sm:$0xff]
    %v1325 = vld [vmem:[#allocation4 + $0x378] sm:$0xff]
    %v1326 = vld [vmem:[#allocation4 + $0x380] sm:$0xff]
    %v1327 = vld [vmem:[#allocation4 + $0x388] sm:$0xff]
    %v1328 = vld [vmem:[#allocation4 + $0x390] sm:$0xff]
    %v1329 = vld [vmem:[#allocation4 + $0x398] sm:$0xff]
    %v1330 = vld [vmem:[#allocation4 + $0x3a0] sm:$0xff]
    %v1331 = vld [vmem:[#allocation4 + $0x3a8] sm:$0xff]
    %v1332 = vld [vmem:[#allocation4 + $0x3b0] sm:$0xff]
    %v1333 = vld [vmem:[#allocation4 + $0x3b8] sm:$0xff]
    %v1334 = vld [vmem:[#allocation4 + $0x3c0] sm:$0xff]
    %v1335 = vld [vmem:[#allocation4 + $0x3c8] sm:$0xff]
    %v1336 = vld [vmem:[#allocation4 + $0x3d0] sm:$0xff]
    %v1337 = vld [vmem:[#allocation4 + $0x3d8] sm:$0xff]
    %v1338 = vld [vmem:[#allocation4 + $0x3e0] sm:$0xff]
    %v1339 = vld [vmem:[#allocation4 + $0x3e8] sm:$0xff]
    %v1340 = vld [vmem:[#allocation4 + $0x3f0] sm:$0xff]
    %v1341 = vld [vmem:[#allocation4 + $0x3f8] sm:$0xff]
    %v1342 = vld [vmem:[%s6] sm:$0xf]
    %v1344 = vlaneseq
    %v1345 = vshrl.u32 %v1344, 7
    %v1346 = vsub.s32 0, %v1345
    %v1347 = vrot.slane %v1342, %v1346
    %v1348 = vlaneseq
    %v1349 = vshrl.u32 %v1348, 7
    %v1350 = vsub.s32 1, %v1349
    %v1351 = vrot.slane %v1342, %v1350
    %v1352 = vlaneseq
    %v1353 = vshrl.u32 %v1352, 7
    %v1354 = vsub.s32 2, %v1353
    %v1355 = vrot.slane %v1342, %v1354
    %v1356 = vlaneseq
    %v1357 = vshrl.u32 %v1356, 7
    %v1358 = vsub.s32 3, %v1357
    %v1359 = vrot.slane %v1342, %v1358
    %v1492 = vunpack.c.l.b16 %v1214
    %v1493 = vunpack.c.h.b16 %v1214
    %v1494 = vunpack.c.l.b16 %v1215
    %v1495 = vunpack.c.h.b16 %v1215
    %v1496 = vunpack.c.l.b16 %v1216
    %v1497 = vunpack.c.h.b16 %v1216
    %v1498 = vunpack.c.l.b16 %v1217
    %v1499 = vunpack.c.h.b16 %v1217
    %v1500 = vunpack.c.l.b16 %v1218
    %v1501 = vunpack.c.h.b16 %v1218
    %v1502 = vunpack.c.l.b16 %v1219
    %v1503 = vunpack.c.h.b16 %v1219
    %v1504 = vunpack.c.l.b16 %v1220
    %v1505 = vunpack.c.h.b16 %v1220
    %v1506 = vunpack.c.l.b16 %v1221
    %v1507 = vunpack.c.h.b16 %v1221
    %v1508 = vunpack.c.l.b16 %v1222
    %v1509 = vunpack.c.h.b16 %v1222
    %v1510 = vunpack.c.l.b16 %v1223
    %v1511 = vunpack.c.h.b16 %v1223
    %v1512 = vunpack.c.l.b16 %v1224
    %v1513 = vunpack.c.h.b16 %v1224
    %v1514 = vunpack.c.l.b16 %v1225
    %v1515 = vunpack.c.h.b16 %v1225
    %v1516 = vunpack.c.l.b16 %v1226
    %v1517 = vunpack.c.h.b16 %v1226
    %v1518 = vunpack.c.l.b16 %v1227
    %v1519 = vunpack.c.h.b16 %v1227
    %v1520 = vunpack.c.l.b16 %v1228
    %v1521 = vunpack.c.h.b16 %v1228
    %v1522 = vunpack.c.l.b16 %v1229
    %v1523 = vunpack.c.h.b16 %v1229
    %v1524 = vunpack.c.l.b16 %v1230
    %v1525 = vunpack.c.h.b16 %v1230
    %v1526 = vunpack.c.l.b16 %v1231
    %v1527 = vunpack.c.h.b16 %v1231
    %v1528 = vunpack.c.l.b16 %v1232
    %v1529 = vunpack.c.h.b16 %v1232
    %v1530 = vunpack.c.l.b16 %v1233
    %v1531 = vunpack.c.h.b16 %v1233
    %v1532 = vunpack.c.l.b16 %v1234
    %v1533 = vunpack.c.h.b16 %v1234
    %v1534 = vunpack.c.l.b16 %v1235
    %v1535 = vunpack.c.h.b16 %v1235
    %v1536 = vunpack.c.l.b16 %v1236
    %v1537 = vunpack.c.h.b16 %v1236
    %v1538 = vunpack.c.l.b16 %v1237
    %v1539 = vunpack.c.h.b16 %v1237
    %v1540 = vunpack.c.l.b16 %v1238
    %v1541 = vunpack.c.h.b16 %v1238
    %v1542 = vunpack.c.l.b16 %v1239
    %v1543 = vunpack.c.h.b16 %v1239
    %v1544 = vunpack.c.l.b16 %v1240
    %v1545 = vunpack.c.h.b16 %v1240
    %v1546 = vunpack.c.l.b16 %v1241
    %v1547 = vunpack.c.h.b16 %v1241
    %v1548 = vunpack.c.l.b16 %v1242
    %v1549 = vunpack.c.h.b16 %v1242
    %v1550 = vunpack.c.l.b16 %v1243
    %v1551 = vunpack.c.h.b16 %v1243
    %v1552 = vunpack.c.l.b16 %v1244
    %v1553 = vunpack.c.h.b16 %v1244
    %v1554 = vunpack.c.l.b16 %v1245
    %v1555 = vunpack.c.h.b16 %v1245
    %v1556 = vunpack.c.l.b16 %v1246
    %v1557 = vunpack.c.h.b16 %v1246
    %v1558 = vunpack.c.l.b16 %v1247
    %v1559 = vunpack.c.h.b16 %v1247
    %v1560 = vunpack.c.l.b16 %v1248
    %v1561 = vunpack.c.h.b16 %v1248
    %v1562 = vunpack.c.l.b16 %v1249
    %v1563 = vunpack.c.h.b16 %v1249
    %v1564 = vunpack.c.l.b16 %v1250
    %v1565 = vunpack.c.h.b16 %v1250
    %v1566 = vunpack.c.l.b16 %v1251
    %v1567 = vunpack.c.h.b16 %v1251
    %v1568 = vunpack.c.l.b16 %v1252
    %v1569 = vunpack.c.h.b16 %v1252
    %v1570 = vunpack.c.l.b16 %v1253
    %v1571 = vunpack.c.h.b16 %v1253
    %v1572 = vunpack.c.l.b16 %v1254
    %v1573 = vunpack.c.h.b16 %v1254
    %v1574 = vunpack.c.l.b16 %v1255
    %v1575 = vunpack.c.h.b16 %v1255
    %v1576 = vunpack.c.l.b16 %v1256
    %v1577 = vunpack.c.h.b16 %v1256
    %v1578 = vunpack.c.l.b16 %v1257
    %v1579 = vunpack.c.h.b16 %v1257
    %v1580 = vunpack.c.l.b16 %v1258
    %v1581 = vunpack.c.h.b16 %v1258
    %v1582 = vunpack.c.l.b16 %v1259
    %v1583 = vunpack.c.h.b16 %v1259
    %v1584 = vunpack.c.l.b16 %v1260
    %v1585 = vunpack.c.h.b16 %v1260
    %v1586 = vunpack.c.l.b16 %v1261
    %v1587 = vunpack.c.h.b16 %v1261
    %v1588 = vunpack.c.l.b16 %v1262
    %v1589 = vunpack.c.h.b16 %v1262
    %v1590 = vunpack.c.l.b16 %v1263
    %v1591 = vunpack.c.h.b16 %v1263
    %v1592 = vunpack.c.l.b16 %v1264
    %v1593 = vunpack.c.h.b16 %v1264
    %v1594 = vunpack.c.l.b16 %v1265
    %v1595 = vunpack.c.h.b16 %v1265
    %v1596 = vunpack.c.l.b16 %v1266
    %v1597 = vunpack.c.h.b16 %v1266
    %v1598 = vunpack.c.l.b16 %v1267
    %v1599 = vunpack.c.h.b16 %v1267
    %v1600 = vunpack.c.l.b16 %v1268
    %v1601 = vunpack.c.h.b16 %v1268
    %v1602 = vunpack.c.l.b16 %v1269
    %v1603 = vunpack.c.h.b16 %v1269
    %v1604 = vunpack.c.l.b16 %v1270
    %v1605 = vunpack.c.h.b16 %v1270
    %v1606 = vunpack.c.l.b16 %v1271
    %v1607 = vunpack.c.h.b16 %v1271
    %v1608 = vunpack.c.l.b16 %v1272
    %v1609 = vunpack.c.h.b16 %v1272
    %v1610 = vunpack.c.l.b16 %v1273
    %v1611 = vunpack.c.h.b16 %v1273
    %v1612 = vunpack.c.l.b16 %v1274
    %v1613 = vunpack.c.h.b16 %v1274
    %v1614 = vunpack.c.l.b16 %v1275
    %v1615 = vunpack.c.h.b16 %v1275
    %v1616 = vunpack.c.l.b16 %v1276
    %v1617 = vunpack.c.h.b16 %v1276
    %v1618 = vunpack.c.l.b16 %v1277
    %v1619 = vunpack.c.h.b16 %v1277
    %v1620 = vunpack.c.l.b16 %v1278
    %v1621 = vunpack.c.h.b16 %v1278
    %v1622 = vunpack.c.l.b16 %v1279
    %v1623 = vunpack.c.h.b16 %v1279
    %v1624 = vunpack.c.l.b16 %v1280
    %v1625 = vunpack.c.h.b16 %v1280
    %v1626 = vunpack.c.l.b16 %v1281
    %v1627 = vunpack.c.h.b16 %v1281
    %v1628 = vunpack.c.l.b16 %v1282
    %v1629 = vunpack.c.h.b16 %v1282
    %v1630 = vunpack.c.l.b16 %v1283
    %v1631 = vunpack.c.h.b16 %v1283
    %v1632 = vunpack.c.l.b16 %v1284
    %v1633 = vunpack.c.h.b16 %v1284
    %v1634 = vunpack.c.l.b16 %v1285
    %v1635 = vunpack.c.h.b16 %v1285
    %v1636 = vunpack.c.l.b16 %v1286
    %v1637 = vunpack.c.h.b16 %v1286
    %v1638 = vunpack.c.l.b16 %v1287
    %v1639 = vunpack.c.h.b16 %v1287
    %v1640 = vunpack.c.l.b16 %v1288
    %v1641 = vunpack.c.h.b16 %v1288
    %v1642 = vunpack.c.l.b16 %v1289
    %v1643 = vunpack.c.h.b16 %v1289
    %v1644 = vunpack.c.l.b16 %v1290
    %v1645 = vunpack.c.h.b16 %v1290
    %v1646 = vunpack.c.l.b16 %v1291
    %v1647 = vunpack.c.h.b16 %v1291
    %v1648 = vunpack.c.l.b16 %v1292
    %v1649 = vunpack.c.h.b16 %v1292
    %v1650 = vunpack.c.l.b16 %v1293
    %v1651 = vunpack.c.h.b16 %v1293
    %v1652 = vunpack.c.l.b16 %v1294
    %v1653 = vunpack.c.h.b16 %v1294
    %v1654 = vunpack.c.l.b16 %v1295
    %v1655 = vunpack.c.h.b16 %v1295
    %v1656 = vunpack.c.l.b16 %v1296
    %v1657 = vunpack.c.h.b16 %v1296
    %v1658 = vunpack.c.l.b16 %v1297
    %v1659 = vunpack.c.h.b16 %v1297
    %v1660 = vunpack.c.l.b16 %v1298
    %v1661 = vunpack.c.h.b16 %v1298
    %v1662 = vunpack.c.l.b16 %v1299
    %v1663 = vunpack.c.h.b16 %v1299
    %v1664 = vunpack.c.l.b16 %v1300
    %v1665 = vunpack.c.h.b16 %v1300
    %v1666 = vunpack.c.l.b16 %v1301
    %v1667 = vunpack.c.h.b16 %v1301
    %v1668 = vunpack.c.l.b16 %v1302
    %v1669 = vunpack.c.h.b16 %v1302
    %v1670 = vunpack.c.l.b16 %v1303
    %v1671 = vunpack.c.h.b16 %v1303
    %v1672 = vunpack.c.l.b16 %v1304
    %v1673 = vunpack.c.h.b16 %v1304
    %v1674 = vunpack.c.l.b16 %v1305
    %v1675 = vunpack.c.h.b16 %v1305
    %v1676 = vunpack.c.l.b16 %v1306
    %v1677 = vunpack.c.h.b16 %v1306
    %v1678 = vunpack.c.l.b16 %v1307
    %v1679 = vunpack.c.h.b16 %v1307
    %v1680 = vunpack.c.l.b16 %v1308
    %v1681 = vunpack.c.h.b16 %v1308
    %v1682 = vunpack.c.l.b16 %v1309
    %v1683 = vunpack.c.h.b16 %v1309
    %v1684 = vunpack.c.l.b16 %v1310
    %v1685 = vunpack.c.h.b16 %v1310
    %v1686 = vunpack.c.l.b16 %v1311
    %v1687 = vunpack.c.h.b16 %v1311
    %v1688 = vunpack.c.l.b16 %v1312
    %v1689 = vunpack.c.h.b16 %v1312
    %v1690 = vunpack.c.l.b16 %v1313
    %v1691 = vunpack.c.h.b16 %v1313
    %v1692 = vunpack.c.l.b16 %v1314
    %v1693 = vunpack.c.h.b16 %v1314
    %v1694 = vunpack.c.l.b16 %v1315
    %v1695 = vunpack.c.h.b16 %v1315
    %v1696 = vunpack.c.l.b16 %v1316
    %v1697 = vunpack.c.h.b16 %v1316
    %v1698 = vunpack.c.l.b16 %v1317
    %v1699 = vunpack.c.h.b16 %v1317
    %v1700 = vunpack.c.l.b16 %v1318
    %v1701 = vunpack.c.h.b16 %v1318
    %v1702 = vunpack.c.l.b16 %v1319
    %v1703 = vunpack.c.h.b16 %v1319
    %v1704 = vunpack.c.l.b16 %v1320
    %v1705 = vunpack.c.h.b16 %v1320
    %v1706 = vunpack.c.l.b16 %v1321
    %v1707 = vunpack.c.h.b16 %v1321
    %v1708 = vunpack.c.l.b16 %v1322
    %v1709 = vunpack.c.h.b16 %v1322
    %v1710 = vunpack.c.l.b16 %v1323
    %v1711 = vunpack.c.h.b16 %v1323
    %v1712 = vunpack.c.l.b16 %v1324
    %v1713 = vunpack.c.h.b16 %v1324
    %v1714 = vunpack.c.l.b16 %v1325
    %v1715 = vunpack.c.h.b16 %v1325
    %v1716 = vunpack.c.l.b16 %v1326
    %v1717 = vunpack.c.h.b16 %v1326
    %v1718 = vunpack.c.l.b16 %v1327
    %v1719 = vunpack.c.h.b16 %v1327
    %v1720 = vunpack.c.l.b16 %v1328
    %v1721 = vunpack.c.h.b16 %v1328
    %v1722 = vunpack.c.l.b16 %v1329
    %v1723 = vunpack.c.h.b16 %v1329
    %v1724 = vunpack.c.l.b16 %v1330
    %v1725 = vunpack.c.h.b16 %v1330
    %v1726 = vunpack.c.l.b16 %v1331
    %v1727 = vunpack.c.h.b16 %v1331
    %v1728 = vunpack.c.l.b16 %v1332
    %v1729 = vunpack.c.h.b16 %v1332
    %v1730 = vunpack.c.l.b16 %v1333
    %v1731 = vunpack.c.h.b16 %v1333
    %v1732 = vunpack.c.l.b16 %v1334
    %v1733 = vunpack.c.h.b16 %v1334
    %v1734 = vunpack.c.l.b16 %v1335
    %v1735 = vunpack.c.h.b16 %v1335
    %v1736 = vunpack.c.l.b16 %v1336
    %v1737 = vunpack.c.h.b16 %v1336
    %v1738 = vunpack.c.l.b16 %v1337
    %v1739 = vunpack.c.h.b16 %v1337
    %v1740 = vunpack.c.l.b16 %v1338
    %v1741 = vunpack.c.h.b16 %v1338
    %v1742 = vunpack.c.l.b16 %v1339
    %v1743 = vunpack.c.h.b16 %v1339
    %v1744 = vunpack.c.l.b16 %v1340
    %v1745 = vunpack.c.h.b16 %v1340
    %v1746 = vunpack.c.l.b16 %v1341
    %v1747 = vunpack.c.h.b16 %v1341
    %v1748 = vpack.c.b16 %v1496, %v1492
    %v1749 = vpack.c.b16 %v1497, %v1493
    %v1750 = vpack.c.b16 %v1498, %v1494
    %v1751 = vpack.c.b16 %v1499, %v1495
    %v1752 = vpack.c.b16 %v1504, %v1500
    %v1753 = vpack.c.b16 %v1505, %v1501
    %v1754 = vpack.c.b16 %v1506, %v1502
    %v1755 = vpack.c.b16 %v1507, %v1503
    %v1756 = vpack.c.b16 %v1512, %v1508
    %v1757 = vpack.c.b16 %v1513, %v1509
    %v1758 = vpack.c.b16 %v1514, %v1510
    %v1759 = vpack.c.b16 %v1515, %v1511
    %v1760 = vpack.c.b16 %v1520, %v1516
    %v1761 = vpack.c.b16 %v1521, %v1517
    %v1762 = vpack.c.b16 %v1522, %v1518
    %v1763 = vpack.c.b16 %v1523, %v1519
    %v1764 = vpack.c.b16 %v1528, %v1524
    %v1765 = vpack.c.b16 %v1529, %v1525
    %v1766 = vpack.c.b16 %v1530, %v1526
    %v1767 = vpack.c.b16 %v1531, %v1527
    %v1768 = vpack.c.b16 %v1536, %v1532
    %v1769 = vpack.c.b16 %v1537, %v1533
    %v1770 = vpack.c.b16 %v1538, %v1534
    %v1771 = vpack.c.b16 %v1539, %v1535
    %v1772 = vpack.c.b16 %v1544, %v1540
    %v1773 = vpack.c.b16 %v1545, %v1541
    %v1774 = vpack.c.b16 %v1546, %v1542
    %v1775 = vpack.c.b16 %v1547, %v1543
    %v1776 = vpack.c.b16 %v1552, %v1548
    %v1777 = vpack.c.b16 %v1553, %v1549
    %v1778 = vpack.c.b16 %v1554, %v1550
    %v1779 = vpack.c.b16 %v1555, %v1551
    %v1780 = vpack.c.b16 %v1560, %v1556
    %v1781 = vpack.c.b16 %v1561, %v1557
    %v1782 = vpack.c.b16 %v1562, %v1558
    %v1783 = vpack.c.b16 %v1563, %v1559
    %v1784 = vpack.c.b16 %v1568, %v1564
    %v1785 = vpack.c.b16 %v1569, %v1565
    %v1786 = vpack.c.b16 %v1570, %v1566
    %v1787 = vpack.c.b16 %v1571, %v1567
    %v1788 = vpack.c.b16 %v1576, %v1572
    %v1789 = vpack.c.b16 %v1577, %v1573
    %v1790 = vpack.c.b16 %v1578, %v1574
    %v1791 = vpack.c.b16 %v1579, %v1575
    %v1792 = vpack.c.b16 %v1584, %v1580
    %v1793 = vpack.c.b16 %v1585, %v1581
    %v1794 = vpack.c.b16 %v1586, %v1582
    %v1795 = vpack.c.b16 %v1587, %v1583
    %v1796 = vpack.c.b16 %v1592, %v1588
    %v1797 = vpack.c.b16 %v1593, %v1589
    %v1798 = vpack.c.b16 %v1594, %v1590
    %v1799 = vpack.c.b16 %v1595, %v1591
    %v1800 = vpack.c.b16 %v1600, %v1596
    %v1801 = vpack.c.b16 %v1601, %v1597
    %v1802 = vpack.c.b16 %v1602, %v1598
    %v1803 = vpack.c.b16 %v1603, %v1599
    %v1804 = vpack.c.b16 %v1608, %v1604
    %v1805 = vpack.c.b16 %v1609, %v1605
    %v1806 = vpack.c.b16 %v1610, %v1606
    %v1807 = vpack.c.b16 %v1611, %v1607
    %v1808 = vpack.c.b16 %v1616, %v1612
    %v1809 = vpack.c.b16 %v1617, %v1613
    %v1810 = vpack.c.b16 %v1618, %v1614
    %v1811 = vpack.c.b16 %v1619, %v1615
    %v1812 = vpack.c.b16 %v1624, %v1620
    %v1813 = vpack.c.b16 %v1625, %v1621
    %v1814 = vpack.c.b16 %v1626, %v1622
    %v1815 = vpack.c.b16 %v1627, %v1623
    %v1816 = vpack.c.b16 %v1632, %v1628
    %v1817 = vpack.c.b16 %v1633, %v1629
    %v1818 = vpack.c.b16 %v1634, %v1630
    %v1819 = vpack.c.b16 %v1635, %v1631
    %v1820 = vpack.c.b16 %v1640, %v1636
    %v1821 = vpack.c.b16 %v1641, %v1637
    %v1822 = vpack.c.b16 %v1642, %v1638
    %v1823 = vpack.c.b16 %v1643, %v1639
    %v1824 = vpack.c.b16 %v1648, %v1644
    %v1825 = vpack.c.b16 %v1649, %v1645
    %v1826 = vpack.c.b16 %v1650, %v1646
    %v1827 = vpack.c.b16 %v1651, %v1647
    %v1828 = vpack.c.b16 %v1656, %v1652
    %v1829 = vpack.c.b16 %v1657, %v1653
    %v1830 = vpack.c.b16 %v1658, %v1654
    %v1831 = vpack.c.b16 %v1659, %v1655
    %v1832 = vpack.c.b16 %v1664, %v1660
    %v1833 = vpack.c.b16 %v1665, %v1661
    %v1834 = vpack.c.b16 %v1666, %v1662
    %v1835 = vpack.c.b16 %v1667, %v1663
    %v1836 = vpack.c.b16 %v1672, %v1668
    %v1837 = vpack.c.b16 %v1673, %v1669
    %v1838 = vpack.c.b16 %v1674, %v1670
    %v1839 = vpack.c.b16 %v1675, %v1671
    %v1840 = vpack.c.b16 %v1680, %v1676
    %v1841 = vpack.c.b16 %v1681, %v1677
    %v1842 = vpack.c.b16 %v1682, %v1678
    %v1843 = vpack.c.b16 %v1683, %v1679
    %v1844 = vpack.c.b16 %v1688, %v1684
    %v1845 = vpack.c.b16 %v1689, %v1685
    %v1846 = vpack.c.b16 %v1690, %v1686
    %v1847 = vpack.c.b16 %v1691, %v1687
    %v1848 = vpack.c.b16 %v1696, %v1692
    %v1849 = vpack.c.b16 %v1697, %v1693
    %v1850 = vpack.c.b16 %v1698, %v1694
    %v1851 = vpack.c.b16 %v1699, %v1695
    %v1852 = vpack.c.b16 %v1704, %v1700
    %v1853 = vpack.c.b16 %v1705, %v1701
    %v1854 = vpack.c.b16 %v1706, %v1702
    %v1855 = vpack.c.b16 %v1707, %v1703
    %v1856 = vpack.c.b16 %v1712, %v1708
    %v1857 = vpack.c.b16 %v1713, %v1709
    %v1858 = vpack.c.b16 %v1714, %v1710
    %v1859 = vpack.c.b16 %v1715, %v1711
    %v1860 = vpack.c.b16 %v1720, %v1716
    %v1861 = vpack.c.b16 %v1721, %v1717
    %v1862 = vpack.c.b16 %v1722, %v1718
    %v1863 = vpack.c.b16 %v1723, %v1719
    %v1864 = vpack.c.b16 %v1728, %v1724
    %v1865 = vpack.c.b16 %v1729, %v1725
    %v1866 = vpack.c.b16 %v1730, %v1726
    %v1867 = vpack.c.b16 %v1731, %v1727
    %v1868 = vpack.c.b16 %v1736, %v1732
    %v1869 = vpack.c.b16 %v1737, %v1733
    %v1870 = vpack.c.b16 %v1738, %v1734
    %v1871 = vpack.c.b16 %v1739, %v1735
    %v1872 = vpack.c.b16 %v1744, %v1740
    %v1873 = vpack.c.b16 %v1745, %v1741
    %v1874 = vpack.c.b16 %v1746, %v1742
    %v1875 = vpack.c.b16 %v1747, %v1743
    %2004 = vmatprep.subr.bf16.mxu0 %v1777
    %2005 = vmatpush1.bf16.msra.mxu0 %v1776
    %2006 = vmatprep.subr.bf16.mxu0 %v1773
    %2007 = vmatpush1.bf16.msra.mxu0 %v1772
    %2008 = vmatprep.subr.bf16.mxu0 %v1769
    %2009 = vmatpush1.bf16.msra.mxu0 %v1768
    %2010 = vmatprep.subr.bf16.mxu0 %v1765
    %2011 = vmatpush1.bf16.msra.mxu0 %v1764
    %2012 = vmatprep.subr.bf16.mxu0 %v1761
    %2013 = vmatpush1.bf16.msra.mxu0 %v1760
    %2014 = vmatprep.subr.bf16.mxu0 %v1757
    %2015 = vmatpush1.bf16.msra.mxu0 %v1756
    %2016 = vmatprep.subr.bf16.mxu0 %v1753
    %2017 = vmatpush1.bf16.msra.mxu0 %v1752
    %2018 = vmatprep.subr.bf16.mxu0 %v1749
    %2019 = vmatpush1.bf16.msra.mxu0 %v1748
    %2020 = vmatprep.subr.bf16.mxu0 %v1809
    %2021 = vmatpush2.bf16.msra.mxu0 %v1808
    %2022 = vmatprep.subr.bf16.mxu0 %v1805
    %2023 = vmatpush2.bf16.msra.mxu0 %v1804
    %2024 = vmatprep.subr.bf16.mxu0 %v1801
    %2025 = vmatpush2.bf16.msra.mxu0 %v1800
    %2026 = vmatprep.subr.bf16.mxu0 %v1797
    %2027 = vmatpush2.bf16.msra.mxu0 %v1796
    %2028 = vmatprep.subr.bf16.mxu0 %v1793
    %2029 = vmatpush2.bf16.msra.mxu0 %v1792
    %2030 = vmatprep.subr.bf16.mxu0 %v1789
    %2031 = vmatpush2.bf16.msra.mxu0 %v1788
    %2032 = vmatprep.subr.bf16.mxu0 %v1785
    %2033 = vmatpush2.bf16.msra.mxu0 %v1784
    %2034 = vmatprep.subr.bf16.mxu0 %v1781
    %2035 = vmatpush2.bf16.msra.mxu0 %v1780
    %2036 = vmatprep.mubr.bf16.mxu0 %v1211
    %2037 = vmatmul.mubr.bf16.gmra.mxu0 %v1210
    %v2038 = vpop.f32.mrf.mxu0
    %v2039 = vadd.f32 %v1347, %v2038
    %v2040 = vpop.f32.mrf.mxu0
    %v2041 = vadd.f32 %v1351, %v2040
    %v2042 = vpop.f32.mrf.mxu0
    %v2043 = vadd.f32 %v1347, %v2042
    %v2044 = vpop.f32.mrf.mxu0
    %v2045 = vadd.f32 %v1351, %v2044
    %2046 = vdwg.mxu0
    %2047 = vmatprep.subr.bf16.mxu0 %v1841
    %2048 = vmatpush1.bf16.msra.mxu0 %v1840
    %2049 = vmatprep.subr.bf16.mxu0 %v1837
    %2050 = vmatpush1.bf16.msra.mxu0 %v1836
    %2051 = vmatprep.subr.bf16.mxu0 %v1833
    %2052 = vmatpush1.bf16.msra.mxu0 %v1832
    %2053 = vmatprep.subr.bf16.mxu0 %v1829
    %2054 = vmatpush1.bf16.msra.mxu0 %v1828
    %2055 = vmatprep.subr.bf16.mxu0 %v1825
    %2056 = vmatpush1.bf16.msra.mxu0 %v1824
    %2057 = vmatprep.subr.bf16.mxu0 %v1821
    %2058 = vmatpush1.bf16.msra.mxu0 %v1820
    %2059 = vmatprep.subr.bf16.mxu0 %v1817
    %2060 = vmatpush1.bf16.msra.mxu0 %v1816
    %2061 = vmatprep.subr.bf16.mxu0 %v1813
    %2062 = vmatpush1.bf16.msra.mxu0 %v1812
    %2063 = vmatprep.subr.bf16.mxu0 %v1873
    %2064 = vmatpush2.bf16.msra.mxu0 %v1872
    %2065 = vmatprep.subr.bf16.mxu0 %v1869
    %2066 = vmatpush2.bf16.msra.mxu0 %v1868
    %2067 = vmatprep.subr.bf16.mxu0 %v1865
    %2068 = vmatpush2.bf16.msra.mxu0 %v1864
    %2069 = vmatprep.subr.bf16.mxu0 %v1861
    %2070 = vmatpush2.bf16.msra.mxu0 %v1860
    %2071 = vmatprep.subr.bf16.mxu0 %v1857
    %2072 = vmatpush2.bf16.msra.mxu0 %v1856
    %2073 = vmatprep.subr.bf16.mxu0 %v1853
    %2074 = vmatpush2.bf16.msra.mxu0 %v1852
    %2075 = vmatprep.subr.bf16.mxu0 %v1849
    %2076 = vmatpush2.bf16.msra.mxu0 %v1848
    %2077 = vmatprep.subr.bf16.mxu0 %v1845
    %2078 = vmatpush2.bf16.msra.mxu0 %v1844
    %2079 = vmatprep.mubr.bf16.mxu0 %v1213
    %2080 = vmatmul.mubr.bf16.gmra.mxu0 %v1212
    %v2081 = vpop.f32.mrf.mxu0
    %v2082 = vadd.f32 %v2039, %v2081
    %v2083 = vpop.f32.mrf.mxu0
    %v2084 = vadd.f32 %v2041, %v2083
    %v2085 = vpop.f32.mrf.mxu0
    %v2086 = vadd.f32 %v2043, %v2085
    %v2087 = vpop.f32.mrf.mxu0
    %v2088 = vadd.f32 %v2045, %v2087
    %2089 = vdwg.mxu0
    %2090 = vmatprep.subr.bf16.mxu0 %v1779
    %2091 = vmatpush1.bf16.msra.mxu0 %v1778
    %2092 = vmatprep.subr.bf16.mxu0 %v1775
    %2093 = vmatpush1.bf16.msra.mxu0 %v1774
    %2094 = vmatprep.subr.bf16.mxu0 %v1771
    %2095 = vmatpush1.bf16.msra.mxu0 %v1770
    %2096 = vmatprep.subr.bf16.mxu0 %v1767
    %2097 = vmatpush1.bf16.msra.mxu0 %v1766
    %2098 = vmatprep.subr.bf16.mxu0 %v1763
    %2099 = vmatpush1.bf16.msra.mxu0 %v1762
    %2100 = vmatprep.subr.bf16.mxu0 %v1759
    %2101 = vmatpush1.bf16.msra.mxu0 %v1758
    %2102 = vmatprep.subr.bf16.mxu0 %v1755
    %2103 = vmatpush1.bf16.msra.mxu0 %v1754
    %2104 = vmatprep.subr.bf16.mxu0 %v1751
    %2105 = vmatpush1.bf16.msra.mxu0 %v1750
    %2106 = vmatprep.subr.bf16.mxu0 %v1811
    %2107 = vmatpush2.bf16.msra.mxu0 %v1810
    %2108 = vmatprep.subr.bf16.mxu0 %v1807
    %2109 = vmatpush2.bf16.msra.mxu0 %v1806
    %2110 = vmatprep.subr.bf16.mxu0 %v1803
    %2111 = vmatpush2.bf16.msra.mxu0 %v1802
    %2112 = vmatprep.subr.bf16.mxu0 %v1799
    %2113 = vmatpush2.bf16.msra.mxu0 %v1798
    %2114 = vmatprep.subr.bf16.mxu0 %v1795
    %2115 = vmatpush2.bf16.msra.mxu0 %v1794
    %2116 = vmatprep.subr.bf16.mxu0 %v1791
    %2117 = vmatpush2.bf16.msra.mxu0 %v1790
    %2118 = vmatprep.subr.bf16.mxu0 %v1787
    %2119 = vmatpush2.bf16.msra.mxu0 %v1786
    %2120 = vmatprep.subr.bf16.mxu0 %v1783
    %2121 = vmatpush2.bf16.msra.mxu0 %v1782
    %2122 = vmatprep.mubr.bf16.mxu0 %v1211
    %2123 = vmatmul.mubr.bf16.gmra.mxu0 %v1210
    %v2124 = vpop.f32.mrf.mxu0
    %v2125 = vadd.f32 %v1355, %v2124
    %v2126 = vpop.f32.mrf.mxu0
    %v2127 = vadd.f32 %v1359, %v2126
    %v2128 = vpop.f32.mrf.mxu0
    %v2129 = vadd.f32 %v1355, %v2128
    %v2130 = vpop.f32.mrf.mxu0
    %v2131 = vadd.f32 %v1359, %v2130
    %2132 = vdwg.mxu0
    %2133 = vmatprep.subr.bf16.mxu0 %v1843
    %2134 = vmatpush1.bf16.msra.mxu0 %v1842
    %2135 = vmatprep.subr.bf16.mxu0 %v1839
    %2136 = vmatpush1.bf16.msra.mxu0 %v1838
    %2137 = vmatprep.subr.bf16.mxu0 %v1835
    %2138 = vmatpush1.bf16.msra.mxu0 %v1834
    %2139 = vmatprep.subr.bf16.mxu0 %v1831
    %2140 = vmatpush1.bf16.msra.mxu0 %v1830
    %2141 = vmatprep.subr.bf16.mxu0 %v1827
    %2142 = vmatpush1.bf16.msra.mxu0 %v1826
    %2143 = vmatprep.subr.bf16.mxu0 %v1823
    %2144 = vmatpush1.bf16.msra.mxu0 %v1822
    %2145 = vmatprep.subr.bf16.mxu0 %v1819
    %2146 = vmatpush1.bf16.msra.mxu0 %v1818
    %2147 = vmatprep.subr.bf16.mxu0 %v1815
    %2148 = vmatpush1.bf16.msra.mxu0 %v1814
    %2149 = vmatprep.subr.bf16.mxu0 %v1875
    %2150 = vmatpush2.bf16.msra.mxu0 %v1874
    %2151 = vmatprep.subr.bf16.mxu0 %v1871
    %2152 = vmatpush2.bf16.msra.mxu0 %v1870
    %2153 = vmatprep.subr.bf16.mxu0 %v1867
    %2154 = vmatpush2.bf16.msra.mxu0 %v1866
    %2155 = vmatprep.subr.bf16.mxu0 %v1863
    %2156 = vmatpush2.bf16.msra.mxu0 %v1862
    %2157 = vmatprep.subr.bf16.mxu0 %v1859
    %2158 = vmatpush2.bf16.msra.mxu0 %v1858
    %2159 = vmatprep.subr.bf16.mxu0 %v1855
    %2160 = vmatpush2.bf16.msra.mxu0 %v1854
    %2161 = vmatprep.subr.bf16.mxu0 %v1851
    %2162 = vmatpush2.bf16.msra.mxu0 %v1850
    %2163 = vmatprep.subr.bf16.mxu0 %v1847
    %2164 = vmatpush2.bf16.msra.mxu0 %v1846
    %2165 = vmatprep.mubr.bf16.mxu0 %v1213
    %2166 = vmatmul.mubr.bf16.gmra.mxu0 %v1212
    %v2167 = vpop.f32.mrf.mxu0
    %v2168 = vadd.f32 %v2125, %v2167
    %v2169 = vpop.f32.mrf.mxu0
    %v2170 = vadd.f32 %v2127, %v2169
    %v2171 = vpop.f32.mrf.mxu0
    %v2172 = vadd.f32 %v2129, %v2171
    %v2173 = vpop.f32.mrf.mxu0
    %v2174 = vadd.f32 %v2131, %v2173
    %2175 = vdwg.mxu0
    %v2176 = vmax.f32 %v2082, 0.0
    %v2177 = vmax.f32 %v2084, 0.0
    %v2178 = vmax.f32 %v2168, 0.0
    %v2179 = vmax.f32 %v2170, 0.0
    %v2180 = vmax.f32 %v2086, 0.0
    %v2181 = vmax.f32 %v2088, 0.0
    %v2182 = vmax.f32 %v2172, 0.0
    %v2183 = vmax.f32 %v2174, 0.0
    %v2184 = vpack.c.bf16 %v2180, %v2176
    %v2185 = vpack.c.bf16 %v2181, %v2177
    %v2186 = vpack.c.bf16 %v2182, %v2178
    %v2187 = vpack.c.bf16 %v2183, %v2179
    %v2188 = vld [vmem:[%s7] sm:$0xf]
    %v2189 = vld [vmem:[%s7 + $0x4] sm:$0xf]
    %v2190 = vld [vmem:[%s7 + $0x8] sm:$0xf]
    %v2191 = vld [vmem:[%s7 + $0xc] sm:$0xf]
    %v2192 = vld [vmem:[%s7 + $0x10] sm:$0xf]
    %v2193 = vld [vmem:[%s7 + $0x14] sm:$0xf]
    %v2194 = vld [vmem:[%s7 + $0x18] sm:$0xf]
    %v2195 = vld [vmem:[%s7 + $0x1c] sm:$0xf]
    %v2196 = vld [vmem:[%s7 + $0x20] sm:$0xf]
    %v2197 = vld [vmem:[%s7 + $0x24] sm:$0xf]
    %v2198 = vld [vmem:[%s7 + $0x28] sm:$0xf]
    %v2199 = vld [vmem:[%s7 + $0x2c] sm:$0xf]
    %v2200 = vld [vmem:[%s7 + $0x30] sm:$0xf]
    %v2201 = vld [vmem:[%s7 + $0x34] sm:$0xf]
    %v2202 = vld [vmem:[%s7 + $0x38] sm:$0xf]
    %v2203 = vld [vmem:[%s7 + $0x3c] sm:$0xf]
    %v2204 = vld [vmem:[%s7 + $0x40] sm:$0xf]
    %v2205 = vld [vmem:[%s7 + $0x44] sm:$0xf]
    %v2206 = vld [vmem:[%s7 + $0x48] sm:$0xf]
    %v2207 = vld [vmem:[%s7 + $0x4c] sm:$0xf]
    %v2208 = vld [vmem:[%s7 + $0x50] sm:$0xf]
    %v2209 = vld [vmem:[%s7 + $0x54] sm:$0xf]
    %v2210 = vld [vmem:[%s7 + $0x58] sm:$0xf]
    %v2211 = vld [vmem:[%s7 + $0x5c] sm:$0xf]
    %v2212 = vld [vmem:[%s7 + $0x60] sm:$0xf]
    %v2213 = vld [vmem:[%s7 + $0x64] sm:$0xf]
    %v2214 = vld [vmem:[%s7 + $0x68] sm:$0xf]
    %v2215 = vld [vmem:[%s7 + $0x6c] sm:$0xf]
    %v2216 = vld [vmem:[%s7 + $0x70] sm:$0xf]
    %v2217 = vld [vmem:[%s7 + $0x74] sm:$0xf]
    %v2218 = vld [vmem:[%s7 + $0x78] sm:$0xf]
    %v2219 = vld [vmem:[%s7 + $0x7c] sm:$0xf]
    %v2220 = vld [vmem:[%s7 + $0x80] sm:$0xf]
    %v2221 = vld [vmem:[%s7 + $0x84] sm:$0xf]
    %v2222 = vld [vmem:[%s7 + $0x88] sm:$0xf]
    %v2223 = vld [vmem:[%s7 + $0x8c] sm:$0xf]
    %v2224 = vld [vmem:[%s7 + $0x90] sm:$0xf]
    %v2225 = vld [vmem:[%s7 + $0x94] sm:$0xf]
    %v2226 = vld [vmem:[%s7 + $0x98] sm:$0xf]
    %v2227 = vld [vmem:[%s7 + $0x9c] sm:$0xf]
    %v2228 = vld [vmem:[%s7 + $0xa0] sm:$0xf]
    %v2229 = vld [vmem:[%s7 + $0xa4] sm:$0xf]
    %v2230 = vld [vmem:[%s7 + $0xa8] sm:$0xf]
    %v2231 = vld [vmem:[%s7 + $0xac] sm:$0xf]
    %v2232 = vld [vmem:[%s7 + $0xb0] sm:$0xf]
    %v2233 = vld [vmem:[%s7 + $0xb4] sm:$0xf]
    %v2234 = vld [vmem:[%s7 + $0xb8] sm:$0xf]
    %v2235 = vld [vmem:[%s7 + $0xbc] sm:$0xf]
    %v2236 = vld [vmem:[%s7 + $0xc0] sm:$0xf]
    %v2237 = vld [vmem:[%s7 + $0xc4] sm:$0xf]
    %v2238 = vld [vmem:[%s7 + $0xc8] sm:$0xf]
    %v2239 = vld [vmem:[%s7 + $0xcc] sm:$0xf]
    %v2240 = vld [vmem:[%s7 + $0xd0] sm:$0xf]
    %v2241 = vld [vmem:[%s7 + $0xd4] sm:$0xf]
    %v2242 = vld [vmem:[%s7 + $0xd8] sm:$0xf]
    %v2243 = vld [vmem:[%s7 + $0xdc] sm:$0xf]
    %v2244 = vld [vmem:[%s7 + $0xe0] sm:$0xf]
    %v2245 = vld [vmem:[%s7 + $0xe4] sm:$0xf]
    %v2246 = vld [vmem:[%s7 + $0xe8] sm:$0xf]
    %v2247 = vld [vmem:[%s7 + $0xec] sm:$0xf]
    %v2248 = vld [vmem:[%s7 + $0xf0] sm:$0xf]
    %v2249 = vld [vmem:[%s7 + $0xf4] sm:$0xf]
    %v2250 = vld [vmem:[%s7 + $0xf8] sm:$0xf]
    %v2251 = vld [vmem:[%s7 + $0xfc] sm:$0xf]
    %v2252 = vld [vmem:[%s8] sm:$0x1]
    %v2254 = vlaneseq
    %v2255 = vshrl.u32 %v2254, 7
    %v2256 = vsub.s32 0, %v2255
    %v2257 = vrot.slane %v2252, %v2256
    %v2323 = vunpack.c.l.b16 %v2188
    %v2324 = vunpack.c.l.b16 %v2189
    %v2325 = vunpack.c.l.b16 %v2190
    %v2326 = vunpack.c.l.b16 %v2191
    %v2327 = vunpack.c.l.b16 %v2192
    %v2328 = vunpack.c.l.b16 %v2193
    %v2329 = vunpack.c.l.b16 %v2194
    %v2330 = vunpack.c.l.b16 %v2195
    %v2331 = vunpack.c.l.b16 %v2196
    %v2332 = vunpack.c.l.b16 %v2197
    %v2333 = vunpack.c.l.b16 %v2198
    %v2334 = vunpack.c.l.b16 %v2199
    %v2335 = vunpack.c.l.b16 %v2200
    %v2336 = vunpack.c.l.b16 %v2201
    %v2337 = vunpack.c.l.b16 %v2202
    %v2338 = vunpack.c.l.b16 %v2203
    %v2339 = vunpack.c.l.b16 %v2204
    %v2340 = vunpack.c.l.b16 %v2205
    %v2341 = vunpack.c.l.b16 %v2206
    %v2342 = vunpack.c.l.b16 %v2207
    %v2343 = vunpack.c.l.b16 %v2208
    %v2344 = vunpack.c.l.b16 %v2209
    %v2345 = vunpack.c.l.b16 %v2210
    %v2346 = vunpack.c.l.b16 %v2211
    %v2347 = vunpack.c.l.b16 %v2212
    %v2348 = vunpack.c.l.b16 %v2213
    %v2349 = vunpack.c.l.b16 %v2214
    %v2350 = vunpack.c.l.b16 %v2215
    %v2351 = vunpack.c.l.b16 %v2216
    %v2352 = vunpack.c.l.b16 %v2217
    %v2353 = vunpack.c.l.b16 %v2218
    %v2354 = vunpack.c.l.b16 %v2219
    %v2355 = vunpack.c.l.b16 %v2220
    %v2356 = vunpack.c.l.b16 %v2221
    %v2357 = vunpack.c.l.b16 %v2222
    %v2358 = vunpack.c.l.b16 %v2223
    %v2359 = vunpack.c.l.b16 %v2224
    %v2360 = vunpack.c.l.b16 %v2225
    %v2361 = vunpack.c.l.b16 %v2226
    %v2362 = vunpack.c.l.b16 %v2227
    %v2363 = vunpack.c.l.b16 %v2228
    %v2364 = vunpack.c.l.b16 %v2229
    %v2365 = vunpack.c.l.b16 %v2230
    %v2366 = vunpack.c.l.b16 %v2231
    %v2367 = vunpack.c.l.b16 %v2232
    %v2368 = vunpack.c.l.b16 %v2233
    %v2369 = vunpack.c.l.b16 %v2234
    %v2370 = vunpack.c.l.b16 %v2235
    %v2371 = vunpack.c.l.b16 %v2236
    %v2372 = vunpack.c.l.b16 %v2237
    %v2373 = vunpack.c.l.b16 %v2238
    %v2374 = vunpack.c.l.b16 %v2239
    %v2375 = vunpack.c.l.b16 %v2240
    %v2376 = vunpack.c.l.b16 %v2241
    %v2377 = vunpack.c.l.b16 %v2242
    %v2378 = vunpack.c.l.b16 %v2243
    %v2379 = vunpack.c.l.b16 %v2244
    %v2380 = vunpack.c.l.b16 %v2245
    %v2381 = vunpack.c.l.b16 %v2246
    %v2382 = vunpack.c.l.b16 %v2247
    %v2383 = vunpack.c.l.b16 %v2248
    %v2384 = vunpack.c.l.b16 %v2249
    %v2385 = vunpack.c.l.b16 %v2250
    %v2386 = vunpack.c.l.b16 %v2251
    %v2387 = vpack.c.b16 %v2324, %v2323
    %v2388 = vpack.c.b16 %v2326, %v2325
    %v2389 = vpack.c.b16 %v2328, %v2327
    %v2390 = vpack.c.b16 %v2330, %v2329
    %v2391 = vpack.c.b16 %v2332, %v2331
    %v2392 = vpack.c.b16 %v2334, %v2333
    %v2393 = vpack.c.b16 %v2336, %v2335
    %v2394 = vpack.c.b16 %v2338, %v2337
    %v2395 = vpack.c.b16 %v2340, %v2339
    %v2396 = vpack.c.b16 %v2342, %v2341
    %v2397 = vpack.c.b16 %v2344, %v2343
    %v2398 = vpack.c.b16 %v2346, %v2345
    %v2399 = vpack.c.b16 %v2348, %v2347
    %v2400 = vpack.c.b16 %v2350, %v2349
    %v2401 = vpack.c.b16 %v2352, %v2351
    %v2402 = vpack.c.b16 %v2354, %v2353
    %v2403 = vpack.c.b16 %v2356, %v2355
    %v2404 = vpack.c.b16 %v2358, %v2357
    %v2405 = vpack.c.b16 %v2360, %v2359
    %v2406 = vpack.c.b16 %v2362, %v2361
    %v2407 = vpack.c.b16 %v2364, %v2363
    %v2408 = vpack.c.b16 %v2366, %v2365
    %v2409 = vpack.c.b16 %v2368, %v2367
    %v2410 = vpack.c.b16 %v2370, %v2369
    %v2411 = vpack.c.b16 %v2372, %v2371
    %v2412 = vpack.c.b16 %v2374, %v2373
    %v2413 = vpack.c.b16 %v2376, %v2375
    %v2414 = vpack.c.b16 %v2378, %v2377
    %v2415 = vpack.c.b16 %v2380, %v2379
    %v2416 = vpack.c.b16 %v2382, %v2381
    %v2417 = vpack.c.b16 %v2384, %v2383
    %v2418 = vpack.c.b16 %v2386, %v2385
    %2451 = vmatprep.subr.bf16.mxu0 0
    %2452 = vmatpush1.bf16.msra.mxu0 %v2394
    %2453 = vmatprep.subr.bf16.mxu0 0
    %2454 = vmatpush1.bf16.msra.mxu0 %v2393
    %2455 = vmatprep.subr.bf16.mxu0 0
    %2456 = vmatpush1.bf16.msra.mxu0 %v2392
    %2457 = vmatprep.subr.bf16.mxu0 0
    %2458 = vmatpush1.bf16.msra.mxu0 %v2391
    %2459 = vmatprep.subr.bf16.mxu0 0
    %2460 = vmatpush1.bf16.msra.mxu0 %v2390
    %2461 = vmatprep.subr.bf16.mxu0 0
    %2462 = vmatpush1.bf16.msra.mxu0 %v2389
    %2463 = vmatprep.subr.bf16.mxu0 0
    %2464 = vmatpush1.bf16.msra.mxu0 %v2388
    %2465 = vmatprep.subr.bf16.mxu0 0
    %2466 = vmatpush1.bf16.msra.mxu0 %v2387
    %2467 = vmatprep.subr.bf16.mxu0 0
    %2468 = vmatpush2.bf16.msra.mxu0 %v2402
    %2469 = vmatprep.subr.bf16.mxu0 0
    %2470 = vmatpush2.bf16.msra.mxu0 %v2401
    %2471 = vmatprep.subr.bf16.mxu0 0
    %2472 = vmatpush2.bf16.msra.mxu0 %v2400
    %2473 = vmatprep.subr.bf16.mxu0 0
    %2474 = vmatpush2.bf16.msra.mxu0 %v2399
    %2475 = vmatprep.subr.bf16.mxu0 0
    %2476 = vmatpush2.bf16.msra.mxu0 %v2398
    %2477 = vmatprep.subr.bf16.mxu0 0
    %2478 = vmatpush2.bf16.msra.mxu0 %v2397
    %2479 = vmatprep.subr.bf16.mxu0 0
    %2480 = vmatpush2.bf16.msra.mxu0 %v2396
    %2481 = vmatprep.subr.bf16.mxu0 0
    %2482 = vmatpush2.bf16.msra.mxu0 %v2395
    %2483 = vmatprep.mubr.bf16.mxu0 %v2185
    %2484 = vmatmul.mubr.bf16.gmra.mxu0 %v2184
    %v2485 = vpop.f32.mrf.mxu0
    %v2486 = vadd.f32 %v2257, %v2485
    %v2487 = vpop.f32.mrf.mxu0
    %v2488 = vpop.f32.mrf.mxu0
    %v2489 = vadd.f32 %v2257, %v2488
    %v2490 = vpop.f32.mrf.mxu0
    %2491 = vdwg.mxu0
    %2492 = vmatprep.subr.bf16.mxu0 0
    %2493 = vmatpush1.bf16.msra.mxu0 %v2410
    %2494 = vmatprep.subr.bf16.mxu0 0
    %2495 = vmatpush1.bf16.msra.mxu0 %v2409
    %2496 = vmatprep.subr.bf16.mxu0 0
    %2497 = vmatpush1.bf16.msra.mxu0 %v2408
    %2498 = vmatprep.subr.bf16.mxu0 0
    %2499 = vmatpush1.bf16.msra.mxu0 %v2407
    %2500 = vmatprep.subr.bf16.mxu0 0
    %2501 = vmatpush1.bf16.msra.mxu0 %v2406
    %2502 = vmatprep.subr.bf16.mxu0 0
    %2503 = vmatpush1.bf16.msra.mxu0 %v2405
    %2504 = vmatprep.subr.bf16.mxu0 0
    %2505 = vmatpush1.bf16.msra.mxu0 %v2404
    %2506 = vmatprep.subr.bf16.mxu0 0
    %2507 = vmatpush1.bf16.msra.mxu0 %v2403
    %2508 = vmatprep.subr.bf16.mxu0 0
    %2509 = vmatpush2.bf16.msra.mxu0 %v2418
    %2510 = vmatprep.subr.bf16.mxu0 0
    %2511 = vmatpush2.bf16.msra.mxu0 %v2417
    %2512 = vmatprep.subr.bf16.mxu0 0
    %2513 = vmatpush2.bf16.msra.mxu0 %v2416
    %2514 = vmatprep.subr.bf16.mxu0 0
    %2515 = vmatpush2.bf16.msra.mxu0 %v2415
    %2516 = vmatprep.subr.bf16.mxu0 0
    %2517 = vmatpush2.bf16.msra.mxu0 %v2414
    %2518 = vmatprep.subr.bf16.mxu0 0
    %2519 = vmatpush2.bf16.msra.mxu0 %v2413
    %2520 = vmatprep.subr.bf16.mxu0 0
    %2521 = vmatpush2.bf16.msra.mxu0 %v2412
    %2522 = vmatprep.subr.bf16.mxu0 0
    %2523 = vmatpush2.bf16.msra.mxu0 %v2411
    %2524 = vmatprep.mubr.bf16.mxu0 %v2187
    %2525 = vmatmul.mubr.bf16.gmra.mxu0 %v2186
    %v2526 = vpop.f32.mrf.mxu0
    %v2527 = vadd.f32 %v2486, %v2526
    %v2528 = vpop.f32.mrf.mxu0
    %v2529 = vpop.f32.mrf.mxu0
    %v2530 = vadd.f32 %v2489, %v2529
    %v2531 = vpop.f32.mrf.mxu0
    %2532 = vdwg.mxu0
    %v2533 = vlaneseq
    %v2534 = vand.u32 %v2533, 127
    %vm2535 = vcmp.lt.s32.totalorder %v2534, 2
    %v2536 = vtanh.pop %v2527
    %v2537 = vtanh.pop %v2530
    %v2538 = vmax.f32 %v2527, -20.0
    %v2539 = vmax.f32 %v2530, -20.0
    %v2540 = vmin.f32 %v2538, 2.0
    %v2541 = vmin.f32 %v2539, 2.0
    %v2542 = vsel %vm2535, %v2536, %v2540
    %v2543 = vsel %vm2535, %v2537, %v2541
    %vm2544 = vcmask 31744
    %2545 = vst.msk [vmem:[%s9] sm:$0xff] %vm2544, %v2542
    %2546 = vst.msk [vmem:[%s9 + $0x8] sm:$0xff] %vm2544, %v2543
    // Predicated region
    $region46: #{tpu_custom_call.1} parent=1 // pred_check
      _
    $region47: #{tpu_custom_call.1} parent=1 // pred_check_branch
      %2548 = sbr.rel (0) target = $region49
    $region48: #{tpu_custom_call.1} parent=1 // pred_region
      _
    $region49: #{tpu_custom_call.1} parent=1 // pred_fallthru
      _
    // Predicated region
    $region50: #{tpu_custom_call.1} parent=1 // pred_check
      _
    $region51: #{tpu_custom_call.1} parent=1 // pred_check_branch
      %2550 = sbr.rel (0) target = $region53
    $region52: #{tpu_custom_call.1} parent=1 // pred_region
      _
    $region53: #{tpu_custom_call.1} parent=1 // pred_fallthru
      _
    %2551 = vsyncpa [#allocation3], 1
    %2552 = vsyncpa [#allocation5], 1

</llo_original>
